<compile_context>
chip_gen: v7x
topology: tpu7x:2x2x1
jax: 0.10.0
libtpu: 0.0.40
codegen_flags: <defaults>
</compile_context>

<pallas_src>
import jax
import jax.numpy as jnp
import numpy as np
from jax import lax
from jax.experimental import pallas as pl
from jax.experimental.pallas import tpu as pltpu

KS = 7                      # spatial conv kernel size
PAD = (KS - 1) // 2
BN_EPS = 1e-5


def spatial_kernel(w_ref, sh_ref, x_ref, o_ref, pad_ref):
    """One batch block of `nb` images.

    w_ref   : SMEM (2*7*7,) f32   conv weights, BN-scale (and 1/C for the mean channel) pre-folded
    sh_ref  : SMEM (1,)     f32   folded BatchNorm shift (eval mode)
    x_ref   : VMEM (nb, C, H, W)  input block
    o_ref   : VMEM (nb, H, W)     output block
    pad_ref : VMEM (2*nb, Hp, Wp) scratch: zero-bordered [max | sum] planes
    """
    nb, C, H, W = x_ref.shape
    Hp = H + 2 * PAD
    Wp = W + 2 * PAD

    x = x_ref[...].astype(jnp.float32)          # (nb, C, H, W)

    # ChannelPool: running max and running sum over channels
    # (the 1/C of the mean is folded into the conv weights on the host).
    x_max = x[:, 0]
    x_sum = x[:, 0]
    for c in range(1, C):
        xc = x[:, c]
        x_max = jnp.maximum(x_max, xc)
        x_sum = x_sum + xc

    # Zero only the 3-wide border frame (interior is fully overwritten below).
    z_tb = jnp.zeros((2 * nb, PAD, Wp), jnp.float32)
    pad_ref[:, :PAD, :] = z_tb
    pad_ref[:, PAD + H:, :] = z_tb
    z_lr = jnp.zeros((2 * nb, H, PAD), jnp.float32)
    pad_ref[:, PAD:PAD + H, :PAD] = z_lr
    pad_ref[:, PAD:PAD + H, PAD + W:] = z_lr

    # Interior: planes 0..nb-1 = max, planes nb..2nb-1 = sum.
    pad_ref[:nb, PAD:PAD + H, PAD:PAD + W] = x_max
    pad_ref[nb:, PAD:PAD + H, PAD:PAD + W] = x_sum

    # 7x7 conv (2 in -> 1 out), stride 1, no bias.  BN scale is already folded into
    # the weights; BN shift is the accumulator seed.  Lane shifts (dw) are hoisted:
    # 14 lane-shifted slabs, inner dh loop is sublane-offset slices only.
    acc = jnp.full((nb, H, W), sh_ref[0], jnp.float32)
    for c in range(2):
        plane = pad_ref[c * nb:(c + 1) * nb]          # (nb, Hp, Wp), one load per channel
        for dw in range(KS):
            slab = plane[:, :, dw:dw + W]             # lane shift hoisted (14 total)
            base = c * KS * KS + dw
            for dh in range(KS):
                acc = acc + slab[:, dh:dh + H, :] * w_ref[base + dh * KS]

    o_ref[...] = acc.astype(o_ref.dtype)


def spatial_module(x, conv_w, bn_gamma, bn_beta, bn_mean, bn_var):
    """x: (N, C, H, W). conv_w: (1, 2, 7, 7). Returns (N, 1, H, W) (BN in eval mode)."""
    N, C, H, W = x.shape
    Hp, Wp = H + 2 * PAD, W + 2 * PAD

    # Fold BN (eval) into the conv: scale -> weights, shift -> kernel epilogue seed.
    g = jnp.asarray(bn_gamma, jnp.float32).reshape(())
    b = jnp.asarray(bn_beta, jnp.float32).reshape(())
    m = jnp.asarray(bn_mean, jnp.float32).reshape(())
    v = jnp.asarray(bn_var, jnp.float32).reshape(())
    scale = g / jnp.sqrt(v + BN_EPS)
    shift = (b - m * scale).reshape(1)

    w_eff = conv_w[0].astype(jnp.float32) * scale     # (2, 7, 7), BN scale folded
    w_eff = w_eff.at[1].multiply(1.0 / C)             # fold mean's 1/C into the sum-channel weights
    w_flat = w_eff.reshape(-1)                        # (2*7*7,)

    # Pick images per grid step so double-buffered in/out blocks + scratch + f32
    # working copies stay within a conservative VMEM budget (v7x has only 64 MiB).
    itemsize = jnp.dtype(x.dtype).itemsize
    per_img = (2 * C * H * W * itemsize     # input block, double-buffered
               + 2 * H * W * itemsize       # output block, double-buffered
               + 2 * Hp * Wp * 4            # padded scratch planes
               + C * H * W * 4              # f32 working copy of the input block
               + 8 * H * W * 4)             # misc f32 temporaries / headroom
    budget = 16 * 1024 * 1024
    nb = int(max(1, min(N, budget // max(per_img, 1))))
    while N % nb != 0:                      # keep blocks full (no partial batch block)
        nb -= 1

    # TODO(synk): for very large C*H*W (won't fit v7x's 64 MiB VMEM per image block),
    # add an "arbitrary" channel-chunk grid axis accumulating running max/sum in scratch.

    out = pl.pallas_call(
        spatial_kernel,
        out_shape=jax.ShapeDtypeStruct((N, H, W), x.dtype),
        grid_spec=pltpu.PrefetchScalarGridSpec(
            num_scalar_prefetch=0,
            grid=(N // nb,),
            in_specs=[
                pl.BlockSpec(memory_space=pltpu.MemorySpace.SMEM),            # conv weights (folded)
                pl.BlockSpec(memory_space=pltpu.MemorySpace.SMEM),            # bn shift
                pl.BlockSpec((nb, C, H, W), lambda n: (n, 0, 0, 0)),          # x block
            ],
            out_specs=pl.BlockSpec((nb, H, W), lambda n: (n, 0, 0)),
            scratch_shapes=[pltpu.VMEM((2 * nb, Hp, Wp), jnp.float32)],
        ),
        compiler_params=pltpu.CompilerParams(
            dimension_semantics=("parallel",),        # shards batch across v7x's 2 TCs
            vmem_limit_bytes=32 * 1024 * 1024,
        ),
    )(w_flat, shift, x)

    return out.reshape(N, 1, H, W)


def _reference(x, conv_w, bn_gamma, bn_beta, bn_mean, bn_var):
    """Pure-JAX reference mirroring the PyTorch module (BN in eval mode)."""
    x_max = jnp.max(x, axis=1, keepdims=True)
    x_mean = jnp.mean(x, axis=1, keepdims=True)
    xc = jnp.concatenate([x_max, x_mean], axis=1)            # (N, 2, H, W)
    y = lax.conv_general_dilated(
        xc, conv_w, window_strides=(1, 1), padding=[(PAD, PAD), (PAD, PAD)],
        dimension_numbers=("NCHW", "OIHW", "NCHW"))
    scale = bn_gamma / jnp.sqrt(bn_var + BN_EPS)
    shift = bn_beta - bn_mean * scale
    return y * scale + shift


if __name__ == "__main__":
    key = jax.random.PRNGKey(0)
    k_x, k_w = jax.random.split(key)

    N, C, H, W = 2, 4, 16, 16
    x = jax.random.normal(k_x, (N, C, H, W), dtype=jnp.float32)

    # Deterministic synthetic parameters (shapes from the module __init__).
    conv_w = 0.05 * jax.random.normal(k_w, (1, 2, KS, KS), dtype=jnp.float32)
    bn_gamma = jnp.asarray(1.5, jnp.float32)
    bn_beta = jnp.asarray(0.1, jnp.float32)
    bn_mean = jnp.asarray(0.05, jnp.float32)
    bn_var = jnp.asarray(0.8, jnp.float32)

    out = spatial_module(x, conv_w, bn_gamma, bn_beta, bn_mean, bn_var)
    out = jax.block_until_ready(out)

    ref = _reference(x, conv_w, bn_gamma, bn_beta, bn_mean, bn_var)
    assert out.shape == (N, 1, H, W)
    np.testing.assert_allclose(np.asarray(out), np.asarray(ref), rtol=1e-5, atol=1e-5)

    print("KERNEL_OK")
</pallas_src>

<mosaic_0001>
module attributes {stable_mosaic.version = 11 : i64} {
  func.func @spatial_kernel(%arg0: i32, %arg1: memref<98xf32, #tpu.memory_space<smem>>, %arg2: memref<1xf32, #tpu.memory_space<smem>>, %arg3: memref<2x4x16x16xf32, #tpu.memory_space<vmem>>, %arg4: memref<2x16x16xf32, #tpu.memory_space<vmem>>, %arg5: memref<4x22x22xf32, #tpu.memory_space<vmem>>) attributes {dimension_semantics = [#tpu.dimension_semantics<parallel>], iteration_bounds = array<i64: 1>, scalar_prefetch = 0 : i64, scratch_operands = 1 : i64, tpu.core_type = #tpu.core_type<tc>, window_params = [{transform_indices = @transform_0, window_bounds = array<i64: 98>}, {transform_indices = @transform_1, window_bounds = array<i64: 1>}, {transform_indices = @transform_2, window_bounds = array<i64: 2, 4, 16, 16>}, {transform_indices = @transform_3, window_bounds = array<i64: 2, 16, 16>}]} {
    %c0 = arith.constant 0 : index
    %c0_0 = arith.constant 0 : index
    %c0_1 = arith.constant 0 : index
    %c0_2 = arith.constant 0 : index
    %0 = vector.load %arg3[%c0, %c0_0, %c0_1, %c0_2] : memref<2x4x16x16xf32, #tpu.memory_space<vmem>>, vector<2x4x16x16xf32>
    %1 = vector.extract_strided_slice %0 {offsets = [0, 0, 0, 0], sizes = [2, 1, 16, 16], strides = [1, 1, 1, 1]} : vector<2x4x16x16xf32> to vector<2x1x16x16xf32>
    %2 = vector.shape_cast %1 : vector<2x1x16x16xf32> to vector<2x16x16xf32>
    %3 = vector.extract_strided_slice %0 {offsets = [0, 0, 0, 0], sizes = [2, 1, 16, 16], strides = [1, 1, 1, 1]} : vector<2x4x16x16xf32> to vector<2x1x16x16xf32>
    %4 = vector.shape_cast %3 : vector<2x1x16x16xf32> to vector<2x16x16xf32>
    %5 = vector.extract_strided_slice %0 {offsets = [0, 1, 0, 0], sizes = [2, 1, 16, 16], strides = [1, 1, 1, 1]} : vector<2x4x16x16xf32> to vector<2x1x16x16xf32>
    %6 = vector.shape_cast %5 : vector<2x1x16x16xf32> to vector<2x16x16xf32>
    %7 = arith.maximumf %2, %6 : vector<2x16x16xf32>
    %8 = arith.addf %4, %6 : vector<2x16x16xf32>
    %9 = vector.extract_strided_slice %0 {offsets = [0, 2, 0, 0], sizes = [2, 1, 16, 16], strides = [1, 1, 1, 1]} : vector<2x4x16x16xf32> to vector<2x1x16x16xf32>
    %10 = vector.shape_cast %9 : vector<2x1x16x16xf32> to vector<2x16x16xf32>
    %11 = arith.maximumf %7, %10 : vector<2x16x16xf32>
    %12 = arith.addf %8, %10 : vector<2x16x16xf32>
    %13 = vector.extract_strided_slice %0 {offsets = [0, 3, 0, 0], sizes = [2, 1, 16, 16], strides = [1, 1, 1, 1]} : vector<2x4x16x16xf32> to vector<2x1x16x16xf32>
    %14 = vector.shape_cast %13 : vector<2x1x16x16xf32> to vector<2x16x16xf32>
    %15 = arith.maximumf %11, %14 : vector<2x16x16xf32>
    %16 = arith.addf %12, %14 : vector<2x16x16xf32>
    %cst = arith.constant 0.000000e+00 : f32
    %17 = vector.broadcast %cst : f32 to vector<4x3x22xf32>
    %c0_3 = arith.constant 0 : index
    %c0_4 = arith.constant 0 : index
    %c0_5 = arith.constant 0 : index
    %18 = vector.load %arg5[%c0_3, %c0_4, %c0_5] : memref<4x22x22xf32, #tpu.memory_space<vmem>>, vector<4x3x22xf32>
    tpu.vector_store %arg5[%c0_3, %c0_4, %c0_5], %17 {strides = array<i32>} : memref<4x22x22xf32, #tpu.memory_space<vmem>>, vector<4x3x22xf32>,
    %c0_6 = arith.constant 0 : index
    %c19 = arith.constant 19 : index
    %c0_7 = arith.constant 0 : index
    %19 = vector.load %arg5[%c0_6, %c19, %c0_7] : memref<4x22x22xf32, #tpu.memory_space<vmem>>, vector<4x3x22xf32>
    tpu.vector_store %arg5[%c0_6, %c19, %c0_7], %17 {strides = array<i32>} : memref<4x22x22xf32, #tpu.memory_space<vmem>>, vector<4x3x22xf32>,
    %cst_8 = arith.constant 0.000000e+00 : f32
    %20 = vector.broadcast %cst_8 : f32 to vector<4x16x3xf32>
    %c0_9 = arith.constant 0 : index
    %c3 = arith.constant 3 : index
    %c0_10 = arith.constant 0 : index
    %21 = vector.load %arg5[%c0_9, %c3, %c0_10] : memref<4x22x22xf32, #tpu.memory_space<vmem>>, vector<4x16x3xf32>
    tpu.vector_store %arg5[%c0_9, %c3, %c0_10], %20 {strides = array<i32>} : memref<4x22x22xf32, #tpu.memory_space<vmem>>, vector<4x16x3xf32>,
    %c0_11 = arith.constant 0 : index
    %c3_12 = arith.constant 3 : index
    %c19_13 = arith.constant 19 : index
    %22 = vector.load %arg5[%c0_11, %c3_12, %c19_13] : memref<4x22x22xf32, #tpu.memory_space<vmem>>, vector<4x16x3xf32>
    tpu.vector_store %arg5[%c0_11, %c3_12, %c19_13], %20 {strides = array<i32>} : memref<4x22x22xf32, #tpu.memory_space<vmem>>, vector<4x16x3xf32>,
    %c0_14 = arith.constant 0 : index
    %c3_15 = arith.constant 3 : index
    %c3_16 = arith.constant 3 : index
    %23 = vector.load %arg5[%c0_14, %c3_15, %c3_16] : memref<4x22x22xf32, #tpu.memory_space<vmem>>, vector<2x16x16xf32>
    tpu.vector_store %arg5[%c0_14, %c3_15, %c3_16], %15 {strides = array<i32>} : memref<4x22x22xf32, #tpu.memory_space<vmem>>, vector<2x16x16xf32>,
    %c2 = arith.constant 2 : index
    %c3_17 = arith.constant 3 : index
    %c3_18 = arith.constant 3 : index
    %24 = vector.load %arg5[%c2, %c3_17, %c3_18] : memref<4x22x22xf32, #tpu.memory_space<vmem>>, vector<2x16x16xf32>
    tpu.vector_store %arg5[%c2, %c3_17, %c3_18], %16 {strides = array<i32>} : memref<4x22x22xf32, #tpu.memory_space<vmem>>, vector<2x16x16xf32>,
    %c0_19 = arith.constant 0 : index
    %25 = memref.load %arg2[%c0_19] : memref<1xf32, #tpu.memory_space<smem>>
    %26 = vector.broadcast %25 : f32 to vector<2x16x16xf32>
    %c0_20 = arith.constant 0 : index
    %c0_21 = arith.constant 0 : index
    %c0_22 = arith.constant 0 : index
    %27 = vector.load %arg5[%c0_20, %c0_21, %c0_22] : memref<4x22x22xf32, #tpu.memory_space<vmem>>, vector<2x22x22xf32>
    %28 = vector.extract_strided_slice %27 {offsets = [0, 0, 0], sizes = [2, 22, 16], strides = [1, 1, 1]} : vector<2x22x22xf32> to vector<2x22x16xf32>
    %29 = vector.extract_strided_slice %28 {offsets = [0, 0, 0], sizes = [2, 16, 16], strides = [1, 1, 1]} : vector<2x22x16xf32> to vector<2x16x16xf32>
    %c0_23 = arith.constant 0 : index
    %30 = memref.load %arg1[%c0_23] : memref<98xf32, #tpu.memory_space<smem>>
    %31 = vector.broadcast %30 : f32 to vector<2x16x16xf32>
    %32 = arith.mulf %29, %31 : vector<2x16x16xf32>
    %33 = arith.addf %26, %32 : vector<2x16x16xf32>
    %34 = vector.extract_strided_slice %28 {offsets = [0, 1, 0], sizes = [2, 16, 16], strides = [1, 1, 1]} : vector<2x22x16xf32> to vector<2x16x16xf32>
    %c7 = arith.constant 7 : index
    %35 = memref.load %arg1[%c7] : memref<98xf32, #tpu.memory_space<smem>>
    %36 = vector.broadcast %35 : f32 to vector<2x16x16xf32>
    %37 = arith.mulf %34, %36 : vector<2x16x16xf32>
    %38 = arith.addf %33, %37 : vector<2x16x16xf32>
    %39 = vector.extract_strided_slice %28 {offsets = [0, 2, 0], sizes = [2, 16, 16], strides = [1, 1, 1]} : vector<2x22x16xf32> to vector<2x16x16xf32>
    %c14 = arith.constant 14 : index
    %40 = memref.load %arg1[%c14] : memref<98xf32, #tpu.memory_space<smem>>
    %41 = vector.broadcast %40 : f32 to vector<2x16x16xf32>
    %42 = arith.mulf %39, %41 : vector<2x16x16xf32>
    %43 = arith.addf %38, %42 : vector<2x16x16xf32>
    %44 = vector.extract_strided_slice %28 {offsets = [0, 3, 0], sizes = [2, 16, 16], strides = [1, 1, 1]} : vector<2x22x16xf32> to vector<2x16x16xf32>
    %c21 = arith.constant 21 : index
    %45 = memref.load %arg1[%c21] : memref<98xf32, #tpu.memory_space<smem>>
    %46 = vector.broadcast %45 : f32 to vector<2x16x16xf32>
    %47 = arith.mulf %44, %46 : vector<2x16x16xf32>
    %48 = arith.addf %43, %47 : vector<2x16x16xf32>
    %49 = vector.extract_strided_slice %28 {offsets = [0, 4, 0], sizes = [2, 16, 16], strides = [1, 1, 1]} : vector<2x22x16xf32> to vector<2x16x16xf32>
    %c28 = arith.constant 28 : index
    %50 = memref.load %arg1[%c28] : memref<98xf32, #tpu.memory_space<smem>>
    %51 = vector.broadcast %50 : f32 to vector<2x16x16xf32>
    %52 = arith.mulf %49, %51 : vector<2x16x16xf32>
    %53 = arith.addf %48, %52 : vector<2x16x16xf32>
    %54 = vector.extract_strided_slice %28 {offsets = [0, 5, 0], sizes = [2, 16, 16], strides = [1, 1, 1]} : vector<2x22x16xf32> to vector<2x16x16xf32>
    %c35 = arith.constant 35 : index
    %55 = memref.load %arg1[%c35] : memref<98xf32, #tpu.memory_space<smem>>
    %56 = vector.broadcast %55 : f32 to vector<2x16x16xf32>
    %57 = arith.mulf %54, %56 : vector<2x16x16xf32>
    %58 = arith.addf %53, %57 : vector<2x16x16xf32>
    %59 = vector.extract_strided_slice %28 {offsets = [0, 6, 0], sizes = [2, 16, 16], strides = [1, 1, 1]} : vector<2x22x16xf32> to vector<2x16x16xf32>
    %c42 = arith.constant 42 : index
    %60 = memref.load %arg1[%c42] : memref<98xf32, #tpu.memory_space<smem>>
    %61 = vector.broadcast %60 : f32 to vector<2x16x16xf32>
    %62 = arith.mulf %59, %61 : vector<2x16x16xf32>
    %63 = arith.addf %58, %62 : vector<2x16x16xf32>
    %64 = vector.extract_strided_slice %27 {offsets = [0, 0, 1], sizes = [2, 22, 16], strides = [1, 1, 1]} : vector<2x22x22xf32> to vector<2x22x16xf32>
    %65 = vector.extract_strided_slice %64 {offsets = [0, 0, 0], sizes = [2, 16, 16], strides = [1, 1, 1]} : vector<2x22x16xf32> to vector<2x16x16xf32>
    %c1 = arith.constant 1 : index
    %66 = memref.load %arg1[%c1] : memref<98xf32, #tpu.memory_space<smem>>
    %67 = vector.broadcast %66 : f32 to vector<2x16x16xf32>
    %68 = arith.mulf %65, %67 : vector<2x16x16xf32>
    %69 = arith.addf %63, %68 : vector<2x16x16xf32>
    %70 = vector.extract_strided_slice %64 {offsets = [0, 1, 0], sizes = [2, 16, 16], strides = [1, 1, 1]} : vector<2x22x16xf32> to vector<2x16x16xf32>
    %c8 = arith.constant 8 : index
    %71 = memref.load %arg1[%c8] : memref<98xf32, #tpu.memory_space<smem>>
    %72 = vector.broadcast %71 : f32 to vector<2x16x16xf32>
    %73 = arith.mulf %70, %72 : vector<2x16x16xf32>
    %74 = arith.addf %69, %73 : vector<2x16x16xf32>
    %75 = vector.extract_strided_slice %64 {offsets = [0, 2, 0], sizes = [2, 16, 16], strides = [1, 1, 1]} : vector<2x22x16xf32> to vector<2x16x16xf32>
    %c15 = arith.constant 15 : index
    %76 = memref.load %arg1[%c15] : memref<98xf32, #tpu.memory_space<smem>>
    %77 = vector.broadcast %76 : f32 to vector<2x16x16xf32>
    %78 = arith.mulf %75, %77 : vector<2x16x16xf32>
    %79 = arith.addf %74, %78 : vector<2x16x16xf32>
    %80 = vector.extract_strided_slice %64 {offsets = [0, 3, 0], sizes = [2, 16, 16], strides = [1, 1, 1]} : vector<2x22x16xf32> to vector<2x16x16xf32>
    %c22 = arith.constant 22 : index
    %81 = memref.load %arg1[%c22] : memref<98xf32, #tpu.memory_space<smem>>
    %82 = vector.broadcast %81 : f32 to vector<2x16x16xf32>
    %83 = arith.mulf %80, %82 : vector<2x16x16xf32>
    %84 = arith.addf %79, %83 : vector<2x16x16xf32>
    %85 = vector.extract_strided_slice %64 {offsets = [0, 4, 0], sizes = [2, 16, 16], strides = [1, 1, 1]} : vector<2x22x16xf32> to vector<2x16x16xf32>
    %c29 = arith.constant 29 : index
    %86 = memref.load %arg1[%c29] : memref<98xf32, #tpu.memory_space<smem>>
    %87 = vector.broadcast %86 : f32 to vector<2x16x16xf32>
    %88 = arith.mulf %85, %87 : vector<2x16x16xf32>
    %89 = arith.addf %84, %88 : vector<2x16x16xf32>
    %90 = vector.extract_strided_slice %64 {offsets = [0, 5, 0], sizes = [2, 16, 16], strides = [1, 1, 1]} : vector<2x22x16xf32> to vector<2x16x16xf32>
    %c36 = arith.constant 36 : index
    %91 = memref.load %arg1[%c36] : memref<98xf32, #tpu.memory_space<smem>>
    %92 = vector.broadcast %91 : f32 to vector<2x16x16xf32>
    %93 = arith.mulf %90, %92 : vector<2x16x16xf32>
    %94 = arith.addf %89, %93 : vector<2x16x16xf32>
    %95 = vector.extract_strided_slice %64 {offsets = [0, 6, 0], sizes = [2, 16, 16], strides = [1, 1, 1]} : vector<2x22x16xf32> to vector<2x16x16xf32>
    %c43 = arith.constant 43 : index
    %96 = memref.load %arg1[%c43] : memref<98xf32, #tpu.memory_space<smem>>
    %97 = vector.broadcast %96 : f32 to vector<2x16x16xf32>
    %98 = arith.mulf %95, %97 : vector<2x16x16xf32>
    %99 = arith.addf %94, %98 : vector<2x16x16xf32>
    %100 = vector.extract_strided_slice %27 {offsets = [0, 0, 2], sizes = [2, 22, 16], strides = [1, 1, 1]} : vector<2x22x22xf32> to vector<2x22x16xf32>
    %101 = vector.extract_strided_slice %100 {offsets = [0, 0, 0], sizes = [2, 16, 16], strides = [1, 1, 1]} : vector<2x22x16xf32> to vector<2x16x16xf32>
    %c2_24 = arith.constant 2 : index
    %102 = memref.load %arg1[%c2_24] : memref<98xf32, #tpu.memory_space<smem>>
    %103 = vector.broadcast %102 : f32 to vector<2x16x16xf32>
    %104 = arith.mulf %101, %103 : vector<2x16x16xf32>
    %105 = arith.addf %99, %104 : vector<2x16x16xf32>
    %106 = vector.extract_strided_slice %100 {offsets = [0, 1, 0], sizes = [2, 16, 16], strides = [1, 1, 1]} : vector<2x22x16xf32> to vector<2x16x16xf32>
    %c9 = arith.constant 9 : index
    %107 = memref.load %arg1[%c9] : memref<98xf32, #tpu.memory_space<smem>>
    %108 = vector.broadcast %107 : f32 to vector<2x16x16xf32>
    %109 = arith.mulf %106, %108 : vector<2x16x16xf32>
    %110 = arith.addf %105, %109 : vector<2x16x16xf32>
    %111 = vector.extract_strided_slice %100 {offsets = [0, 2, 0], sizes = [2, 16, 16], strides = [1, 1, 1]} : vector<2x22x16xf32> to vector<2x16x16xf32>
    %c16 = arith.constant 16 : index
    %112 = memref.load %arg1[%c16] : memref<98xf32, #tpu.memory_space<smem>>
    %113 = vector.broadcast %112 : f32 to vector<2x16x16xf32>
    %114 = arith.mulf %111, %113 : vector<2x16x16xf32>
    %115 = arith.addf %110, %114 : vector<2x16x16xf32>
    %116 = vector.extract_strided_slice %100 {offsets = [0, 3, 0], sizes = [2, 16, 16], strides = [1, 1, 1]} : vector<2x22x16xf32> to vector<2x16x16xf32>
    %c23 = arith.constant 23 : index
    %117 = memref.load %arg1[%c23] : memref<98xf32, #tpu.memory_space<smem>>
    %118 = vector.broadcast %117 : f32 to vector<2x16x16xf32>
    %119 = arith.mulf %116, %118 : vector<2x16x16xf32>
    %120 = arith.addf %115, %119 : vector<2x16x16xf32>
    %121 = vector.extract_strided_slice %100 {offsets = [0, 4, 0], sizes = [2, 16, 16], strides = [1, 1, 1]} : vector<2x22x16xf32> to vector<2x16x16xf32>
    %c30 = arith.constant 30 : index
    %122 = memref.load %arg1[%c30] : memref<98xf32, #tpu.memory_space<smem>>
    %123 = vector.broadcast %122 : f32 to vector<2x16x16xf32>
    %124 = arith.mulf %121, %123 : vector<2x16x16xf32>
    %125 = arith.addf %120, %124 : vector<2x16x16xf32>
    %126 = vector.extract_strided_slice %100 {offsets = [0, 5, 0], sizes = [2, 16, 16], strides = [1, 1, 1]} : vector<2x22x16xf32> to vector<2x16x16xf32>
    %c37 = arith.constant 37 : index
    %127 = memref.load %arg1[%c37] : memref<98xf32, #tpu.memory_space<smem>>
    %128 = vector.broadcast %127 : f32 to vector<2x16x16xf32>
    %129 = arith.mulf %126, %128 : vector<2x16x16xf32>
    %130 = arith.addf %125, %129 : vector<2x16x16xf32>
    %131 = vector.extract_strided_slice %100 {offsets = [0, 6, 0], sizes = [2, 16, 16], strides = [1, 1, 1]} : vector<2x22x16xf32> to vector<2x16x16xf32>
    %c44 = arith.constant 44 : index
    %132 = memref.load %arg1[%c44] : memref<98xf32, #tpu.memory_space<smem>>
    %133 = vector.broadcast %132 : f32 to vector<2x16x16xf32>
    %134 = arith.mulf %131, %133 : vector<2x16x16xf32>
    %135 = arith.addf %130, %134 : vector<2x16x16xf32>
    %136 = vector.extract_strided_slice %27 {offsets = [0, 0, 3], sizes = [2, 22, 16], strides = [1, 1, 1]} : vector<2x22x22xf32> to vector<2x22x16xf32>
    %137 = vector.extract_strided_slice %136 {offsets = [0, 0, 0], sizes = [2, 16, 16], strides = [1, 1, 1]} : vector<2x22x16xf32> to vector<2x16x16xf32>
    %c3_25 = arith.constant 3 : index
    %138 = memref.load %arg1[%c3_25] : memref<98xf32, #tpu.memory_space<smem>>
    %139 = vector.broadcast %138 : f32 to vector<2x16x16xf32>
    %140 = arith.mulf %137, %139 : vector<2x16x16xf32>
    %141 = arith.addf %135, %140 : vector<2x16x16xf32>
    %142 = vector.extract_strided_slice %136 {offsets = [0, 1, 0], sizes = [2, 16, 16], strides = [1, 1, 1]} : vector<2x22x16xf32> to vector<2x16x16xf32>
    %c10 = arith.constant 10 : index
    %143 = memref.load %arg1[%c10] : memref<98xf32, #tpu.memory_space<smem>>
    %144 = vector.broadcast %143 : f32 to vector<2x16x16xf32>
    %145 = arith.mulf %142, %144 : vector<2x16x16xf32>
    %146 = arith.addf %141, %145 : vector<2x16x16xf32>
    %147 = vector.extract_strided_slice %136 {offsets = [0, 2, 0], sizes = [2, 16, 16], strides = [1, 1, 1]} : vector<2x22x16xf32> to vector<2x16x16xf32>
    %c17 = arith.constant 17 : index
    %148 = memref.load %arg1[%c17] : memref<98xf32, #tpu.memory_space<smem>>
    %149 = vector.broadcast %148 : f32 to vector<2x16x16xf32>
    %150 = arith.mulf %147, %149 : vector<2x16x16xf32>
    %151 = arith.addf %146, %150 : vector<2x16x16xf32>
    %152 = vector.extract_strided_slice %136 {offsets = [0, 3, 0], sizes = [2, 16, 16], strides = [1, 1, 1]} : vector<2x22x16xf32> to vector<2x16x16xf32>
    %c24 = arith.constant 24 : index
    %153 = memref.load %arg1[%c24] : memref<98xf32, #tpu.memory_space<smem>>
    %154 = vector.broadcast %153 : f32 to vector<2x16x16xf32>
    %155 = arith.mulf %152, %154 : vector<2x16x16xf32>
    %156 = arith.addf %151, %155 : vector<2x16x16xf32>
    %157 = vector.extract_strided_slice %136 {offsets = [0, 4, 0], sizes = [2, 16, 16], strides = [1, 1, 1]} : vector<2x22x16xf32> to vector<2x16x16xf32>
    %c31 = arith.constant 31 : index
    %158 = memref.load %arg1[%c31] : memref<98xf32, #tpu.memory_space<smem>>
    %159 = vector.broadcast %158 : f32 to vector<2x16x16xf32>
    %160 = arith.mulf %157, %159 : vector<2x16x16xf32>
    %161 = arith.addf %156, %160 : vector<2x16x16xf32>
    %162 = vector.extract_strided_slice %136 {offsets = [0, 5, 0], sizes = [2, 16, 16], strides = [1, 1, 1]} : vector<2x22x16xf32> to vector<2x16x16xf32>
    %c38 = arith.constant 38 : index
    %163 = memref.load %arg1[%c38] : memref<98xf32, #tpu.memory_space<smem>>
    %164 = vector.broadcast %163 : f32 to vector<2x16x16xf32>
    %165 = arith.mulf %162, %164 : vector<2x16x16xf32>
    %166 = arith.addf %161, %165 : vector<2x16x16xf32>
    %167 = vector.extract_strided_slice %136 {offsets = [0, 6, 0], sizes = [2, 16, 16], strides = [1, 1, 1]} : vector<2x22x16xf32> to vector<2x16x16xf32>
    %c45 = arith.constant 45 : index
    %168 = memref.load %arg1[%c45] : memref<98xf32, #tpu.memory_space<smem>>
    %169 = vector.broadcast %168 : f32 to vector<2x16x16xf32>
    %170 = arith.mulf %167, %169 : vector<2x16x16xf32>
    %171 = arith.addf %166, %170 : vector<2x16x16xf32>
    %172 = vector.extract_strided_slice %27 {offsets = [0, 0, 4], sizes = [2, 22, 16], strides = [1, 1, 1]} : vector<2x22x22xf32> to vector<2x22x16xf32>
    %173 = vector.extract_strided_slice %172 {offsets = [0, 0, 0], sizes = [2, 16, 16], strides = [1, 1, 1]} : vector<2x22x16xf32> to vector<2x16x16xf32>
    %c4 = arith.constant 4 : index
    %174 = memref.load %arg1[%c4] : memref<98xf32, #tpu.memory_space<smem>>
    %175 = vector.broadcast %174 : f32 to vector<2x16x16xf32>
    %176 = arith.mulf %173, %175 : vector<2x16x16xf32>
    %177 = arith.addf %171, %176 : vector<2x16x16xf32>
    %178 = vector.extract_strided_slice %172 {offsets = [0, 1, 0], sizes = [2, 16, 16], strides = [1, 1, 1]} : vector<2x22x16xf32> to vector<2x16x16xf32>
    %c11 = arith.constant 11 : index
    %179 = memref.load %arg1[%c11] : memref<98xf32, #tpu.memory_space<smem>>
    %180 = vector.broadcast %179 : f32 to vector<2x16x16xf32>
    %181 = arith.mulf %178, %180 : vector<2x16x16xf32>
    %182 = arith.addf %177, %181 : vector<2x16x16xf32>
    %183 = vector.extract_strided_slice %172 {offsets = [0, 2, 0], sizes = [2, 16, 16], strides = [1, 1, 1]} : vector<2x22x16xf32> to vector<2x16x16xf32>
    %c18 = arith.constant 18 : index
    %184 = memref.load %arg1[%c18] : memref<98xf32, #tpu.memory_space<smem>>
    %185 = vector.broadcast %184 : f32 to vector<2x16x16xf32>
    %186 = arith.mulf %183, %185 : vector<2x16x16xf32>
    %187 = arith.addf %182, %186 : vector<2x16x16xf32>
    %188 = vector.extract_strided_slice %172 {offsets = [0, 3, 0], sizes = [2, 16, 16], strides = [1, 1, 1]} : vector<2x22x16xf32> to vector<2x16x16xf32>
    %c25 = arith.constant 25 : index
    %189 = memref.load %arg1[%c25] : memref<98xf32, #tpu.memory_space<smem>>
    %190 = vector.broadcast %189 : f32 to vector<2x16x16xf32>
    %191 = arith.mulf %188, %190 : vector<2x16x16xf32>
    %192 = arith.addf %187, %191 : vector<2x16x16xf32>
    %193 = vector.extract_strided_slice %172 {offsets = [0, 4, 0], sizes = [2, 16, 16], strides = [1, 1, 1]} : vector<2x22x16xf32> to vector<2x16x16xf32>
    %c32 = arith.constant 32 : index
    %194 = memref.load %arg1[%c32] : memref<98xf32, #tpu.memory_space<smem>>
    %195 = vector.broadcast %194 : f32 to vector<2x16x16xf32>
    %196 = arith.mulf %193, %195 : vector<2x16x16xf32>
    %197 = arith.addf %192, %196 : vector<2x16x16xf32>
    %198 = vector.extract_strided_slice %172 {offsets = [0, 5, 0], sizes = [2, 16, 16], strides = [1, 1, 1]} : vector<2x22x16xf32> to vector<2x16x16xf32>
    %c39 = arith.constant 39 : index
    %199 = memref.load %arg1[%c39] : memref<98xf32, #tpu.memory_space<smem>>
    %200 = vector.broadcast %199 : f32 to vector<2x16x16xf32>
    %201 = arith.mulf %198, %200 : vector<2x16x16xf32>
    %202 = arith.addf %197, %201 : vector<2x16x16xf32>
    %203 = vector.extract_strided_slice %172 {offsets = [0, 6, 0], sizes = [2, 16, 16], strides = [1, 1, 1]} : vector<2x22x16xf32> to vector<2x16x16xf32>
    %c46 = arith.constant 46 : index
    %204 = memref.load %arg1[%c46] : memref<98xf32, #tpu.memory_space<smem>>
    %205 = vector.broadcast %204 : f32 to vector<2x16x16xf32>
    %206 = arith.mulf %203, %205 : vector<2x16x16xf32>
    %207 = arith.addf %202, %206 : vector<2x16x16xf32>
    %208 = vector.extract_strided_slice %27 {offsets = [0, 0, 5], sizes = [2, 22, 16], strides = [1, 1, 1]} : vector<2x22x22xf32> to vector<2x22x16xf32>
    %209 = vector.extract_strided_slice %208 {offsets = [0, 0, 0], sizes = [2, 16, 16], strides = [1, 1, 1]} : vector<2x22x16xf32> to vector<2x16x16xf32>
    %c5 = arith.constant 5 : index
    %210 = memref.load %arg1[%c5] : memref<98xf32, #tpu.memory_space<smem>>
    %211 = vector.broadcast %210 : f32 to vector<2x16x16xf32>
    %212 = arith.mulf %209, %211 : vector<2x16x16xf32>
    %213 = arith.addf %207, %212 : vector<2x16x16xf32>
    %214 = vector.extract_strided_slice %208 {offsets = [0, 1, 0], sizes = [2, 16, 16], strides = [1, 1, 1]} : vector<2x22x16xf32> to vector<2x16x16xf32>
    %c12 = arith.constant 12 : index
    %215 = memref.load %arg1[%c12] : memref<98xf32, #tpu.memory_space<smem>>
    %216 = vector.broadcast %215 : f32 to vector<2x16x16xf32>
    %217 = arith.mulf %214, %216 : vector<2x16x16xf32>
    %218 = arith.addf %213, %217 : vector<2x16x16xf32>
    %219 = vector.extract_strided_slice %208 {offsets = [0, 2, 0], sizes = [2, 16, 16], strides = [1, 1, 1]} : vector<2x22x16xf32> to vector<2x16x16xf32>
    %c19_26 = arith.constant 19 : index
    %220 = memref.load %arg1[%c19_26] : memref<98xf32, #tpu.memory_space<smem>>
    %221 = vector.broadcast %220 : f32 to vector<2x16x16xf32>
    %222 = arith.mulf %219, %221 : vector<2x16x16xf32>
    %223 = arith.addf %218, %222 : vector<2x16x16xf32>
    %224 = vector.extract_strided_slice %208 {offsets = [0, 3, 0], sizes = [2, 16, 16], strides = [1, 1, 1]} : vector<2x22x16xf32> to vector<2x16x16xf32>
    %c26 = arith.constant 26 : index
    %225 = memref.load %arg1[%c26] : memref<98xf32, #tpu.memory_space<smem>>
    %226 = vector.broadcast %225 : f32 to vector<2x16x16xf32>
    %227 = arith.mulf %224, %226 : vector<2x16x16xf32>
    %228 = arith.addf %223, %227 : vector<2x16x16xf32>
    %229 = vector.extract_strided_slice %208 {offsets = [0, 4, 0], sizes = [2, 16, 16], strides = [1, 1, 1]} : vector<2x22x16xf32> to vector<2x16x16xf32>
    %c33 = arith.constant 33 : index
    %230 = memref.load %arg1[%c33] : memref<98xf32, #tpu.memory_space<smem>>
    %231 = vector.broadcast %230 : f32 to vector<2x16x16xf32>
    %232 = arith.mulf %229, %231 : vector<2x16x16xf32>
    %233 = arith.addf %228, %232 : vector<2x16x16xf32>
    %234 = vector.extract_strided_slice %208 {offsets = [0, 5, 0], sizes = [2, 16, 16], strides = [1, 1, 1]} : vector<2x22x16xf32> to vector<2x16x16xf32>
    %c40 = arith.constant 40 : index
    %235 = memref.load %arg1[%c40] : memref<98xf32, #tpu.memory_space<smem>>
    %236 = vector.broadcast %235 : f32 to vector<2x16x16xf32>
    %237 = arith.mulf %234, %236 : vector<2x16x16xf32>
    %238 = arith.addf %233, %237 : vector<2x16x16xf32>
    %239 = vector.extract_strided_slice %208 {offsets = [0, 6, 0], sizes = [2, 16, 16], strides = [1, 1, 1]} : vector<2x22x16xf32> to vector<2x16x16xf32>
    %c47 = arith.constant 47 : index
    %240 = memref.load %arg1[%c47] : memref<98xf32, #tpu.memory_space<smem>>
    %241 = vector.broadcast %240 : f32 to vector<2x16x16xf32>
    %242 = arith.mulf %239, %241 : vector<2x16x16xf32>
    %243 = arith.addf %238, %242 : vector<2x16x16xf32>
    %244 = vector.extract_strided_slice %27 {offsets = [0, 0, 6], sizes = [2, 22, 16], strides = [1, 1, 1]} : vector<2x22x22xf32> to vector<2x22x16xf32>
    %245 = vector.extract_strided_slice %244 {offsets = [0, 0, 0], sizes = [2, 16, 16], strides = [1, 1, 1]} : vector<2x22x16xf32> to vector<2x16x16xf32>
    %c6 = arith.constant 6 : index
    %246 = memref.load %arg1[%c6] : memref<98xf32, #tpu.memory_space<smem>>
    %247 = vector.broadcast %246 : f32 to vector<2x16x16xf32>
    %248 = arith.mulf %245, %247 : vector<2x16x16xf32>
    %249 = arith.addf %243, %248 : vector<2x16x16xf32>
    %250 = vector.extract_strided_slice %244 {offsets = [0, 1, 0], sizes = [2, 16, 16], strides = [1, 1, 1]} : vector<2x22x16xf32> to vector<2x16x16xf32>
    %c13 = arith.constant 13 : index
    %251 = memref.load %arg1[%c13] : memref<98xf32, #tpu.memory_space<smem>>
    %252 = vector.broadcast %251 : f32 to vector<2x16x16xf32>
    %253 = arith.mulf %250, %252 : vector<2x16x16xf32>
    %254 = arith.addf %249, %253 : vector<2x16x16xf32>
    %255 = vector.extract_strided_slice %244 {offsets = [0, 2, 0], sizes = [2, 16, 16], strides = [1, 1, 1]} : vector<2x22x16xf32> to vector<2x16x16xf32>
    %c20 = arith.constant 20 : index
    %256 = memref.load %arg1[%c20] : memref<98xf32, #tpu.memory_space<smem>>
    %257 = vector.broadcast %256 : f32 to vector<2x16x16xf32>
    %258 = arith.mulf %255, %257 : vector<2x16x16xf32>
    %259 = arith.addf %254, %258 : vector<2x16x16xf32>
    %260 = vector.extract_strided_slice %244 {offsets = [0, 3, 0], sizes = [2, 16, 16], strides = [1, 1, 1]} : vector<2x22x16xf32> to vector<2x16x16xf32>
    %c27 = arith.constant 27 : index
    %261 = memref.load %arg1[%c27] : memref<98xf32, #tpu.memory_space<smem>>
    %262 = vector.broadcast %261 : f32 to vector<2x16x16xf32>
    %263 = arith.mulf %260, %262 : vector<2x16x16xf32>
    %264 = arith.addf %259, %263 : vector<2x16x16xf32>
    %265 = vector.extract_strided_slice %244 {offsets = [0, 4, 0], sizes = [2, 16, 16], strides = [1, 1, 1]} : vector<2x22x16xf32> to vector<2x16x16xf32>
    %c34 = arith.constant 34 : index
    %266 = memref.load %arg1[%c34] : memref<98xf32, #tpu.memory_space<smem>>
    %267 = vector.broadcast %266 : f32 to vector<2x16x16xf32>
    %268 = arith.mulf %265, %267 : vector<2x16x16xf32>
    %269 = arith.addf %264, %268 : vector<2x16x16xf32>
    %270 = vector.extract_strided_slice %244 {offsets = [0, 5, 0], sizes = [2, 16, 16], strides = [1, 1, 1]} : vector<2x22x16xf32> to vector<2x16x16xf32>
    %c41 = arith.constant 41 : index
    %271 = memref.load %arg1[%c41] : memref<98xf32, #tpu.memory_space<smem>>
    %272 = vector.broadcast %271 : f32 to vector<2x16x16xf32>
    %273 = arith.mulf %270, %272 : vector<2x16x16xf32>
    %274 = arith.addf %269, %273 : vector<2x16x16xf32>
    %275 = vector.extract_strided_slice %244 {offsets = [0, 6, 0], sizes = [2, 16, 16], strides = [1, 1, 1]} : vector<2x22x16xf32> to vector<2x16x16xf32>
    %c48 = arith.constant 48 : index
    %276 = memref.load %arg1[%c48] : memref<98xf32, #tpu.memory_space<smem>>
    %277 = vector.broadcast %276 : f32 to vector<2x16x16xf32>
    %278 = arith.mulf %275, %277 : vector<2x16x16xf32>
    %279 = arith.addf %274, %278 : vector<2x16x16xf32>
    %c2_27 = arith.constant 2 : index
    %c0_28 = arith.constant 0 : index
    %c0_29 = arith.constant 0 : index
    %280 = vector.load %arg5[%c2_27, %c0_28, %c0_29] : memref<4x22x22xf32, #tpu.memory_space<vmem>>, vector<2x22x22xf32>
    %281 = vector.extract_strided_slice %280 {offsets = [0, 0, 0], sizes = [2, 22, 16], strides = [1, 1, 1]} : vector<2x22x22xf32> to vector<2x22x16xf32>
    %282 = vector.extract_strided_slice %281 {offsets = [0, 0, 0], sizes = [2, 16, 16], strides = [1, 1, 1]} : vector<2x22x16xf32> to vector<2x16x16xf32>
    %c49 = arith.constant 49 : index
    %283 = memref.load %arg1[%c49] : memref<98xf32, #tpu.memory_space<smem>>
    %284 = vector.broadcast %283 : f32 to vector<2x16x16xf32>
    %285 = arith.mulf %282, %284 : vector<2x16x16xf32>
    %286 = arith.addf %279, %285 : vector<2x16x16xf32>
    %287 = vector.extract_strided_slice %281 {offsets = [0, 1, 0], sizes = [2, 16, 16], strides = [1, 1, 1]} : vector<2x22x16xf32> to vector<2x16x16xf32>
    %c56 = arith.constant 56 : index
    %288 = memref.load %arg1[%c56] : memref<98xf32, #tpu.memory_space<smem>>
    %289 = vector.broadcast %288 : f32 to vector<2x16x16xf32>
    %290 = arith.mulf %287, %289 : vector<2x16x16xf32>
    %291 = arith.addf %286, %290 : vector<2x16x16xf32>
    %292 = vector.extract_strided_slice %281 {offsets = [0, 2, 0], sizes = [2, 16, 16], strides = [1, 1, 1]} : vector<2x22x16xf32> to vector<2x16x16xf32>
    %c63 = arith.constant 63 : index
    %293 = memref.load %arg1[%c63] : memref<98xf32, #tpu.memory_space<smem>>
    %294 = vector.broadcast %293 : f32 to vector<2x16x16xf32>
    %295 = arith.mulf %292, %294 : vector<2x16x16xf32>
    %296 = arith.addf %291, %295 : vector<2x16x16xf32>
    %297 = vector.extract_strided_slice %281 {offsets = [0, 3, 0], sizes = [2, 16, 16], strides = [1, 1, 1]} : vector<2x22x16xf32> to vector<2x16x16xf32>
    %c70 = arith.constant 70 : index
    %298 = memref.load %arg1[%c70] : memref<98xf32, #tpu.memory_space<smem>>
    %299 = vector.broadcast %298 : f32 to vector<2x16x16xf32>
    %300 = arith.mulf %297, %299 : vector<2x16x16xf32>
    %301 = arith.addf %296, %300 : vector<2x16x16xf32>
    %302 = vector.extract_strided_slice %281 {offsets = [0, 4, 0], sizes = [2, 16, 16], strides = [1, 1, 1]} : vector<2x22x16xf32> to vector<2x16x16xf32>
    %c77 = arith.constant 77 : index
    %303 = memref.load %arg1[%c77] : memref<98xf32, #tpu.memory_space<smem>>
    %304 = vector.broadcast %303 : f32 to vector<2x16x16xf32>
    %305 = arith.mulf %302, %304 : vector<2x16x16xf32>
    %306 = arith.addf %301, %305 : vector<2x16x16xf32>
    %307 = vector.extract_strided_slice %281 {offsets = [0, 5, 0], sizes = [2, 16, 16], strides = [1, 1, 1]} : vector<2x22x16xf32> to vector<2x16x16xf32>
    %c84 = arith.constant 84 : index
    %308 = memref.load %arg1[%c84] : memref<98xf32, #tpu.memory_space<smem>>
    %309 = vector.broadcast %308 : f32 to vector<2x16x16xf32>
    %310 = arith.mulf %307, %309 : vector<2x16x16xf32>
    %311 = arith.addf %306, %310 : vector<2x16x16xf32>
    %312 = vector.extract_strided_slice %281 {offsets = [0, 6, 0], sizes = [2, 16, 16], strides = [1, 1, 1]} : vector<2x22x16xf32> to vector<2x16x16xf32>
    %c91 = arith.constant 91 : index
    %313 = memref.load %arg1[%c91] : memref<98xf32, #tpu.memory_space<smem>>
    %314 = vector.broadcast %313 : f32 to vector<2x16x16xf32>
    %315 = arith.mulf %312, %314 : vector<2x16x16xf32>
    %316 = arith.addf %311, %315 : vector<2x16x16xf32>
    %317 = vector.extract_strided_slice %280 {offsets = [0, 0, 1], sizes = [2, 22, 16], strides = [1, 1, 1]} : vector<2x22x22xf32> to vector<2x22x16xf32>
    %318 = vector.extract_strided_slice %317 {offsets = [0, 0, 0], sizes = [2, 16, 16], strides = [1, 1, 1]} : vector<2x22x16xf32> to vector<2x16x16xf32>
    %c50 = arith.constant 50 : index
    %319 = memref.load %arg1[%c50] : memref<98xf32, #tpu.memory_space<smem>>
    %320 = vector.broadcast %319 : f32 to vector<2x16x16xf32>
    %321 = arith.mulf %318, %320 : vector<2x16x16xf32>
    %322 = arith.addf %316, %321 : vector<2x16x16xf32>
    %323 = vector.extract_strided_slice %317 {offsets = [0, 1, 0], sizes = [2, 16, 16], strides = [1, 1, 1]} : vector<2x22x16xf32> to vector<2x16x16xf32>
    %c57 = arith.constant 57 : index
    %324 = memref.load %arg1[%c57] : memref<98xf32, #tpu.memory_space<smem>>
    %325 = vector.broadcast %324 : f32 to vector<2x16x16xf32>
    %326 = arith.mulf %323, %325 : vector<2x16x16xf32>
    %327 = arith.addf %322, %326 : vector<2x16x16xf32>
    %328 = vector.extract_strided_slice %317 {offsets = [0, 2, 0], sizes = [2, 16, 16], strides = [1, 1, 1]} : vector<2x22x16xf32> to vector<2x16x16xf32>
    %c64 = arith.constant 64 : index
    %329 = memref.load %arg1[%c64] : memref<98xf32, #tpu.memory_space<smem>>
    %330 = vector.broadcast %329 : f32 to vector<2x16x16xf32>
    %331 = arith.mulf %328, %330 : vector<2x16x16xf32>
    %332 = arith.addf %327, %331 : vector<2x16x16xf32>
    %333 = vector.extract_strided_slice %317 {offsets = [0, 3, 0], sizes = [2, 16, 16], strides = [1, 1, 1]} : vector<2x22x16xf32> to vector<2x16x16xf32>
    %c71 = arith.constant 71 : index
    %334 = memref.load %arg1[%c71] : memref<98xf32, #tpu.memory_space<smem>>
    %335 = vector.broadcast %334 : f32 to vector<2x16x16xf32>
    %336 = arith.mulf %333, %335 : vector<2x16x16xf32>
    %337 = arith.addf %332, %336 : vector<2x16x16xf32>
    %338 = vector.extract_strided_slice %317 {offsets = [0, 4, 0], sizes = [2, 16, 16], strides = [1, 1, 1]} : vector<2x22x16xf32> to vector<2x16x16xf32>
    %c78 = arith.constant 78 : index
    %339 = memref.load %arg1[%c78] : memref<98xf32, #tpu.memory_space<smem>>
    %340 = vector.broadcast %339 : f32 to vector<2x16x16xf32>
    %341 = arith.mulf %338, %340 : vector<2x16x16xf32>
    %342 = arith.addf %337, %341 : vector<2x16x16xf32>
    %343 = vector.extract_strided_slice %317 {offsets = [0, 5, 0], sizes = [2, 16, 16], strides = [1, 1, 1]} : vector<2x22x16xf32> to vector<2x16x16xf32>
    %c85 = arith.constant 85 : index
    %344 = memref.load %arg1[%c85] : memref<98xf32, #tpu.memory_space<smem>>
    %345 = vector.broadcast %344 : f32 to vector<2x16x16xf32>
    %346 = arith.mulf %343, %345 : vector<2x16x16xf32>
    %347 = arith.addf %342, %346 : vector<2x16x16xf32>
    %348 = vector.extract_strided_slice %317 {offsets = [0, 6, 0], sizes = [2, 16, 16], strides = [1, 1, 1]} : vector<2x22x16xf32> to vector<2x16x16xf32>
    %c92 = arith.constant 92 : index
    %349 = memref.load %arg1[%c92] : memref<98xf32, #tpu.memory_space<smem>>
    %350 = vector.broadcast %349 : f32 to vector<2x16x16xf32>
    %351 = arith.mulf %348, %350 : vector<2x16x16xf32>
    %352 = arith.addf %347, %351 : vector<2x16x16xf32>
    %353 = vector.extract_strided_slice %280 {offsets = [0, 0, 2], sizes = [2, 22, 16], strides = [1, 1, 1]} : vector<2x22x22xf32> to vector<2x22x16xf32>
    %354 = vector.extract_strided_slice %353 {offsets = [0, 0, 0], sizes = [2, 16, 16], strides = [1, 1, 1]} : vector<2x22x16xf32> to vector<2x16x16xf32>
    %c51 = arith.constant 51 : index
    %355 = memref.load %arg1[%c51] : memref<98xf32, #tpu.memory_space<smem>>
    %356 = vector.broadcast %355 : f32 to vector<2x16x16xf32>
    %357 = arith.mulf %354, %356 : vector<2x16x16xf32>
    %358 = arith.addf %352, %357 : vector<2x16x16xf32>
    %359 = vector.extract_strided_slice %353 {offsets = [0, 1, 0], sizes = [2, 16, 16], strides = [1, 1, 1]} : vector<2x22x16xf32> to vector<2x16x16xf32>
    %c58 = arith.constant 58 : index
    %360 = memref.load %arg1[%c58] : memref<98xf32, #tpu.memory_space<smem>>
    %361 = vector.broadcast %360 : f32 to vector<2x16x16xf32>
    %362 = arith.mulf %359, %361 : vector<2x16x16xf32>
    %363 = arith.addf %358, %362 : vector<2x16x16xf32>
    %364 = vector.extract_strided_slice %353 {offsets = [0, 2, 0], sizes = [2, 16, 16], strides = [1, 1, 1]} : vector<2x22x16xf32> to vector<2x16x16xf32>
    %c65 = arith.constant 65 : index
    %365 = memref.load %arg1[%c65] : memref<98xf32, #tpu.memory_space<smem>>
    %366 = vector.broadcast %365 : f32 to vector<2x16x16xf32>
    %367 = arith.mulf %364, %366 : vector<2x16x16xf32>
    %368 = arith.addf %363, %367 : vector<2x16x16xf32>
    %369 = vector.extract_strided_slice %353 {offsets = [0, 3, 0], sizes = [2, 16, 16], strides = [1, 1, 1]} : vector<2x22x16xf32> to vector<2x16x16xf32>
    %c72 = arith.constant 72 : index
    %370 = memref.load %arg1[%c72] : memref<98xf32, #tpu.memory_space<smem>>
    %371 = vector.broadcast %370 : f32 to vector<2x16x16xf32>
    %372 = arith.mulf %369, %371 : vector<2x16x16xf32>
    %373 = arith.addf %368, %372 : vector<2x16x16xf32>
    %374 = vector.extract_strided_slice %353 {offsets = [0, 4, 0], sizes = [2, 16, 16], strides = [1, 1, 1]} : vector<2x22x16xf32> to vector<2x16x16xf32>
    %c79 = arith.constant 79 : index
    %375 = memref.load %arg1[%c79] : memref<98xf32, #tpu.memory_space<smem>>
    %376 = vector.broadcast %375 : f32 to vector<2x16x16xf32>
    %377 = arith.mulf %374, %376 : vector<2x16x16xf32>
    %378 = arith.addf %373, %377 : vector<2x16x16xf32>
    %379 = vector.extract_strided_slice %353 {offsets = [0, 5, 0], sizes = [2, 16, 16], strides = [1, 1, 1]} : vector<2x22x16xf32> to vector<2x16x16xf32>
    %c86 = arith.constant 86 : index
    %380 = memref.load %arg1[%c86] : memref<98xf32, #tpu.memory_space<smem>>
    %381 = vector.broadcast %380 : f32 to vector<2x16x16xf32>
    %382 = arith.mulf %379, %381 : vector<2x16x16xf32>
    %383 = arith.addf %378, %382 : vector<2x16x16xf32>
    %384 = vector.extract_strided_slice %353 {offsets = [0, 6, 0], sizes = [2, 16, 16], strides = [1, 1, 1]} : vector<2x22x16xf32> to vector<2x16x16xf32>
    %c93 = arith.constant 93 : index
    %385 = memref.load %arg1[%c93] : memref<98xf32, #tpu.memory_space<smem>>
    %386 = vector.broadcast %385 : f32 to vector<2x16x16xf32>
    %387 = arith.mulf %384, %386 : vector<2x16x16xf32>
    %388 = arith.addf %383, %387 : vector<2x16x16xf32>
    %389 = vector.extract_strided_slice %280 {offsets = [0, 0, 3], sizes = [2, 22, 16], strides = [1, 1, 1]} : vector<2x22x22xf32> to vector<2x22x16xf32>
    %390 = vector.extract_strided_slice %389 {offsets = [0, 0, 0], sizes = [2, 16, 16], strides = [1, 1, 1]} : vector<2x22x16xf32> to vector<2x16x16xf32>
    %c52 = arith.constant 52 : index
    %391 = memref.load %arg1[%c52] : memref<98xf32, #tpu.memory_space<smem>>
    %392 = vector.broadcast %391 : f32 to vector<2x16x16xf32>
    %393 = arith.mulf %390, %392 : vector<2x16x16xf32>
    %394 = arith.addf %388, %393 : vector<2x16x16xf32>
    %395 = vector.extract_strided_slice %389 {offsets = [0, 1, 0], sizes = [2, 16, 16], strides = [1, 1, 1]} : vector<2x22x16xf32> to vector<2x16x16xf32>
    %c59 = arith.constant 59 : index
    %396 = memref.load %arg1[%c59] : memref<98xf32, #tpu.memory_space<smem>>
    %397 = vector.broadcast %396 : f32 to vector<2x16x16xf32>
    %398 = arith.mulf %395, %397 : vector<2x16x16xf32>
    %399 = arith.addf %394, %398 : vector<2x16x16xf32>
    %400 = vector.extract_strided_slice %389 {offsets = [0, 2, 0], sizes = [2, 16, 16], strides = [1, 1, 1]} : vector<2x22x16xf32> to vector<2x16x16xf32>
    %c66 = arith.constant 66 : index
    %401 = memref.load %arg1[%c66] : memref<98xf32, #tpu.memory_space<smem>>
    %402 = vector.broadcast %401 : f32 to vector<2x16x16xf32>
    %403 = arith.mulf %400, %402 : vector<2x16x16xf32>
    %404 = arith.addf %399, %403 : vector<2x16x16xf32>
    %405 = vector.extract_strided_slice %389 {offsets = [0, 3, 0], sizes = [2, 16, 16], strides = [1, 1, 1]} : vector<2x22x16xf32> to vector<2x16x16xf32>
    %c73 = arith.constant 73 : index
    %406 = memref.load %arg1[%c73] : memref<98xf32, #tpu.memory_space<smem>>
    %407 = vector.broadcast %406 : f32 to vector<2x16x16xf32>
    %408 = arith.mulf %405, %407 : vector<2x16x16xf32>
    %409 = arith.addf %404, %408 : vector<2x16x16xf32>
    %410 = vector.extract_strided_slice %389 {offsets = [0, 4, 0], sizes = [2, 16, 16], strides = [1, 1, 1]} : vector<2x22x16xf32> to vector<2x16x16xf32>
    %c80 = arith.constant 80 : index
    %411 = memref.load %arg1[%c80] : memref<98xf32, #tpu.memory_space<smem>>
    %412 = vector.broadcast %411 : f32 to vector<2x16x16xf32>
    %413 = arith.mulf %410, %412 : vector<2x16x16xf32>
    %414 = arith.addf %409, %413 : vector<2x16x16xf32>
    %415 = vector.extract_strided_slice %389 {offsets = [0, 5, 0], sizes = [2, 16, 16], strides = [1, 1, 1]} : vector<2x22x16xf32> to vector<2x16x16xf32>
    %c87 = arith.constant 87 : index
    %416 = memref.load %arg1[%c87] : memref<98xf32, #tpu.memory_space<smem>>
    %417 = vector.broadcast %416 : f32 to vector<2x16x16xf32>
    %418 = arith.mulf %415, %417 : vector<2x16x16xf32>
    %419 = arith.addf %414, %418 : vector<2x16x16xf32>
    %420 = vector.extract_strided_slice %389 {offsets = [0, 6, 0], sizes = [2, 16, 16], strides = [1, 1, 1]} : vector<2x22x16xf32> to vector<2x16x16xf32>
    %c94 = arith.constant 94 : index
    %421 = memref.load %arg1[%c94] : memref<98xf32, #tpu.memory_space<smem>>
    %422 = vector.broadcast %421 : f32 to vector<2x16x16xf32>
    %423 = arith.mulf %420, %422 : vector<2x16x16xf32>
    %424 = arith.addf %419, %423 : vector<2x16x16xf32>
    %425 = vector.extract_strided_slice %280 {offsets = [0, 0, 4], sizes = [2, 22, 16], strides = [1, 1, 1]} : vector<2x22x22xf32> to vector<2x22x16xf32>
    %426 = vector.extract_strided_slice %425 {offsets = [0, 0, 0], sizes = [2, 16, 16], strides = [1, 1, 1]} : vector<2x22x16xf32> to vector<2x16x16xf32>
    %c53 = arith.constant 53 : index
    %427 = memref.load %arg1[%c53] : memref<98xf32, #tpu.memory_space<smem>>
    %428 = vector.broadcast %427 : f32 to vector<2x16x16xf32>
    %429 = arith.mulf %426, %428 : vector<2x16x16xf32>
    %430 = arith.addf %424, %429 : vector<2x16x16xf32>
    %431 = vector.extract_strided_slice %425 {offsets = [0, 1, 0], sizes = [2, 16, 16], strides = [1, 1, 1]} : vector<2x22x16xf32> to vector<2x16x16xf32>
    %c60 = arith.constant 60 : index
    %432 = memref.load %arg1[%c60] : memref<98xf32, #tpu.memory_space<smem>>
    %433 = vector.broadcast %432 : f32 to vector<2x16x16xf32>
    %434 = arith.mulf %431, %433 : vector<2x16x16xf32>
    %435 = arith.addf %430, %434 : vector<2x16x16xf32>
    %436 = vector.extract_strided_slice %425 {offsets = [0, 2, 0], sizes = [2, 16, 16], strides = [1, 1, 1]} : vector<2x22x16xf32> to vector<2x16x16xf32>
    %c67 = arith.constant 67 : index
    %437 = memref.load %arg1[%c67] : memref<98xf32, #tpu.memory_space<smem>>
    %438 = vector.broadcast %437 : f32 to vector<2x16x16xf32>
    %439 = arith.mulf %436, %438 : vector<2x16x16xf32>
    %440 = arith.addf %435, %439 : vector<2x16x16xf32>
    %441 = vector.extract_strided_slice %425 {offsets = [0, 3, 0], sizes = [2, 16, 16], strides = [1, 1, 1]} : vector<2x22x16xf32> to vector<2x16x16xf32>
    %c74 = arith.constant 74 : index
    %442 = memref.load %arg1[%c74] : memref<98xf32, #tpu.memory_space<smem>>
    %443 = vector.broadcast %442 : f32 to vector<2x16x16xf32>
    %444 = arith.mulf %441, %443 : vector<2x16x16xf32>
    %445 = arith.addf %440, %444 : vector<2x16x16xf32>
    %446 = vector.extract_strided_slice %425 {offsets = [0, 4, 0], sizes = [2, 16, 16], strides = [1, 1, 1]} : vector<2x22x16xf32> to vector<2x16x16xf32>
    %c81 = arith.constant 81 : index
    %447 = memref.load %arg1[%c81] : memref<98xf32, #tpu.memory_space<smem>>
    %448 = vector.broadcast %447 : f32 to vector<2x16x16xf32>
    %449 = arith.mulf %446, %448 : vector<2x16x16xf32>
    %450 = arith.addf %445, %449 : vector<2x16x16xf32>
    %451 = vector.extract_strided_slice %425 {offsets = [0, 5, 0], sizes = [2, 16, 16], strides = [1, 1, 1]} : vector<2x22x16xf32> to vector<2x16x16xf32>
    %c88 = arith.constant 88 : index
    %452 = memref.load %arg1[%c88] : memref<98xf32, #tpu.memory_space<smem>>
    %453 = vector.broadcast %452 : f32 to vector<2x16x16xf32>
    %454 = arith.mulf %451, %453 : vector<2x16x16xf32>
    %455 = arith.addf %450, %454 : vector<2x16x16xf32>
    %456 = vector.extract_strided_slice %425 {offsets = [0, 6, 0], sizes = [2, 16, 16], strides = [1, 1, 1]} : vector<2x22x16xf32> to vector<2x16x16xf32>
    %c95 = arith.constant 95 : index
    %457 = memref.load %arg1[%c95] : memref<98xf32, #tpu.memory_space<smem>>
    %458 = vector.broadcast %457 : f32 to vector<2x16x16xf32>
    %459 = arith.mulf %456, %458 : vector<2x16x16xf32>
    %460 = arith.addf %455, %459 : vector<2x16x16xf32>
    %461 = vector.extract_strided_slice %280 {offsets = [0, 0, 5], sizes = [2, 22, 16], strides = [1, 1, 1]} : vector<2x22x22xf32> to vector<2x22x16xf32>
    %462 = vector.extract_strided_slice %461 {offsets = [0, 0, 0], sizes = [2, 16, 16], strides = [1, 1, 1]} : vector<2x22x16xf32> to vector<2x16x16xf32>
    %c54 = arith.constant 54 : index
    %463 = memref.load %arg1[%c54] : memref<98xf32, #tpu.memory_space<smem>>
    %464 = vector.broadcast %463 : f32 to vector<2x16x16xf32>
    %465 = arith.mulf %462, %464 : vector<2x16x16xf32>
    %466 = arith.addf %460, %465 : vector<2x16x16xf32>
    %467 = vector.extract_strided_slice %461 {offsets = [0, 1, 0], sizes = [2, 16, 16], strides = [1, 1, 1]} : vector<2x22x16xf32> to vector<2x16x16xf32>
    %c61 = arith.constant 61 : index
    %468 = memref.load %arg1[%c61] : memref<98xf32, #tpu.memory_space<smem>>
    %469 = vector.broadcast %468 : f32 to vector<2x16x16xf32>
    %470 = arith.mulf %467, %469 : vector<2x16x16xf32>
    %471 = arith.addf %466, %470 : vector<2x16x16xf32>
    %472 = vector.extract_strided_slice %461 {offsets = [0, 2, 0], sizes = [2, 16, 16], strides = [1, 1, 1]} : vector<2x22x16xf32> to vector<2x16x16xf32>
    %c68 = arith.constant 68 : index
    %473 = memref.load %arg1[%c68] : memref<98xf32, #tpu.memory_space<smem>>
    %474 = vector.broadcast %473 : f32 to vector<2x16x16xf32>
    %475 = arith.mulf %472, %474 : vector<2x16x16xf32>
    %476 = arith.addf %471, %475 : vector<2x16x16xf32>
    %477 = vector.extract_strided_slice %461 {offsets = [0, 3, 0], sizes = [2, 16, 16], strides = [1, 1, 1]} : vector<2x22x16xf32> to vector<2x16x16xf32>
    %c75 = arith.constant 75 : index
    %478 = memref.load %arg1[%c75] : memref<98xf32, #tpu.memory_space<smem>>
    %479 = vector.broadcast %478 : f32 to vector<2x16x16xf32>
    %480 = arith.mulf %477, %479 : vector<2x16x16xf32>
    %481 = arith.addf %476, %480 : vector<2x16x16xf32>
    %482 = vector.extract_strided_slice %461 {offsets = [0, 4, 0], sizes = [2, 16, 16], strides = [1, 1, 1]} : vector<2x22x16xf32> to vector<2x16x16xf32>
    %c82 = arith.constant 82 : index
    %483 = memref.load %arg1[%c82] : memref<98xf32, #tpu.memory_space<smem>>
    %484 = vector.broadcast %483 : f32 to vector<2x16x16xf32>
    %485 = arith.mulf %482, %484 : vector<2x16x16xf32>
    %486 = arith.addf %481, %485 : vector<2x16x16xf32>
    %487 = vector.extract_strided_slice %461 {offsets = [0, 5, 0], sizes = [2, 16, 16], strides = [1, 1, 1]} : vector<2x22x16xf32> to vector<2x16x16xf32>
    %c89 = arith.constant 89 : index
    %488 = memref.load %arg1[%c89] : memref<98xf32, #tpu.memory_space<smem>>
    %489 = vector.broadcast %488 : f32 to vector<2x16x16xf32>
    %490 = arith.mulf %487, %489 : vector<2x16x16xf32>
    %491 = arith.addf %486, %490 : vector<2x16x16xf32>
    %492 = vector.extract_strided_slice %461 {offsets = [0, 6, 0], sizes = [2, 16, 16], strides = [1, 1, 1]} : vector<2x22x16xf32> to vector<2x16x16xf32>
    %c96 = arith.constant 96 : index
    %493 = memref.load %arg1[%c96] : memref<98xf32, #tpu.memory_space<smem>>
    %494 = vector.broadcast %493 : f32 to vector<2x16x16xf32>
    %495 = arith.mulf %492, %494 : vector<2x16x16xf32>
    %496 = arith.addf %491, %495 : vector<2x16x16xf32>
    %497 = vector.extract_strided_slice %280 {offsets = [0, 0, 6], sizes = [2, 22, 16], strides = [1, 1, 1]} : vector<2x22x22xf32> to vector<2x22x16xf32>
    %498 = vector.extract_strided_slice %497 {offsets = [0, 0, 0], sizes = [2, 16, 16], strides = [1, 1, 1]} : vector<2x22x16xf32> to vector<2x16x16xf32>
    %c55 = arith.constant 55 : index
    %499 = memref.load %arg1[%c55] : memref<98xf32, #tpu.memory_space<smem>>
    %500 = vector.broadcast %499 : f32 to vector<2x16x16xf32>
    %501 = arith.mulf %498, %500 : vector<2x16x16xf32>
    %502 = arith.addf %496, %501 : vector<2x16x16xf32>
    %503 = vector.extract_strided_slice %497 {offsets = [0, 1, 0], sizes = [2, 16, 16], strides = [1, 1, 1]} : vector<2x22x16xf32> to vector<2x16x16xf32>
    %c62 = arith.constant 62 : index
    %504 = memref.load %arg1[%c62] : memref<98xf32, #tpu.memory_space<smem>>
    %505 = vector.broadcast %504 : f32 to vector<2x16x16xf32>
    %506 = arith.mulf %503, %505 : vector<2x16x16xf32>
    %507 = arith.addf %502, %506 : vector<2x16x16xf32>
    %508 = vector.extract_strided_slice %497 {offsets = [0, 2, 0], sizes = [2, 16, 16], strides = [1, 1, 1]} : vector<2x22x16xf32> to vector<2x16x16xf32>
    %c69 = arith.constant 69 : index
    %509 = memref.load %arg1[%c69] : memref<98xf32, #tpu.memory_space<smem>>
    %510 = vector.broadcast %509 : f32 to vector<2x16x16xf32>
    %511 = arith.mulf %508, %510 : vector<2x16x16xf32>
    %512 = arith.addf %507, %511 : vector<2x16x16xf32>
    %513 = vector.extract_strided_slice %497 {offsets = [0, 3, 0], sizes = [2, 16, 16], strides = [1, 1, 1]} : vector<2x22x16xf32> to vector<2x16x16xf32>
    %c76 = arith.constant 76 : index
    %514 = memref.load %arg1[%c76] : memref<98xf32, #tpu.memory_space<smem>>
    %515 = vector.broadcast %514 : f32 to vector<2x16x16xf32>
    %516 = arith.mulf %513, %515 : vector<2x16x16xf32>
    %517 = arith.addf %512, %516 : vector<2x16x16xf32>
    %518 = vector.extract_strided_slice %497 {offsets = [0, 4, 0], sizes = [2, 16, 16], strides = [1, 1, 1]} : vector<2x22x16xf32> to vector<2x16x16xf32>
    %c83 = arith.constant 83 : index
    %519 = memref.load %arg1[%c83] : memref<98xf32, #tpu.memory_space<smem>>
    %520 = vector.broadcast %519 : f32 to vector<2x16x16xf32>
    %521 = arith.mulf %518, %520 : vector<2x16x16xf32>
    %522 = arith.addf %517, %521 : vector<2x16x16xf32>
    %523 = vector.extract_strided_slice %497 {offsets = [0, 5, 0], sizes = [2, 16, 16], strides = [1, 1, 1]} : vector<2x22x16xf32> to vector<2x16x16xf32>
    %c90 = arith.constant 90 : index
    %524 = memref.load %arg1[%c90] : memref<98xf32, #tpu.memory_space<smem>>
    %525 = vector.broadcast %524 : f32 to vector<2x16x16xf32>
    %526 = arith.mulf %523, %525 : vector<2x16x16xf32>
    %527 = arith.addf %522, %526 : vector<2x16x16xf32>
    %528 = vector.extract_strided_slice %497 {offsets = [0, 6, 0], sizes = [2, 16, 16], strides = [1, 1, 1]} : vector<2x22x16xf32> to vector<2x16x16xf32>
    %c97 = arith.constant 97 : index
    %529 = memref.load %arg1[%c97] : memref<98xf32, #tpu.memory_space<smem>>
    %530 = vector.broadcast %529 : f32 to vector<2x16x16xf32>
    %531 = arith.mulf %528, %530 : vector<2x16x16xf32>
    %532 = arith.addf %527, %531 : vector<2x16x16xf32>
    %c0_30 = arith.constant 0 : index
    %c0_31 = arith.constant 0 : index
    %c0_32 = arith.constant 0 : index
    %533 = vector.load %arg4[%c0_30, %c0_31, %c0_32] : memref<2x16x16xf32, #tpu.memory_space<vmem>>, vector<2x16x16xf32>
    tpu.vector_store %arg4[%c0_30, %c0_31, %c0_32], %532 {strides = array<i32>} : memref<2x16x16xf32, #tpu.memory_space<vmem>>, vector<2x16x16xf32>,
    return
  }
  func.func @transform_0(%arg0: i32) -> i32 {
    %c0_i32 = arith.constant 0 : i32
    %c0_i32_0 = arith.constant 0 : i32
    return %c0_i32 : i32
  }
  func.func @transform_1(%arg0: i32) -> i32 {
    %c0_i32 = arith.constant 0 : i32
    %c0_i32_0 = arith.constant 0 : i32
    return %c0_i32 : i32
  }
  func.func @transform_2(%arg0: i32) -> (i32, i32, i32, i32) {
    %c0_i32 = arith.constant 0 : i32
    %c0_i32_0 = arith.constant 0 : i32
    %c0_i32_1 = arith.constant 0 : i32
    %c0_i32_2 = arith.constant 0 : i32
    return %arg0, %c0_i32, %c0_i32_0, %c0_i32_1 : i32, i32, i32, i32
  }
  func.func @transform_3(%arg0: i32) -> (i32, i32, i32) {
    %c0_i32 = arith.constant 0 : i32
    %c0_i32_0 = arith.constant 0 : i32
    %c0_i32_1 = arith.constant 0 : i32
    return %arg0, %c0_i32, %c0_i32_0 : i32, i32, i32
  }
}

</mosaic_0001>

<llo_original>
// kernel: tpu_custom_call.1
$region0: #{tpu_custom_call.1}
  #allocation0 [shape = 'u32[]', space=smem, size = 0x4, offset = 0x4, fixed_abs, tag = 'smem constant byte address 0x4 - core index']
  #allocation1 [shape = 'u32[144,128]{1,0:T(1,128)}', space=vmem, size = 0x12000, scoped, tag = 'internal scratch']
  #allocation2 [shape = 'f32[4,22,22]{2,1,0:T(8,128)}', space=vmem, size = 0xc000, scoped, tag = 'scratch operand']
  #allocation3 [shape = 'f32[1]{0:T(128)S(6)}', space=smem, size = 0x200, scoped, tag = 'scoped memory for tpu_custom_call.1']
  %s0 = inlined_call_operand.vmem [shape: f32[98], index: 0, kind: input, shape index: {}]
  %s1 = inlined_call_operand.<no memory space> [shape: f32[1], index: 1, kind: input, shape index: {}]
  %s2 = inlined_call_operand.hbm [shape: f32[2,4,16,16], index: 2, kind: input, shape index: {}]
  %s3 = inlined_call_operand.hbm [shape: f32[2,16,16], index: 3, kind: output, shape index: {}]
  %s4 = sld [smem:[#allocation0]]
  $region30: #{tpu_custom_call.1} parent=0
    _
  %s6 = ssub.s32 1, %s4
  %s7 = scalar_select 0, %s6, %s4
  %8 = sst [smem:[#allocation3]] %s1
  $region1: #{tpu_custom_call.1} parent=0
    #allocation4 [shape = 'u8[512]{0}', space=smem, size = 0x200, scoped, tag = 'input window, operand 0, single buffered']
    #allocation5 [shape = 's32[1]{0}', space=sflag, size = 0x4, scoped, tag = 'scoped memory for tpu_custom_call.1']
    #allocation6 [shape = 's32[1]{0}', space=sflag, size = 0x4, scoped, tag = 'scoped memory for tpu_custom_call.1']
    #allocation7 [shape = 's32[1]{0}', space=sflag, size = 0x4, scoped, tag = 'scoped memory for tpu_custom_call.1']
    #allocation8 [shape = 'u8[65536]{0}', space=vmem, size = 0x10000, scoped, tag = 'input window, operand 2, single buffered']
    #allocation9 [shape = 'u8[16384]{0}', space=vmem, size = 0x4000, scoped, tag = 'output window, operand 0, single buffered']
    %9 = vsyncpa [#allocation7], 0
    %10 = vsyncpa [#allocation5], 0
    %11 = vsyncpa [#allocation6], 0
    // Predicated region
    $region2: #{tpu_custom_call.1} parent=1 // pred_check
      _
    $region3: #{tpu_custom_call.1} parent=1 // pred_check_branch
      %13 = sbr.rel (0) target = $region5
    $region4: #{tpu_custom_call.1} parent=1 // pred_region
      %s15 = ssub.s32 16, 16
      %16 = vsyncadd [#allocation7], %s15
      %s18 = sshll.u32 %s0, 4
      %s19 = int_to_ptr.vmem [resolvable:$true] %s18
      %21 = dma.vmem_to_smem %s19, 16, [#allocation4], [#allocation7]
    $region5: #{tpu_custom_call.1} parent=1 // pred_fallthru
      _
    // Predicated region
    $region6: #{tpu_custom_call.1} parent=1 // pred_check
      _
    $region7: #{tpu_custom_call.1} parent=1 // pred_check_branch
      %23 = sbr.rel (0) target = $region9
    $region8: #{tpu_custom_call.1} parent=1 // pred_region
      _
    $region9: #{tpu_custom_call.1} parent=1 // pred_fallthru
      _
    // Predicated region
    $region10: #{tpu_custom_call.1} parent=1 // pred_check
      _
    $region11: #{tpu_custom_call.1} parent=1 // pred_check_branch
      %25 = sbr.rel (0) target = $region13
    $region12: #{tpu_custom_call.1} parent=1 // pred_region
      %s27 = ssub.s32 2048, 2048
      %28 = vsyncadd [#allocation5], %s27
      %s29 = sshll.u32 [#allocation8], 4
      %s30 = int_to_ptr.vmem [resolvable:$true] %s29
      %35 = dma.hbm_to_vmem [thread:$0]  %s2, 2048, %s30, [#allocation5], 128, 128, 8
    $region13: #{tpu_custom_call.1} parent=1 // pred_fallthru
      _
    // Predicated region
    $region14: #{tpu_custom_call.1} parent=1 // pred_check
      _
    $region15: #{tpu_custom_call.1} parent=1 // pred_check_branch
      %37 = sbr.rel (0) target = $region17
    $region16: #{tpu_custom_call.1} parent=1 // pred_region
      %38 = dma.done [#allocation7], 16
    $region17: #{tpu_custom_call.1} parent=1 // pred_fallthru
      _
    // Predicated region
    $region18: #{tpu_custom_call.1} parent=1 // pred_check
      _
    $region19: #{tpu_custom_call.1} parent=1 // pred_check_branch
      %40 = sbr.rel (0) target = $region21
    $region20: #{tpu_custom_call.1} parent=1 // pred_region
      %41 = dma.done [#allocation5], 2048
    $region21: #{tpu_custom_call.1} parent=1 // pred_fallthru
      _
    %42 = sfence
    %v43 = vld [vmem:[#allocation8] sm:$0xff]
    %v44 = vld [vmem:[#allocation8 + $0x8] sm:$0xff]
    %v45 = vld [vmem:[#allocation8 + $0x10] sm:$0xff]
    %v46 = vld [vmem:[#allocation8 + $0x18] sm:$0xff]
    %v47 = vld [vmem:[#allocation8 + $0x20] sm:$0xff]
    %v48 = vld [vmem:[#allocation8 + $0x28] sm:$0xff]
    %v49 = vld [vmem:[#allocation8 + $0x30] sm:$0xff]
    %v50 = vld [vmem:[#allocation8 + $0x38] sm:$0xff]
    %v51 = vld [vmem:[#allocation8 + $0x40] sm:$0xff]
    %v52 = vld [vmem:[#allocation8 + $0x48] sm:$0xff]
    %v53 = vld [vmem:[#allocation8 + $0x50] sm:$0xff]
    %v54 = vld [vmem:[#allocation8 + $0x58] sm:$0xff]
    %v55 = vld [vmem:[#allocation8 + $0x60] sm:$0xff]
    %v56 = vld [vmem:[#allocation8 + $0x68] sm:$0xff]
    %v57 = vld [vmem:[#allocation8 + $0x70] sm:$0xff]
    %v58 = vld [vmem:[#allocation8 + $0x78] sm:$0xff]
    %v59 = vmax.f32 %v43, %v45
    %v60 = vmax.f32 %v44, %v46
    %v61 = vmax.f32 %v51, %v53
    %v62 = vmax.f32 %v52, %v54
    %v63 = vadd.f32 %v43, %v45
    %v64 = vadd.f32 %v44, %v46
    %v65 = vadd.f32 %v51, %v53
    %v66 = vadd.f32 %v52, %v54
    %v67 = vmax.f32 %v59, %v47
    %v68 = vmax.f32 %v60, %v48
    %v69 = vmax.f32 %v61, %v55
    %v70 = vmax.f32 %v62, %v56
    %v71 = vadd.f32 %v63, %v47
    %v72 = vadd.f32 %v64, %v48
    %v73 = vadd.f32 %v65, %v55
    %v74 = vadd.f32 %v66, %v56
    %v75 = vmax.f32 %v67, %v49
    %v76 = vmax.f32 %v68, %v50
    %v77 = vmax.f32 %v69, %v57
    %v78 = vmax.f32 %v70, %v58
    %v79 = vadd.f32 %v71, %v49
    %v80 = vadd.f32 %v72, %v50
    %v81 = vadd.f32 %v73, %v57
    %v82 = vadd.f32 %v74, %v58
    %vm83 = vcmask 174080
    %84 = vst.msk [vmem:[#allocation2] sm:$0x7] %vm83, 0.0
    %85 = vst.msk [vmem:[#allocation2 + $0x18] sm:$0x7] %vm83, 0.0
    %86 = vst.msk [vmem:[#allocation2 + $0x30] sm:$0x7] %vm83, 0.0
    %87 = vst.msk [vmem:[#allocation2 + $0x48] sm:$0x7] %vm83, 0.0
    %88 = vst.msk [vmem:[#allocation2 + $0x13] sm:$0x7] %vm83, 0.0
    %89 = vst.msk [vmem:[#allocation2 + $0x2b] sm:$0x7] %vm83, 0.0
    %90 = vst.msk [vmem:[#allocation2 + $0x43] sm:$0x7] %vm83, 0.0
    %91 = vst.msk [vmem:[#allocation2 + $0x5b] sm:$0x7] %vm83, 0.0
    %vm92 = vcmask 23552
    %93 = vst.msk [vmem:[#allocation2 + $0x3] sm:$0xff] %vm92, 0.0
    %94 = vst.msk [vmem:[#allocation2 + $0xb] sm:$0xff] %vm92, 0.0
    %95 = vst.msk [vmem:[#allocation2 + $0x1b] sm:$0xff] %vm92, 0.0
    %96 = vst.msk [vmem:[#allocation2 + $0x23] sm:$0xff] %vm92, 0.0
    %97 = vst.msk [vmem:[#allocation2 + $0x33] sm:$0xff] %vm92, 0.0
    %98 = vst.msk [vmem:[#allocation2 + $0x3b] sm:$0xff] %vm92, 0.0
    %99 = vst.msk [vmem:[#allocation2 + $0x4b] sm:$0xff] %vm92, 0.0
    %100 = vst.msk [vmem:[#allocation2 + $0x53] sm:$0xff] %vm92, 0.0
    %vm101 = vcmask 179352
    %102 = vst.msk [vmem:[#allocation2 + $0x3] sm:$0xff] %vm101, 0.0
    %103 = vst.msk [vmem:[#allocation2 + $0xb] sm:$0xff] %vm101, 0.0
    %104 = vst.msk [vmem:[#allocation2 + $0x1b] sm:$0xff] %vm101, 0.0
    %105 = vst.msk [vmem:[#allocation2 + $0x23] sm:$0xff] %vm101, 0.0
    %106 = vst.msk [vmem:[#allocation2 + $0x33] sm:$0xff] %vm101, 0.0
    %107 = vst.msk [vmem:[#allocation2 + $0x3b] sm:$0xff] %vm101, 0.0
    %108 = vst.msk [vmem:[#allocation2 + $0x4b] sm:$0xff] %vm101, 0.0
    %109 = vst.msk [vmem:[#allocation2 + $0x53] sm:$0xff] %vm101, 0.0
    %114 = vrot.lane.b32.xlu0 %v75, 3
    %v115 = vpop.permute.xlu0 %114
    %116 = vrot.lane.b32.xlu0 %v76, 3
    %v117 = vpop.permute.xlu0 %116
    %118 = vrot.lane.b32.xlu0 %v77, 3
    %v119 = vpop.permute.xlu0 %118
    %120 = vrot.lane.b32.xlu0 %v78, 3
    %v121 = vpop.permute.xlu0 %120
    %vm126 = vcmask 154648
    %127 = vst.msk [vmem:[#allocation2 + $0x3] sm:$0xff] %vm126, %v115
    %128 = vst.msk [vmem:[#allocation2 + $0xb] sm:$0xff] %vm126, %v117
    %129 = vst.msk [vmem:[#allocation2 + $0x1b] sm:$0xff] %vm126, %v119
    %130 = vst.msk [vmem:[#allocation2 + $0x23] sm:$0xff] %vm126, %v121
    %135 = vrot.lane.b32.xlu0 %v79, 3
    %v136 = vpop.permute.xlu0 %135
    %137 = vrot.lane.b32.xlu0 %v80, 3
    %v138 = vpop.permute.xlu0 %137
    %139 = vrot.lane.b32.xlu0 %v81, 3
    %v140 = vpop.permute.xlu0 %139
    %141 = vrot.lane.b32.xlu0 %v82, 3
    %v142 = vpop.permute.xlu0 %141
    %s147 = scalar_lea.vmem [#allocation2], 48
    %148 = vst.msk [vmem:[%s147 + $0x3] sm:$0xff] %vm126, %v136
    %149 = vst.msk [vmem:[%s147 + $0xb] sm:$0xff] %vm126, %v138
    %150 = vst.msk [vmem:[%s147 + $0x1b] sm:$0xff] %vm126, %v140
    %151 = vst.msk [vmem:[%s147 + $0x23] sm:$0xff] %vm126, %v142
    %s152 = sld [smem:[#allocation3]]
    %v153 = vstv %s152
    %v154 = vld [vmem:[#allocation2] sm:$0xff]
    %v155 = vld [vmem:[#allocation2 + $0x8] sm:$0xff]
    %v156 = vld [vmem:[#allocation2 + $0x10] sm:$0x3f]
    %v157 = vld [vmem:[#allocation2 + $0x18] sm:$0xff]
    %v158 = vld [vmem:[#allocation2 + $0x20] sm:$0xff]
    %v159 = vld [vmem:[#allocation2 + $0x28] sm:$0x3f]
    %s160 = sld [smem:[#allocation4]]
    %v161 = vstv %s160
    %v162 = vmul.f32 %v154, %v161
    %v163 = vmul.f32 %v155, %v161
    %v164 = vmul.f32 %v157, %v161
    %v165 = vmul.f32 %v158, %v161
    %v166 = vadd.f32 %v153, %v162
    %v167 = vadd.f32 %v153, %v163
    %v168 = vadd.f32 %v153, %v164
    %v169 = vadd.f32 %v153, %v165
    %s170 = sld [smem:[#allocation4 + $0x7]]
    %v171 = vstv %s170
    %v172 = vmul.f32 %v154, %v171
    %v173 = vmul.f32 %v155, %v171
    %v174 = vmul.f32 %v156, %v171
    %v175 = vmul.f32 %v157, %v171
    %v176 = vmul.f32 %v158, %v171
    %v177 = vmul.f32 %v159, %v171
    %vm184 = vcmask 1046528
    %v185 = vrot.slane %v172, 1
    %v186 = vrot.slane %v173, 1
    %v187 = vsel %vm184, %v185, %v186
    %v188 = vrot.slane %v174, 1
    %v189 = vsel %vm184, %v186, %v188
    %v190 = vrot.slane %v175, 1
    %v191 = vrot.slane %v176, 1
    %v192 = vsel %vm184, %v190, %v191
    %v193 = vrot.slane %v177, 1
    %v194 = vsel %vm184, %v191, %v193
    %v199 = vadd.f32 %v166, %v187
    %v200 = vadd.f32 %v167, %v189
    %v201 = vadd.f32 %v168, %v192
    %v202 = vadd.f32 %v169, %v194
    %s203 = sld [smem:[#allocation4 + $0xe]]
    %v204 = vstv %s203
    %v205 = vmul.f32 %v154, %v204
    %v206 = vmul.f32 %v155, %v204
    %v207 = vmul.f32 %v156, %v204
    %v208 = vmul.f32 %v157, %v204
    %v209 = vmul.f32 %v158, %v204
    %v210 = vmul.f32 %v159, %v204
    %vm217 = vcmask 1045504
    %v218 = vrot.slane %v205, 2
    %v219 = vrot.slane %v206, 2
    %v220 = vsel %vm217, %v218, %v219
    %v221 = vrot.slane %v207, 2
    %v222 = vsel %vm217, %v219, %v221
    %v223 = vrot.slane %v208, 2
    %v224 = vrot.slane %v209, 2
    %v225 = vsel %vm217, %v223, %v224
    %v226 = vrot.slane %v210, 2
    %v227 = vsel %vm217, %v224, %v226
    %v232 = vadd.f32 %v199, %v220
    %v233 = vadd.f32 %v200, %v222
    %v234 = vadd.f32 %v201, %v225
    %v235 = vadd.f32 %v202, %v227
    %s236 = sld [smem:[#allocation4 + $0x15]]
    %v237 = vstv %s236
    %v238 = vmul.f32 %v154, %v237
    %v239 = vmul.f32 %v155, %v237
    %v240 = vmul.f32 %v156, %v237
    %v241 = vmul.f32 %v157, %v237
    %v242 = vmul.f32 %v158, %v237
    %v243 = vmul.f32 %v159, %v237
    %vm250 = vcmask 1044480
    %v251 = vrot.slane %v238, 3
    %v252 = vrot.slane %v239, 3
    %v253 = vsel %vm250, %v251, %v252
    %v254 = vrot.slane %v240, 3
    %v255 = vsel %vm250, %v252, %v254
    %v256 = vrot.slane %v241, 3
    %v257 = vrot.slane %v242, 3
    %v258 = vsel %vm250, %v256, %v257
    %v259 = vrot.slane %v243, 3
    %v260 = vsel %vm250, %v257, %v259
    %v265 = vadd.f32 %v232, %v253
    %v266 = vadd.f32 %v233, %v255
    %v267 = vadd.f32 %v234, %v258
    %v268 = vadd.f32 %v235, %v260
    %s269 = sld [smem:[#allocation4 + $0x1c]]
    %v270 = vstv %s269
    %v271 = vmul.f32 %v154, %v270
    %v272 = vmul.f32 %v155, %v270
    %v273 = vmul.f32 %v156, %v270
    %v274 = vmul.f32 %v157, %v270
    %v275 = vmul.f32 %v158, %v270
    %v276 = vmul.f32 %v159, %v270
    %vm283 = vcmask 1043456
    %v284 = vrot.slane %v271, 4
    %v285 = vrot.slane %v272, 4
    %v286 = vsel %vm283, %v284, %v285
    %v287 = vrot.slane %v273, 4
    %v288 = vsel %vm283, %v285, %v287
    %v289 = vrot.slane %v274, 4
    %v290 = vrot.slane %v275, 4
    %v291 = vsel %vm283, %v289, %v290
    %v292 = vrot.slane %v276, 4
    %v293 = vsel %vm283, %v290, %v292
    %v298 = vadd.f32 %v265, %v286
    %v299 = vadd.f32 %v266, %v288
    %v300 = vadd.f32 %v267, %v291
    %v301 = vadd.f32 %v268, %v293
    %s302 = sld [smem:[#allocation4 + $0x23]]
    %v303 = vstv %s302
    %v304 = vmul.f32 %v154, %v303
    %v305 = vmul.f32 %v155, %v303
    %v306 = vmul.f32 %v156, %v303
    %v307 = vmul.f32 %v157, %v303
    %v308 = vmul.f32 %v158, %v303
    %v309 = vmul.f32 %v159, %v303
    %vm316 = vcmask 1042432
    %v317 = vrot.slane %v304, 5
    %v318 = vrot.slane %v305, 5
    %v319 = vsel %vm316, %v317, %v318
    %v320 = vrot.slane %v306, 5
    %v321 = vsel %vm316, %v318, %v320
    %v322 = vrot.slane %v307, 5
    %v323 = vrot.slane %v308, 5
    %v324 = vsel %vm316, %v322, %v323
    %v325 = vrot.slane %v309, 5
    %v326 = vsel %vm316, %v323, %v325
    %v331 = vadd.f32 %v298, %v319
    %v332 = vadd.f32 %v299, %v321
    %v333 = vadd.f32 %v300, %v324
    %v334 = vadd.f32 %v301, %v326
    %s335 = sld [smem:[#allocation4 + $0x2a]]
    %v336 = vstv %s335
    %v337 = vmul.f32 %v154, %v336
    %v338 = vmul.f32 %v155, %v336
    %v339 = vmul.f32 %v156, %v336
    %v340 = vmul.f32 %v157, %v336
    %v341 = vmul.f32 %v158, %v336
    %v342 = vmul.f32 %v159, %v336
    %vm349 = vcmask 1041408
    %v350 = vrot.slane %v337, 6
    %v351 = vrot.slane %v338, 6
    %v352 = vsel %vm349, %v350, %v351
    %v353 = vrot.slane %v339, 6
    %v354 = vsel %vm349, %v351, %v353
    %v355 = vrot.slane %v340, 6
    %v356 = vrot.slane %v341, 6
    %v357 = vsel %vm349, %v355, %v356
    %v358 = vrot.slane %v342, 6
    %v359 = vsel %vm349, %v356, %v358
    %v364 = vadd.f32 %v331, %v352
    %v365 = vadd.f32 %v332, %v354
    %v366 = vadd.f32 %v333, %v357
    %v367 = vadd.f32 %v334, %v359
    %s368 = sld [smem:[#allocation4 + $0x1]]
    %v369 = vstv %s368
    %v370 = vmul.f32 %v154, %v369
    %v371 = vmul.f32 %v155, %v369
    %v372 = vmul.f32 %v157, %v369
    %v373 = vmul.f32 %v158, %v369
    %378 = vrot.lane.b32.xlu0 %v370, 127
    %v379 = vpop.permute.xlu0 %378
    %380 = vrot.lane.b32.xlu0 %v371, 127
    %v381 = vpop.permute.xlu0 %380
    %382 = vrot.lane.b32.xlu0 %v372, 127
    %v383 = vpop.permute.xlu0 %382
    %384 = vrot.lane.b32.xlu0 %v373, 127
    %v385 = vpop.permute.xlu0 %384
    %v390 = vadd.f32 %v364, %v379
    %v391 = vadd.f32 %v365, %v381
    %v392 = vadd.f32 %v366, %v383
    %v393 = vadd.f32 %v367, %v385
    %s394 = sld [smem:[#allocation4 + $0x8]]
    %v395 = vstv %s394
    %v396 = vmul.f32 %v154, %v395
    %v397 = vmul.f32 %v155, %v395
    %v398 = vmul.f32 %v156, %v395
    %v399 = vmul.f32 %v157, %v395
    %v400 = vmul.f32 %v158, %v395
    %v401 = vmul.f32 %v159, %v395
    %v408 = vrot.slane %v396, 1
    %v409 = vrot.slane %v397, 1
    %v410 = vsel %vm184, %v408, %v409
    %v411 = vrot.slane %v398, 1
    %v412 = vsel %vm184, %v409, %v411
    %v413 = vrot.slane %v399, 1
    %v414 = vrot.slane %v400, 1
    %v415 = vsel %vm184, %v413, %v414
    %v416 = vrot.slane %v401, 1
    %v417 = vsel %vm184, %v414, %v416
    %418 = vrot.lane.b32.xlu0 %v410, 127
    %v419 = vpop.permute.xlu0 %418
    %420 = vrot.lane.b32.xlu0 %v412, 127
    %v421 = vpop.permute.xlu0 %420
    %422 = vrot.lane.b32.xlu0 %v415, 127
    %v423 = vpop.permute.xlu0 %422
    %424 = vrot.lane.b32.xlu0 %v417, 127
    %v425 = vpop.permute.xlu0 %424
    %v430 = vadd.f32 %v390, %v419
    %v431 = vadd.f32 %v391, %v421
    %v432 = vadd.f32 %v392, %v423
    %v433 = vadd.f32 %v393, %v425
    %s434 = sld [smem:[#allocation4 + $0xf]]
    %v435 = vstv %s434
    %v436 = vmul.f32 %v154, %v435
    %v437 = vmul.f32 %v155, %v435
    %v438 = vmul.f32 %v156, %v435
    %v439 = vmul.f32 %v157, %v435
    %v440 = vmul.f32 %v158, %v435
    %v441 = vmul.f32 %v159, %v435
    %v448 = vrot.slane %v436, 2
    %v449 = vrot.slane %v437, 2
    %v450 = vsel %vm217, %v448, %v449
    %v451 = vrot.slane %v438, 2
    %v452 = vsel %vm217, %v449, %v451
    %v453 = vrot.slane %v439, 2
    %v454 = vrot.slane %v440, 2
    %v455 = vsel %vm217, %v453, %v454
    %v456 = vrot.slane %v441, 2
    %v457 = vsel %vm217, %v454, %v456
    %458 = vrot.lane.b32.xlu0 %v450, 127
    %v459 = vpop.permute.xlu0 %458
    %460 = vrot.lane.b32.xlu0 %v452, 127
    %v461 = vpop.permute.xlu0 %460
    %462 = vrot.lane.b32.xlu0 %v455, 127
    %v463 = vpop.permute.xlu0 %462
    %464 = vrot.lane.b32.xlu0 %v457, 127
    %v465 = vpop.permute.xlu0 %464
    %v470 = vadd.f32 %v430, %v459
    %v471 = vadd.f32 %v431, %v461
    %v472 = vadd.f32 %v432, %v463
    %v473 = vadd.f32 %v433, %v465
    %s474 = sld [smem:[#allocation4 + $0x16]]
    %v475 = vstv %s474
    %v476 = vmul.f32 %v154, %v475
    %v477 = vmul.f32 %v155, %v475
    %v478 = vmul.f32 %v156, %v475
    %v479 = vmul.f32 %v157, %v475
    %v480 = vmul.f32 %v158, %v475
    %v481 = vmul.f32 %v159, %v475
    %v488 = vrot.slane %v476, 3
    %v489 = vrot.slane %v477, 3
    %v490 = vsel %vm250, %v488, %v489
    %v491 = vrot.slane %v478, 3
    %v492 = vsel %vm250, %v489, %v491
    %v493 = vrot.slane %v479, 3
    %v494 = vrot.slane %v480, 3
    %v495 = vsel %vm250, %v493, %v494
    %v496 = vrot.slane %v481, 3
    %v497 = vsel %vm250, %v494, %v496
    %498 = vrot.lane.b32.xlu0 %v490, 127
    %v499 = vpop.permute.xlu0 %498
    %500 = vrot.lane.b32.xlu0 %v492, 127
    %v501 = vpop.permute.xlu0 %500
    %502 = vrot.lane.b32.xlu0 %v495, 127
    %v503 = vpop.permute.xlu0 %502
    %504 = vrot.lane.b32.xlu0 %v497, 127
    %v505 = vpop.permute.xlu0 %504
    %v510 = vadd.f32 %v470, %v499
    %v511 = vadd.f32 %v471, %v501
    %v512 = vadd.f32 %v472, %v503
    %v513 = vadd.f32 %v473, %v505
    %s514 = sld [smem:[#allocation4 + $0x1d]]
    %v515 = vstv %s514
    %v516 = vmul.f32 %v154, %v515
    %v517 = vmul.f32 %v155, %v515
    %v518 = vmul.f32 %v156, %v515
    %v519 = vmul.f32 %v157, %v515
    %v520 = vmul.f32 %v158, %v515
    %v521 = vmul.f32 %v159, %v515
    %v528 = vrot.slane %v516, 4
    %v529 = vrot.slane %v517, 4
    %v530 = vsel %vm283, %v528, %v529
    %v531 = vrot.slane %v518, 4
    %v532 = vsel %vm283, %v529, %v531
    %v533 = vrot.slane %v519, 4
    %v534 = vrot.slane %v520, 4
    %v535 = vsel %vm283, %v533, %v534
    %v536 = vrot.slane %v521, 4
    %v537 = vsel %vm283, %v534, %v536
    %538 = vrot.lane.b32.xlu0 %v530, 127
    %v539 = vpop.permute.xlu0 %538
    %540 = vrot.lane.b32.xlu0 %v532, 127
    %v541 = vpop.permute.xlu0 %540
    %542 = vrot.lane.b32.xlu0 %v535, 127
    %v543 = vpop.permute.xlu0 %542
    %544 = vrot.lane.b32.xlu0 %v537, 127
    %v545 = vpop.permute.xlu0 %544
    %v550 = vadd.f32 %v510, %v539
    %v551 = vadd.f32 %v511, %v541
    %v552 = vadd.f32 %v512, %v543
    %v553 = vadd.f32 %v513, %v545
    %s554 = sld [smem:[#allocation4 + $0x24]]
    %v555 = vstv %s554
    %v556 = vmul.f32 %v154, %v555
    %v557 = vmul.f32 %v155, %v555
    %v558 = vmul.f32 %v156, %v555
    %v559 = vmul.f32 %v157, %v555
    %v560 = vmul.f32 %v158, %v555
    %v561 = vmul.f32 %v159, %v555
    %v568 = vrot.slane %v556, 5
    %v569 = vrot.slane %v557, 5
    %v570 = vsel %vm316, %v568, %v569
    %v571 = vrot.slane %v558, 5
    %v572 = vsel %vm316, %v569, %v571
    %v573 = vrot.slane %v559, 5
    %v574 = vrot.slane %v560, 5
    %v575 = vsel %vm316, %v573, %v574
    %v576 = vrot.slane %v561, 5
    %v577 = vsel %vm316, %v574, %v576
    %578 = vrot.lane.b32.xlu0 %v570, 127
    %v579 = vpop.permute.xlu0 %578
    %580 = vrot.lane.b32.xlu0 %v572, 127
    %v581 = vpop.permute.xlu0 %580
    %582 = vrot.lane.b32.xlu0 %v575, 127
    %v583 = vpop.permute.xlu0 %582
    %584 = vrot.lane.b32.xlu0 %v577, 127
    %v585 = vpop.permute.xlu0 %584
    %v590 = vadd.f32 %v550, %v579
    %v591 = vadd.f32 %v551, %v581
    %v592 = vadd.f32 %v552, %v583
    %v593 = vadd.f32 %v553, %v585
    %s594 = sld [smem:[#allocation4 + $0x2b]]
    %v595 = vstv %s594
    %v596 = vmul.f32 %v154, %v595
    %v597 = vmul.f32 %v155, %v595
    %v598 = vmul.f32 %v156, %v595
    %v599 = vmul.f32 %v157, %v595
    %v600 = vmul.f32 %v158, %v595
    %v601 = vmul.f32 %v159, %v595
    %v608 = vrot.slane %v596, 6
    %v609 = vrot.slane %v597, 6
    %v610 = vsel %vm349, %v608, %v609
    %v611 = vrot.slane %v598, 6
    %v612 = vsel %vm349, %v609, %v611
    %v613 = vrot.slane %v599, 6
    %v614 = vrot.slane %v600, 6
    %v615 = vsel %vm349, %v613, %v614
    %v616 = vrot.slane %v601, 6
    %v617 = vsel %vm349, %v614, %v616
    %618 = vrot.lane.b32.xlu0 %v610, 127
    %v619 = vpop.permute.xlu0 %618
    %620 = vrot.lane.b32.xlu0 %v612, 127
    %v621 = vpop.permute.xlu0 %620
    %622 = vrot.lane.b32.xlu0 %v615, 127
    %v623 = vpop.permute.xlu0 %622
    %624 = vrot.lane.b32.xlu0 %v617, 127
    %v625 = vpop.permute.xlu0 %624
    %v630 = vadd.f32 %v590, %v619
    %v631 = vadd.f32 %v591, %v621
    %v632 = vadd.f32 %v592, %v623
    %v633 = vadd.f32 %v593, %v625
    %s634 = sld [smem:[#allocation4 + $0x2]]
    %v635 = vstv %s634
    %v636 = vmul.f32 %v154, %v635
    %v637 = vmul.f32 %v155, %v635
    %v638 = vmul.f32 %v157, %v635
    %v639 = vmul.f32 %v158, %v635
    %644 = vrot.lane.b32.xlu0 %v636, 126
    %v645 = vpop.permute.xlu0 %644
    %646 = vrot.lane.b32.xlu0 %v637, 126
    %v647 = vpop.permute.xlu0 %646
    %648 = vrot.lane.b32.xlu0 %v638, 126
    %v649 = vpop.permute.xlu0 %648
    %650 = vrot.lane.b32.xlu0 %v639, 126
    %v651 = vpop.permute.xlu0 %650
    %v656 = vadd.f32 %v630, %v645
    %v657 = vadd.f32 %v631, %v647
    %v658 = vadd.f32 %v632, %v649
    %v659 = vadd.f32 %v633, %v651
    %s660 = sld [smem:[#allocation4 + $0x9]]
    %v661 = vstv %s660
    %v662 = vmul.f32 %v154, %v661
    %v663 = vmul.f32 %v155, %v661
    %v664 = vmul.f32 %v156, %v661
    %v665 = vmul.f32 %v157, %v661
    %v666 = vmul.f32 %v158, %v661
    %v667 = vmul.f32 %v159, %v661
    %v674 = vrot.slane %v662, 1
    %v675 = vrot.slane %v663, 1
    %v676 = vsel %vm184, %v674, %v675
    %v677 = vrot.slane %v664, 1
    %v678 = vsel %vm184, %v675, %v677
    %v679 = vrot.slane %v665, 1
    %v680 = vrot.slane %v666, 1
    %v681 = vsel %vm184, %v679, %v680
    %v682 = vrot.slane %v667, 1
    %v683 = vsel %vm184, %v680, %v682
    %684 = vrot.lane.b32.xlu0 %v676, 126
    %v685 = vpop.permute.xlu0 %684
    %686 = vrot.lane.b32.xlu0 %v678, 126
    %v687 = vpop.permute.xlu0 %686
    %688 = vrot.lane.b32.xlu0 %v681, 126
    %v689 = vpop.permute.xlu0 %688
    %690 = vrot.lane.b32.xlu0 %v683, 126
    %v691 = vpop.permute.xlu0 %690
    %v696 = vadd.f32 %v656, %v685
    %v697 = vadd.f32 %v657, %v687
    %v698 = vadd.f32 %v658, %v689
    %v699 = vadd.f32 %v659, %v691
    %s700 = sld [smem:[#allocation4 + $0x10]]
    %v701 = vstv %s700
    %v702 = vmul.f32 %v154, %v701
    %v703 = vmul.f32 %v155, %v701
    %v704 = vmul.f32 %v156, %v701
    %v705 = vmul.f32 %v157, %v701
    %v706 = vmul.f32 %v158, %v701
    %v707 = vmul.f32 %v159, %v701
    %v714 = vrot.slane %v702, 2
    %v715 = vrot.slane %v703, 2
    %v716 = vsel %vm217, %v714, %v715
    %v717 = vrot.slane %v704, 2
    %v718 = vsel %vm217, %v715, %v717
    %v719 = vrot.slane %v705, 2
    %v720 = vrot.slane %v706, 2
    %v721 = vsel %vm217, %v719, %v720
    %v722 = vrot.slane %v707, 2
    %v723 = vsel %vm217, %v720, %v722
    %724 = vrot.lane.b32.xlu0 %v716, 126
    %v725 = vpop.permute.xlu0 %724
    %726 = vrot.lane.b32.xlu0 %v718, 126
    %v727 = vpop.permute.xlu0 %726
    %728 = vrot.lane.b32.xlu0 %v721, 126
    %v729 = vpop.permute.xlu0 %728
    %730 = vrot.lane.b32.xlu0 %v723, 126
    %v731 = vpop.permute.xlu0 %730
    %v736 = vadd.f32 %v696, %v725
    %v737 = vadd.f32 %v697, %v727
    %v738 = vadd.f32 %v698, %v729
    %v739 = vadd.f32 %v699, %v731
    %s740 = sld [smem:[#allocation4 + $0x17]]
    %v741 = vstv %s740
    %v742 = vmul.f32 %v154, %v741
    %v743 = vmul.f32 %v155, %v741
    %v744 = vmul.f32 %v156, %v741
    %v745 = vmul.f32 %v157, %v741
    %v746 = vmul.f32 %v158, %v741
    %v747 = vmul.f32 %v159, %v741
    %v754 = vrot.slane %v742, 3
    %v755 = vrot.slane %v743, 3
    %v756 = vsel %vm250, %v754, %v755
    %v757 = vrot.slane %v744, 3
    %v758 = vsel %vm250, %v755, %v757
    %v759 = vrot.slane %v745, 3
    %v760 = vrot.slane %v746, 3
    %v761 = vsel %vm250, %v759, %v760
    %v762 = vrot.slane %v747, 3
    %v763 = vsel %vm250, %v760, %v762
    %764 = vrot.lane.b32.xlu0 %v756, 126
    %v765 = vpop.permute.xlu0 %764
    %766 = vrot.lane.b32.xlu0 %v758, 126
    %v767 = vpop.permute.xlu0 %766
    %768 = vrot.lane.b32.xlu0 %v761, 126
    %v769 = vpop.permute.xlu0 %768
    %770 = vrot.lane.b32.xlu0 %v763, 126
    %v771 = vpop.permute.xlu0 %770
    %v776 = vadd.f32 %v736, %v765
    %v777 = vadd.f32 %v737, %v767
    %v778 = vadd.f32 %v738, %v769
    %v779 = vadd.f32 %v739, %v771
    %s780 = sld [smem:[#allocation4 + $0x1e]]
    %v781 = vstv %s780
    %v782 = vmul.f32 %v154, %v781
    %v783 = vmul.f32 %v155, %v781
    %v784 = vmul.f32 %v156, %v781
    %v785 = vmul.f32 %v157, %v781
    %v786 = vmul.f32 %v158, %v781
    %v787 = vmul.f32 %v159, %v781
    %v794 = vrot.slane %v782, 4
    %v795 = vrot.slane %v783, 4
    %v796 = vsel %vm283, %v794, %v795
    %v797 = vrot.slane %v784, 4
    %v798 = vsel %vm283, %v795, %v797
    %v799 = vrot.slane %v785, 4
    %v800 = vrot.slane %v786, 4
    %v801 = vsel %vm283, %v799, %v800
    %v802 = vrot.slane %v787, 4
    %v803 = vsel %vm283, %v800, %v802
    %804 = vrot.lane.b32.xlu0 %v796, 126
    %v805 = vpop.permute.xlu0 %804
    %806 = vrot.lane.b32.xlu0 %v798, 126
    %v807 = vpop.permute.xlu0 %806
    %808 = vrot.lane.b32.xlu0 %v801, 126
    %v809 = vpop.permute.xlu0 %808
    %810 = vrot.lane.b32.xlu0 %v803, 126
    %v811 = vpop.permute.xlu0 %810
    %v816 = vadd.f32 %v776, %v805
    %v817 = vadd.f32 %v777, %v807
    %v818 = vadd.f32 %v778, %v809
    %v819 = vadd.f32 %v779, %v811
    %s820 = sld [smem:[#allocation4 + $0x25]]
    %v821 = vstv %s820
    %v822 = vmul.f32 %v154, %v821
    %v823 = vmul.f32 %v155, %v821
    %v824 = vmul.f32 %v156, %v821
    %v825 = vmul.f32 %v157, %v821
    %v826 = vmul.f32 %v158, %v821
    %v827 = vmul.f32 %v159, %v821
    %v834 = vrot.slane %v822, 5
    %v835 = vrot.slane %v823, 5
    %v836 = vsel %vm316, %v834, %v835
    %v837 = vrot.slane %v824, 5
    %v838 = vsel %vm316, %v835, %v837
    %v839 = vrot.slane %v825, 5
    %v840 = vrot.slane %v826, 5
    %v841 = vsel %vm316, %v839, %v840
    %v842 = vrot.slane %v827, 5
    %v843 = vsel %vm316, %v840, %v842
    %844 = vrot.lane.b32.xlu0 %v836, 126
    %v845 = vpop.permute.xlu0 %844
    %846 = vrot.lane.b32.xlu0 %v838, 126
    %v847 = vpop.permute.xlu0 %846
    %848 = vrot.lane.b32.xlu0 %v841, 126
    %v849 = vpop.permute.xlu0 %848
    %850 = vrot.lane.b32.xlu0 %v843, 126
    %v851 = vpop.permute.xlu0 %850
    %v856 = vadd.f32 %v816, %v845
    %v857 = vadd.f32 %v817, %v847
    %v858 = vadd.f32 %v818, %v849
    %v859 = vadd.f32 %v819, %v851
    %s860 = sld [smem:[#allocation4 + $0x2c]]
    %v861 = vstv %s860
    %v862 = vmul.f32 %v154, %v861
    %v863 = vmul.f32 %v155, %v861
    %v864 = vmul.f32 %v156, %v861
    %v865 = vmul.f32 %v157, %v861
    %v866 = vmul.f32 %v158, %v861
    %v867 = vmul.f32 %v159, %v861
    %v874 = vrot.slane %v862, 6
    %v875 = vrot.slane %v863, 6
    %v876 = vsel %vm349, %v874, %v875
    %v877 = vrot.slane %v864, 6
    %v878 = vsel %vm349, %v875, %v877
    %v879 = vrot.slane %v865, 6
    %v880 = vrot.slane %v866, 6
    %v881 = vsel %vm349, %v879, %v880
    %v882 = vrot.slane %v867, 6
    %v883 = vsel %vm349, %v880, %v882
    %884 = vrot.lane.b32.xlu0 %v876, 126
    %v885 = vpop.permute.xlu0 %884
    %886 = vrot.lane.b32.xlu0 %v878, 126
    %v887 = vpop.permute.xlu0 %886
    %888 = vrot.lane.b32.xlu0 %v881, 126
    %v889 = vpop.permute.xlu0 %888
    %890 = vrot.lane.b32.xlu0 %v883, 126
    %v891 = vpop.permute.xlu0 %890
    %v896 = vadd.f32 %v856, %v885
    %v897 = vadd.f32 %v857, %v887
    %v898 = vadd.f32 %v858, %v889
    %v899 = vadd.f32 %v859, %v891
    %s900 = sld [smem:[#allocation4 + $0x3]]
    %v901 = vstv %s900
    %v902 = vmul.f32 %v154, %v901
    %v903 = vmul.f32 %v155, %v901
    %v904 = vmul.f32 %v157, %v901
    %v905 = vmul.f32 %v158, %v901
    %910 = vrot.lane.b32.xlu0 %v902, 125
    %v911 = vpop.permute.xlu0 %910
    %912 = vrot.lane.b32.xlu0 %v903, 125
    %v913 = vpop.permute.xlu0 %912
    %914 = vrot.lane.b32.xlu0 %v904, 125
    %v915 = vpop.permute.xlu0 %914
    %916 = vrot.lane.b32.xlu0 %v905, 125
    %v917 = vpop.permute.xlu0 %916
    %v922 = vadd.f32 %v896, %v911
    %v923 = vadd.f32 %v897, %v913
    %v924 = vadd.f32 %v898, %v915
    %v925 = vadd.f32 %v899, %v917
    %s926 = sld [smem:[#allocation4 + $0xa]]
    %v927 = vstv %s926
    %v928 = vmul.f32 %v154, %v927
    %v929 = vmul.f32 %v155, %v927
    %v930 = vmul.f32 %v156, %v927
    %v931 = vmul.f32 %v157, %v927
    %v932 = vmul.f32 %v158, %v927
    %v933 = vmul.f32 %v159, %v927
    %v940 = vrot.slane %v928, 1
    %v941 = vrot.slane %v929, 1
    %v942 = vsel %vm184, %v940, %v941
    %v943 = vrot.slane %v930, 1
    %v944 = vsel %vm184, %v941, %v943
    %v945 = vrot.slane %v931, 1
    %v946 = vrot.slane %v932, 1
    %v947 = vsel %vm184, %v945, %v946
    %v948 = vrot.slane %v933, 1
    %v949 = vsel %vm184, %v946, %v948
    %950 = vrot.lane.b32.xlu0 %v942, 125
    %v951 = vpop.permute.xlu0 %950
    %952 = vrot.lane.b32.xlu0 %v944, 125
    %v953 = vpop.permute.xlu0 %952
    %954 = vrot.lane.b32.xlu0 %v947, 125
    %v955 = vpop.permute.xlu0 %954
    %956 = vrot.lane.b32.xlu0 %v949, 125
    %v957 = vpop.permute.xlu0 %956
    %v962 = vadd.f32 %v922, %v951
    %v963 = vadd.f32 %v923, %v953
    %v964 = vadd.f32 %v924, %v955
    %v965 = vadd.f32 %v925, %v957
    %s966 = sld [smem:[#allocation4 + $0x11]]
    %v967 = vstv %s966
    %v968 = vmul.f32 %v154, %v967
    %v969 = vmul.f32 %v155, %v967
    %v970 = vmul.f32 %v156, %v967
    %v971 = vmul.f32 %v157, %v967
    %v972 = vmul.f32 %v158, %v967
    %v973 = vmul.f32 %v159, %v967
    %v980 = vrot.slane %v968, 2
    %v981 = vrot.slane %v969, 2
    %v982 = vsel %vm217, %v980, %v981
    %v983 = vrot.slane %v970, 2
    %v984 = vsel %vm217, %v981, %v983
    %v985 = vrot.slane %v971, 2
    %v986 = vrot.slane %v972, 2
    %v987 = vsel %vm217, %v985, %v986
    %v988 = vrot.slane %v973, 2
    %v989 = vsel %vm217, %v986, %v988
    %990 = vrot.lane.b32.xlu0 %v982, 125
    %v991 = vpop.permute.xlu0 %990
    %992 = vrot.lane.b32.xlu0 %v984, 125
    %v993 = vpop.permute.xlu0 %992
    %994 = vrot.lane.b32.xlu0 %v987, 125
    %v995 = vpop.permute.xlu0 %994
    %996 = vrot.lane.b32.xlu0 %v989, 125
    %v997 = vpop.permute.xlu0 %996
    %v1002 = vadd.f32 %v962, %v991
    %v1003 = vadd.f32 %v963, %v993
    %v1004 = vadd.f32 %v964, %v995
    %v1005 = vadd.f32 %v965, %v997
    %s1006 = sld [smem:[#allocation4 + $0x18]]
    %v1007 = vstv %s1006
    %v1008 = vmul.f32 %v154, %v1007
    %v1009 = vmul.f32 %v155, %v1007
    %v1010 = vmul.f32 %v156, %v1007
    %v1011 = vmul.f32 %v157, %v1007
    %v1012 = vmul.f32 %v158, %v1007
    %v1013 = vmul.f32 %v159, %v1007
    %v1020 = vrot.slane %v1008, 3
    %v1021 = vrot.slane %v1009, 3
    %v1022 = vsel %vm250, %v1020, %v1021
    %v1023 = vrot.slane %v1010, 3
    %v1024 = vsel %vm250, %v1021, %v1023
    %v1025 = vrot.slane %v1011, 3
    %v1026 = vrot.slane %v1012, 3
    %v1027 = vsel %vm250, %v1025, %v1026
    %v1028 = vrot.slane %v1013, 3
    %v1029 = vsel %vm250, %v1026, %v1028
    %1030 = vrot.lane.b32.xlu0 %v1022, 125
    %v1031 = vpop.permute.xlu0 %1030
    %1032 = vrot.lane.b32.xlu0 %v1024, 125
    %v1033 = vpop.permute.xlu0 %1032
    %1034 = vrot.lane.b32.xlu0 %v1027, 125
    %v1035 = vpop.permute.xlu0 %1034
    %1036 = vrot.lane.b32.xlu0 %v1029, 125
    %v1037 = vpop.permute.xlu0 %1036
    %v1042 = vadd.f32 %v1002, %v1031
    %v1043 = vadd.f32 %v1003, %v1033
    %v1044 = vadd.f32 %v1004, %v1035
    %v1045 = vadd.f32 %v1005, %v1037
    %s1046 = sld [smem:[#allocation4 + $0x1f]]
    %v1047 = vstv %s1046
    %v1048 = vmul.f32 %v154, %v1047
    %v1049 = vmul.f32 %v155, %v1047
    %v1050 = vmul.f32 %v156, %v1047
    %v1051 = vmul.f32 %v157, %v1047
    %v1052 = vmul.f32 %v158, %v1047
    %v1053 = vmul.f32 %v159, %v1047
    %v1060 = vrot.slane %v1048, 4
    %v1061 = vrot.slane %v1049, 4
    %v1062 = vsel %vm283, %v1060, %v1061
    %v1063 = vrot.slane %v1050, 4
    %v1064 = vsel %vm283, %v1061, %v1063
    %v1065 = vrot.slane %v1051, 4
    %v1066 = vrot.slane %v1052, 4
    %v1067 = vsel %vm283, %v1065, %v1066
    %v1068 = vrot.slane %v1053, 4
    %v1069 = vsel %vm283, %v1066, %v1068
    %1070 = vrot.lane.b32.xlu0 %v1062, 125
    %v1071 = vpop.permute.xlu0 %1070
    %1072 = vrot.lane.b32.xlu0 %v1064, 125
    %v1073 = vpop.permute.xlu0 %1072
    %1074 = vrot.lane.b32.xlu0 %v1067, 125
    %v1075 = vpop.permute.xlu0 %1074
    %1076 = vrot.lane.b32.xlu0 %v1069, 125
    %v1077 = vpop.permute.xlu0 %1076
    %v1082 = vadd.f32 %v1042, %v1071
    %v1083 = vadd.f32 %v1043, %v1073
    %v1084 = vadd.f32 %v1044, %v1075
    %v1085 = vadd.f32 %v1045, %v1077
    %s1086 = sld [smem:[#allocation4 + $0x26]]
    %v1087 = vstv %s1086
    %v1088 = vmul.f32 %v154, %v1087
    %v1089 = vmul.f32 %v155, %v1087
    %v1090 = vmul.f32 %v156, %v1087
    %v1091 = vmul.f32 %v157, %v1087
    %v1092 = vmul.f32 %v158, %v1087
    %v1093 = vmul.f32 %v159, %v1087
    %v1100 = vrot.slane %v1088, 5
    %v1101 = vrot.slane %v1089, 5
    %v1102 = vsel %vm316, %v1100, %v1101
    %v1103 = vrot.slane %v1090, 5
    %v1104 = vsel %vm316, %v1101, %v1103
    %v1105 = vrot.slane %v1091, 5
    %v1106 = vrot.slane %v1092, 5
    %v1107 = vsel %vm316, %v1105, %v1106
    %v1108 = vrot.slane %v1093, 5
    %v1109 = vsel %vm316, %v1106, %v1108
    %1110 = vrot.lane.b32.xlu0 %v1102, 125
    %v1111 = vpop.permute.xlu0 %1110
    %1112 = vrot.lane.b32.xlu0 %v1104, 125
    %v1113 = vpop.permute.xlu0 %1112
    %1114 = vrot.lane.b32.xlu0 %v1107, 125
    %v1115 = vpop.permute.xlu0 %1114
    %1116 = vrot.lane.b32.xlu0 %v1109, 125
    %v1117 = vpop.permute.xlu0 %1116
    %v1122 = vadd.f32 %v1082, %v1111
    %v1123 = vadd.f32 %v1083, %v1113
    %v1124 = vadd.f32 %v1084, %v1115
    %v1125 = vadd.f32 %v1085, %v1117
    %s1126 = sld [smem:[#allocation4 + $0x2d]]
    %v1127 = vstv %s1126
    %v1128 = vmul.f32 %v154, %v1127
    %v1129 = vmul.f32 %v155, %v1127
    %v1130 = vmul.f32 %v156, %v1127
    %v1131 = vmul.f32 %v157, %v1127
    %v1132 = vmul.f32 %v158, %v1127
    %v1133 = vmul.f32 %v159, %v1127
    %v1140 = vrot.slane %v1128, 6
    %v1141 = vrot.slane %v1129, 6
    %v1142 = vsel %vm349, %v1140, %v1141
    %v1143 = vrot.slane %v1130, 6
    %v1144 = vsel %vm349, %v1141, %v1143
    %v1145 = vrot.slane %v1131, 6
    %v1146 = vrot.slane %v1132, 6
    %v1147 = vsel %vm349, %v1145, %v1146
    %v1148 = vrot.slane %v1133, 6
    %v1149 = vsel %vm349, %v1146, %v1148
    %1150 = vrot.lane.b32.xlu0 %v1142, 125
    %v1151 = vpop.permute.xlu0 %1150
    %1152 = vrot.lane.b32.xlu0 %v1144, 125
    %v1153 = vpop.permute.xlu0 %1152
    %1154 = vrot.lane.b32.xlu0 %v1147, 125
    %v1155 = vpop.permute.xlu0 %1154
    %1156 = vrot.lane.b32.xlu0 %v1149, 125
    %v1157 = vpop.permute.xlu0 %1156
    %v1162 = vadd.f32 %v1122, %v1151
    %v1163 = vadd.f32 %v1123, %v1153
    %v1164 = vadd.f32 %v1124, %v1155
    %v1165 = vadd.f32 %v1125, %v1157
    %s1166 = sld [smem:[#allocation4 + $0x4]]
    %v1167 = vstv %s1166
    %v1168 = vmul.f32 %v154, %v1167
    %v1169 = vmul.f32 %v155, %v1167
    %v1170 = vmul.f32 %v157, %v1167
    %v1171 = vmul.f32 %v158, %v1167
    %1176 = vrot.lane.b32.xlu0 %v1168, 124
    %v1177 = vpop.permute.xlu0 %1176
    %1178 = vrot.lane.b32.xlu0 %v1169, 124
    %v1179 = vpop.permute.xlu0 %1178
    %1180 = vrot.lane.b32.xlu0 %v1170, 124
    %v1181 = vpop.permute.xlu0 %1180
    %1182 = vrot.lane.b32.xlu0 %v1171, 124
    %v1183 = vpop.permute.xlu0 %1182
    %v1188 = vadd.f32 %v1162, %v1177
    %v1189 = vadd.f32 %v1163, %v1179
    %v1190 = vadd.f32 %v1164, %v1181
    %v1191 = vadd.f32 %v1165, %v1183
    %s1192 = sld [smem:[#allocation4 + $0xb]]
    %v1193 = vstv %s1192
    %v1194 = vmul.f32 %v154, %v1193
    %v1195 = vmul.f32 %v155, %v1193
    %v1196 = vmul.f32 %v156, %v1193
    %v1197 = vmul.f32 %v157, %v1193
    %v1198 = vmul.f32 %v158, %v1193
    %v1199 = vmul.f32 %v159, %v1193
    %v1206 = vrot.slane %v1194, 1
    %v1207 = vrot.slane %v1195, 1
    %v1208 = vsel %vm184, %v1206, %v1207
    %v1209 = vrot.slane %v1196, 1
    %v1210 = vsel %vm184, %v1207, %v1209
    %v1211 = vrot.slane %v1197, 1
    %v1212 = vrot.slane %v1198, 1
    %v1213 = vsel %vm184, %v1211, %v1212
    %v1214 = vrot.slane %v1199, 1
    %v1215 = vsel %vm184, %v1212, %v1214
    %1216 = vrot.lane.b32.xlu0 %v1208, 124
    %v1217 = vpop.permute.xlu0 %1216
    %1218 = vrot.lane.b32.xlu0 %v1210, 124
    %v1219 = vpop.permute.xlu0 %1218
    %1220 = vrot.lane.b32.xlu0 %v1213, 124
    %v1221 = vpop.permute.xlu0 %1220
    %1222 = vrot.lane.b32.xlu0 %v1215, 124
    %v1223 = vpop.permute.xlu0 %1222
    %v1228 = vadd.f32 %v1188, %v1217
    %v1229 = vadd.f32 %v1189, %v1219
    %v1230 = vadd.f32 %v1190, %v1221
    %v1231 = vadd.f32 %v1191, %v1223
    %s1232 = sld [smem:[#allocation4 + $0x12]]
    %v1233 = vstv %s1232
    %v1234 = vmul.f32 %v154, %v1233
    %v1235 = vmul.f32 %v155, %v1233
    %v1236 = vmul.f32 %v156, %v1233
    %v1237 = vmul.f32 %v157, %v1233
    %v1238 = vmul.f32 %v158, %v1233
    %v1239 = vmul.f32 %v159, %v1233
    %v1246 = vrot.slane %v1234, 2
    %v1247 = vrot.slane %v1235, 2
    %v1248 = vsel %vm217, %v1246, %v1247
    %v1249 = vrot.slane %v1236, 2
    %v1250 = vsel %vm217, %v1247, %v1249
    %v1251 = vrot.slane %v1237, 2
    %v1252 = vrot.slane %v1238, 2
    %v1253 = vsel %vm217, %v1251, %v1252
    %v1254 = vrot.slane %v1239, 2
    %v1255 = vsel %vm217, %v1252, %v1254
    %1256 = vrot.lane.b32.xlu0 %v1248, 124
    %v1257 = vpop.permute.xlu0 %1256
    %1258 = vrot.lane.b32.xlu0 %v1250, 124
    %v1259 = vpop.permute.xlu0 %1258
    %1260 = vrot.lane.b32.xlu0 %v1253, 124
    %v1261 = vpop.permute.xlu0 %1260
    %1262 = vrot.lane.b32.xlu0 %v1255, 124
    %v1263 = vpop.permute.xlu0 %1262
    %v1268 = vadd.f32 %v1228, %v1257
    %v1269 = vadd.f32 %v1229, %v1259
    %v1270 = vadd.f32 %v1230, %v1261
    %v1271 = vadd.f32 %v1231, %v1263
    %s1272 = sld [smem:[#allocation4 + $0x19]]
    %v1273 = vstv %s1272
    %v1274 = vmul.f32 %v154, %v1273
    %v1275 = vmul.f32 %v155, %v1273
    %v1276 = vmul.f32 %v156, %v1273
    %v1277 = vmul.f32 %v157, %v1273
    %v1278 = vmul.f32 %v158, %v1273
    %v1279 = vmul.f32 %v159, %v1273
    %v1286 = vrot.slane %v1274, 3
    %v1287 = vrot.slane %v1275, 3
    %v1288 = vsel %vm250, %v1286, %v1287
    %v1289 = vrot.slane %v1276, 3
    %v1290 = vsel %vm250, %v1287, %v1289
    %v1291 = vrot.slane %v1277, 3
    %v1292 = vrot.slane %v1278, 3
    %v1293 = vsel %vm250, %v1291, %v1292
    %v1294 = vrot.slane %v1279, 3
    %v1295 = vsel %vm250, %v1292, %v1294
    %1296 = vrot.lane.b32.xlu0 %v1288, 124
    %v1297 = vpop.permute.xlu0 %1296
    %1298 = vrot.lane.b32.xlu0 %v1290, 124
    %v1299 = vpop.permute.xlu0 %1298
    %1300 = vrot.lane.b32.xlu0 %v1293, 124
    %v1301 = vpop.permute.xlu0 %1300
    %1302 = vrot.lane.b32.xlu0 %v1295, 124
    %v1303 = vpop.permute.xlu0 %1302
    %v1308 = vadd.f32 %v1268, %v1297
    %v1309 = vadd.f32 %v1269, %v1299
    %v1310 = vadd.f32 %v1270, %v1301
    %v1311 = vadd.f32 %v1271, %v1303
    %s1312 = sld [smem:[#allocation4 + $0x20]]
    %v1313 = vstv %s1312
    %v1314 = vmul.f32 %v154, %v1313
    %v1315 = vmul.f32 %v155, %v1313
    %v1316 = vmul.f32 %v156, %v1313
    %v1317 = vmul.f32 %v157, %v1313
    %v1318 = vmul.f32 %v158, %v1313
    %v1319 = vmul.f32 %v159, %v1313
    %v1326 = vrot.slane %v1314, 4
    %v1327 = vrot.slane %v1315, 4
    %v1328 = vsel %vm283, %v1326, %v1327
    %v1329 = vrot.slane %v1316, 4
    %v1330 = vsel %vm283, %v1327, %v1329
    %v1331 = vrot.slane %v1317, 4
    %v1332 = vrot.slane %v1318, 4
    %v1333 = vsel %vm283, %v1331, %v1332
    %v1334 = vrot.slane %v1319, 4
    %v1335 = vsel %vm283, %v1332, %v1334
    %1336 = vrot.lane.b32.xlu0 %v1328, 124
    %v1337 = vpop.permute.xlu0 %1336
    %1338 = vrot.lane.b32.xlu0 %v1330, 124
    %v1339 = vpop.permute.xlu0 %1338
    %1340 = vrot.lane.b32.xlu0 %v1333, 124
    %v1341 = vpop.permute.xlu0 %1340
    %1342 = vrot.lane.b32.xlu0 %v1335, 124
    %v1343 = vpop.permute.xlu0 %1342
    %v1348 = vadd.f32 %v1308, %v1337
    %v1349 = vadd.f32 %v1309, %v1339
    %v1350 = vadd.f32 %v1310, %v1341
    %v1351 = vadd.f32 %v1311, %v1343
    %s1352 = sld [smem:[#allocation4 + $0x27]]
    %v1353 = vstv %s1352
    %v1354 = vmul.f32 %v154, %v1353
    %v1355 = vmul.f32 %v155, %v1353
    %v1356 = vmul.f32 %v156, %v1353
    %v1357 = vmul.f32 %v157, %v1353
    %v1358 = vmul.f32 %v158, %v1353
    %v1359 = vmul.f32 %v159, %v1353
    %v1366 = vrot.slane %v1354, 5
    %v1367 = vrot.slane %v1355, 5
    %v1368 = vsel %vm316, %v1366, %v1367
    %v1369 = vrot.slane %v1356, 5
    %v1370 = vsel %vm316, %v1367, %v1369
    %v1371 = vrot.slane %v1357, 5
    %v1372 = vrot.slane %v1358, 5
    %v1373 = vsel %vm316, %v1371, %v1372
    %v1374 = vrot.slane %v1359, 5
    %v1375 = vsel %vm316, %v1372, %v1374
    %1376 = vrot.lane.b32.xlu0 %v1368, 124
    %v1377 = vpop.permute.xlu0 %1376
    %1378 = vrot.lane.b32.xlu0 %v1370, 124
    %v1379 = vpop.permute.xlu0 %1378
    %1380 = vrot.lane.b32.xlu0 %v1373, 124
    %v1381 = vpop.permute.xlu0 %1380
    %1382 = vrot.lane.b32.xlu0 %v1375, 124
    %v1383 = vpop.permute.xlu0 %1382
    %v1388 = vadd.f32 %v1348, %v1377
    %v1389 = vadd.f32 %v1349, %v1379
    %v1390 = vadd.f32 %v1350, %v1381
    %v1391 = vadd.f32 %v1351, %v1383
    %s1392 = sld [smem:[#allocation4 + $0x2e]]
    %v1393 = vstv %s1392
    %v1394 = vmul.f32 %v154, %v1393
    %v1395 = vmul.f32 %v155, %v1393
    %v1396 = vmul.f32 %v156, %v1393
    %v1397 = vmul.f32 %v157, %v1393
    %v1398 = vmul.f32 %v158, %v1393
    %v1399 = vmul.f32 %v159, %v1393
    %v1406 = vrot.slane %v1394, 6
    %v1407 = vrot.slane %v1395, 6
    %v1408 = vsel %vm349, %v1406, %v1407
    %v1409 = vrot.slane %v1396, 6
    %v1410 = vsel %vm349, %v1407, %v1409
    %v1411 = vrot.slane %v1397, 6
    %v1412 = vrot.slane %v1398, 6
    %v1413 = vsel %vm349, %v1411, %v1412
    %v1414 = vrot.slane %v1399, 6
    %v1415 = vsel %vm349, %v1412, %v1414
    %1416 = vrot.lane.b32.xlu0 %v1408, 124
    %v1417 = vpop.permute.xlu0 %1416
    %1418 = vrot.lane.b32.xlu0 %v1410, 124
    %v1419 = vpop.permute.xlu0 %1418
    %1420 = vrot.lane.b32.xlu0 %v1413, 124
    %v1421 = vpop.permute.xlu0 %1420
    %1422 = vrot.lane.b32.xlu0 %v1415, 124
    %v1423 = vpop.permute.xlu0 %1422
    %v1428 = vadd.f32 %v1388, %v1417
    %v1429 = vadd.f32 %v1389, %v1419
    %v1430 = vadd.f32 %v1390, %v1421
    %v1431 = vadd.f32 %v1391, %v1423
    %s1432 = sld [smem:[#allocation4 + $0x5]]
    %v1433 = vstv %s1432
    %v1434 = vmul.f32 %v154, %v1433
    %v1435 = vmul.f32 %v155, %v1433
    %v1436 = vmul.f32 %v157, %v1433
    %v1437 = vmul.f32 %v158, %v1433
    %1442 = vrot.lane.b32.xlu0 %v1434, 123
    %v1443 = vpop.permute.xlu0 %1442
    %1444 = vrot.lane.b32.xlu0 %v1435, 123
    %v1445 = vpop.permute.xlu0 %1444
    %1446 = vrot.lane.b32.xlu0 %v1436, 123
    %v1447 = vpop.permute.xlu0 %1446
    %1448 = vrot.lane.b32.xlu0 %v1437, 123
    %v1449 = vpop.permute.xlu0 %1448
    %v1454 = vadd.f32 %v1428, %v1443
    %v1455 = vadd.f32 %v1429, %v1445
    %v1456 = vadd.f32 %v1430, %v1447
    %v1457 = vadd.f32 %v1431, %v1449
    %s1458 = sld [smem:[#allocation4 + $0xc]]
    %v1459 = vstv %s1458
    %v1460 = vmul.f32 %v154, %v1459
    %v1461 = vmul.f32 %v155, %v1459
    %v1462 = vmul.f32 %v156, %v1459
    %v1463 = vmul.f32 %v157, %v1459
    %v1464 = vmul.f32 %v158, %v1459
    %v1465 = vmul.f32 %v159, %v1459
    %v1472 = vrot.slane %v1460, 1
    %v1473 = vrot.slane %v1461, 1
    %v1474 = vsel %vm184, %v1472, %v1473
    %v1475 = vrot.slane %v1462, 1
    %v1476 = vsel %vm184, %v1473, %v1475
    %v1477 = vrot.slane %v1463, 1
    %v1478 = vrot.slane %v1464, 1
    %v1479 = vsel %vm184, %v1477, %v1478
    %v1480 = vrot.slane %v1465, 1
    %v1481 = vsel %vm184, %v1478, %v1480
    %1482 = vrot.lane.b32.xlu0 %v1474, 123
    %v1483 = vpop.permute.xlu0 %1482
    %1484 = vrot.lane.b32.xlu0 %v1476, 123
    %v1485 = vpop.permute.xlu0 %1484
    %1486 = vrot.lane.b32.xlu0 %v1479, 123
    %v1487 = vpop.permute.xlu0 %1486
    %1488 = vrot.lane.b32.xlu0 %v1481, 123
    %v1489 = vpop.permute.xlu0 %1488
    %v1494 = vadd.f32 %v1454, %v1483
    %v1495 = vadd.f32 %v1455, %v1485
    %v1496 = vadd.f32 %v1456, %v1487
    %v1497 = vadd.f32 %v1457, %v1489
    %s1498 = sld [smem:[#allocation4 + $0x13]]
    %v1499 = vstv %s1498
    %v1500 = vmul.f32 %v154, %v1499
    %v1501 = vmul.f32 %v155, %v1499
    %v1502 = vmul.f32 %v156, %v1499
    %v1503 = vmul.f32 %v157, %v1499
    %v1504 = vmul.f32 %v158, %v1499
    %v1505 = vmul.f32 %v159, %v1499
    %v1512 = vrot.slane %v1500, 2
    %v1513 = vrot.slane %v1501, 2
    %v1514 = vsel %vm217, %v1512, %v1513
    %v1515 = vrot.slane %v1502, 2
    %v1516 = vsel %vm217, %v1513, %v1515
    %v1517 = vrot.slane %v1503, 2
    %v1518 = vrot.slane %v1504, 2
    %v1519 = vsel %vm217, %v1517, %v1518
    %v1520 = vrot.slane %v1505, 2
    %v1521 = vsel %vm217, %v1518, %v1520
    %1522 = vrot.lane.b32.xlu0 %v1514, 123
    %v1523 = vpop.permute.xlu0 %1522
    %1524 = vrot.lane.b32.xlu0 %v1516, 123
    %v1525 = vpop.permute.xlu0 %1524
    %1526 = vrot.lane.b32.xlu0 %v1519, 123
    %v1527 = vpop.permute.xlu0 %1526
    %1528 = vrot.lane.b32.xlu0 %v1521, 123
    %v1529 = vpop.permute.xlu0 %1528
    %v1534 = vadd.f32 %v1494, %v1523
    %v1535 = vadd.f32 %v1495, %v1525
    %v1536 = vadd.f32 %v1496, %v1527
    %v1537 = vadd.f32 %v1497, %v1529
    %s1538 = sld [smem:[#allocation4 + $0x1a]]
    %v1539 = vstv %s1538
    %v1540 = vmul.f32 %v154, %v1539
    %v1541 = vmul.f32 %v155, %v1539
    %v1542 = vmul.f32 %v156, %v1539
    %v1543 = vmul.f32 %v157, %v1539
    %v1544 = vmul.f32 %v158, %v1539
    %v1545 = vmul.f32 %v159, %v1539
    %v1552 = vrot.slane %v1540, 3
    %v1553 = vrot.slane %v1541, 3
    %v1554 = vsel %vm250, %v1552, %v1553
    %v1555 = vrot.slane %v1542, 3
    %v1556 = vsel %vm250, %v1553, %v1555
    %v1557 = vrot.slane %v1543, 3
    %v1558 = vrot.slane %v1544, 3
    %v1559 = vsel %vm250, %v1557, %v1558
    %v1560 = vrot.slane %v1545, 3
    %v1561 = vsel %vm250, %v1558, %v1560
    %1562 = vrot.lane.b32.xlu0 %v1554, 123
    %v1563 = vpop.permute.xlu0 %1562
    %1564 = vrot.lane.b32.xlu0 %v1556, 123
    %v1565 = vpop.permute.xlu0 %1564
    %1566 = vrot.lane.b32.xlu0 %v1559, 123
    %v1567 = vpop.permute.xlu0 %1566
    %1568 = vrot.lane.b32.xlu0 %v1561, 123
    %v1569 = vpop.permute.xlu0 %1568
    %v1574 = vadd.f32 %v1534, %v1563
    %v1575 = vadd.f32 %v1535, %v1565
    %v1576 = vadd.f32 %v1536, %v1567
    %v1577 = vadd.f32 %v1537, %v1569
    %s1578 = sld [smem:[#allocation4 + $0x21]]
    %v1579 = vstv %s1578
    %v1580 = vmul.f32 %v154, %v1579
    %v1581 = vmul.f32 %v155, %v1579
    %v1582 = vmul.f32 %v156, %v1579
    %v1583 = vmul.f32 %v157, %v1579
    %v1584 = vmul.f32 %v158, %v1579
    %v1585 = vmul.f32 %v159, %v1579
    %v1592 = vrot.slane %v1580, 4
    %v1593 = vrot.slane %v1581, 4
    %v1594 = vsel %vm283, %v1592, %v1593
    %v1595 = vrot.slane %v1582, 4
    %v1596 = vsel %vm283, %v1593, %v1595
    %v1597 = vrot.slane %v1583, 4
    %v1598 = vrot.slane %v1584, 4
    %v1599 = vsel %vm283, %v1597, %v1598
    %v1600 = vrot.slane %v1585, 4
    %v1601 = vsel %vm283, %v1598, %v1600
    %1602 = vrot.lane.b32.xlu0 %v1594, 123
    %v1603 = vpop.permute.xlu0 %1602
    %1604 = vrot.lane.b32.xlu0 %v1596, 123
    %v1605 = vpop.permute.xlu0 %1604
    %1606 = vrot.lane.b32.xlu0 %v1599, 123
    %v1607 = vpop.permute.xlu0 %1606
    %1608 = vrot.lane.b32.xlu0 %v1601, 123
    %v1609 = vpop.permute.xlu0 %1608
    %v1614 = vadd.f32 %v1574, %v1603
    %v1615 = vadd.f32 %v1575, %v1605
    %v1616 = vadd.f32 %v1576, %v1607
    %v1617 = vadd.f32 %v1577, %v1609
    %s1618 = sld [smem:[#allocation4 + $0x28]]
    %v1619 = vstv %s1618
    %v1620 = vmul.f32 %v154, %v1619
    %v1621 = vmul.f32 %v155, %v1619
    %v1622 = vmul.f32 %v156, %v1619
    %v1623 = vmul.f32 %v157, %v1619
    %v1624 = vmul.f32 %v158, %v1619
    %v1625 = vmul.f32 %v159, %v1619
    %v1632 = vrot.slane %v1620, 5
    %v1633 = vrot.slane %v1621, 5
    %v1634 = vsel %vm316, %v1632, %v1633
    %v1635 = vrot.slane %v1622, 5
    %v1636 = vsel %vm316, %v1633, %v1635
    %v1637 = vrot.slane %v1623, 5
    %v1638 = vrot.slane %v1624, 5
    %v1639 = vsel %vm316, %v1637, %v1638
    %v1640 = vrot.slane %v1625, 5
    %v1641 = vsel %vm316, %v1638, %v1640
    %1642 = vrot.lane.b32.xlu0 %v1634, 123
    %v1643 = vpop.permute.xlu0 %1642
    %1644 = vrot.lane.b32.xlu0 %v1636, 123
    %v1645 = vpop.permute.xlu0 %1644
    %1646 = vrot.lane.b32.xlu0 %v1639, 123
    %v1647 = vpop.permute.xlu0 %1646
    %1648 = vrot.lane.b32.xlu0 %v1641, 123
    %v1649 = vpop.permute.xlu0 %1648
    %v1654 = vadd.f32 %v1614, %v1643
    %v1655 = vadd.f32 %v1615, %v1645
    %v1656 = vadd.f32 %v1616, %v1647
    %v1657 = vadd.f32 %v1617, %v1649
    %s1658 = sld [smem:[#allocation4 + $0x2f]]
    %v1659 = vstv %s1658
    %v1660 = vmul.f32 %v154, %v1659
    %v1661 = vmul.f32 %v155, %v1659
    %v1662 = vmul.f32 %v156, %v1659
    %v1663 = vmul.f32 %v157, %v1659
    %v1664 = vmul.f32 %v158, %v1659
    %v1665 = vmul.f32 %v159, %v1659
    %v1672 = vrot.slane %v1660, 6
    %v1673 = vrot.slane %v1661, 6
    %v1674 = vsel %vm349, %v1672, %v1673
    %v1675 = vrot.slane %v1662, 6
    %v1676 = vsel %vm349, %v1673, %v1675
    %v1677 = vrot.slane %v1663, 6
    %v1678 = vrot.slane %v1664, 6
    %v1679 = vsel %vm349, %v1677, %v1678
    %v1680 = vrot.slane %v1665, 6
    %v1681 = vsel %vm349, %v1678, %v1680
    %1682 = vrot.lane.b32.xlu0 %v1674, 123
    %v1683 = vpop.permute.xlu0 %1682
    %1684 = vrot.lane.b32.xlu0 %v1676, 123
    %v1685 = vpop.permute.xlu0 %1684
    %1686 = vrot.lane.b32.xlu0 %v1679, 123
    %v1687 = vpop.permute.xlu0 %1686
    %1688 = vrot.lane.b32.xlu0 %v1681, 123
    %v1689 = vpop.permute.xlu0 %1688
    %v1694 = vadd.f32 %v1654, %v1683
    %v1695 = vadd.f32 %v1655, %v1685
    %v1696 = vadd.f32 %v1656, %v1687
    %v1697 = vadd.f32 %v1657, %v1689
    %s1698 = sld [smem:[#allocation4 + $0x6]]
    %v1699 = vstv %s1698
    %v1700 = vmul.f32 %v154, %v1699
    %v1701 = vmul.f32 %v155, %v1699
    %v1702 = vmul.f32 %v157, %v1699
    %v1703 = vmul.f32 %v158, %v1699
    %1708 = vrot.lane.b32.xlu0 %v1700, 122
    %v1709 = vpop.permute.xlu0 %1708
    %1710 = vrot.lane.b32.xlu0 %v1701, 122
    %v1711 = vpop.permute.xlu0 %1710
    %1712 = vrot.lane.b32.xlu0 %v1702, 122
    %v1713 = vpop.permute.xlu0 %1712
    %1714 = vrot.lane.b32.xlu0 %v1703, 122
    %v1715 = vpop.permute.xlu0 %1714
    %v1720 = vadd.f32 %v1694, %v1709
    %v1721 = vadd.f32 %v1695, %v1711
    %v1722 = vadd.f32 %v1696, %v1713
    %v1723 = vadd.f32 %v1697, %v1715
    %s1724 = sld [smem:[#allocation4 + $0xd]]
    %v1725 = vstv %s1724
    %v1726 = vmul.f32 %v154, %v1725
    %v1727 = vmul.f32 %v155, %v1725
    %v1728 = vmul.f32 %v156, %v1725
    %v1729 = vmul.f32 %v157, %v1725
    %v1730 = vmul.f32 %v158, %v1725
    %v1731 = vmul.f32 %v159, %v1725
    %v1738 = vrot.slane %v1726, 1
    %v1739 = vrot.slane %v1727, 1
    %v1740 = vsel %vm184, %v1738, %v1739
    %v1741 = vrot.slane %v1728, 1
    %v1742 = vsel %vm184, %v1739, %v1741
    %v1743 = vrot.slane %v1729, 1
    %v1744 = vrot.slane %v1730, 1
    %v1745 = vsel %vm184, %v1743, %v1744
    %v1746 = vrot.slane %v1731, 1
    %v1747 = vsel %vm184, %v1744, %v1746
    %1748 = vrot.lane.b32.xlu0 %v1740, 122
    %v1749 = vpop.permute.xlu0 %1748
    %1750 = vrot.lane.b32.xlu0 %v1742, 122
    %v1751 = vpop.permute.xlu0 %1750
    %1752 = vrot.lane.b32.xlu0 %v1745, 122
    %v1753 = vpop.permute.xlu0 %1752
    %1754 = vrot.lane.b32.xlu0 %v1747, 122
    %v1755 = vpop.permute.xlu0 %1754
    %v1760 = vadd.f32 %v1720, %v1749
    %v1761 = vadd.f32 %v1721, %v1751
    %v1762 = vadd.f32 %v1722, %v1753
    %v1763 = vadd.f32 %v1723, %v1755
    %s1764 = sld [smem:[#allocation4 + $0x14]]
    %v1765 = vstv %s1764
    %v1766 = vmul.f32 %v154, %v1765
    %v1767 = vmul.f32 %v155, %v1765
    %v1768 = vmul.f32 %v156, %v1765
    %v1769 = vmul.f32 %v157, %v1765
    %v1770 = vmul.f32 %v158, %v1765
    %v1771 = vmul.f32 %v159, %v1765
    %v1778 = vrot.slane %v1766, 2
    %v1779 = vrot.slane %v1767, 2
    %v1780 = vsel %vm217, %v1778, %v1779
    %v1781 = vrot.slane %v1768, 2
    %v1782 = vsel %vm217, %v1779, %v1781
    %v1783 = vrot.slane %v1769, 2
    %v1784 = vrot.slane %v1770, 2
    %v1785 = vsel %vm217, %v1783, %v1784
    %v1786 = vrot.slane %v1771, 2
    %v1787 = vsel %vm217, %v1784, %v1786
    %1788 = vrot.lane.b32.xlu0 %v1780, 122
    %v1789 = vpop.permute.xlu0 %1788
    %1790 = vrot.lane.b32.xlu0 %v1782, 122
    %v1791 = vpop.permute.xlu0 %1790
    %1792 = vrot.lane.b32.xlu0 %v1785, 122
    %v1793 = vpop.permute.xlu0 %1792
    %1794 = vrot.lane.b32.xlu0 %v1787, 122
    %v1795 = vpop.permute.xlu0 %1794
    %v1800 = vadd.f32 %v1760, %v1789
    %v1801 = vadd.f32 %v1761, %v1791
    %v1802 = vadd.f32 %v1762, %v1793
    %v1803 = vadd.f32 %v1763, %v1795
    %s1804 = sld [smem:[#allocation4 + $0x1b]]
    %v1805 = vstv %s1804
    %v1806 = vmul.f32 %v154, %v1805
    %v1807 = vmul.f32 %v155, %v1805
    %v1808 = vmul.f32 %v156, %v1805
    %v1809 = vmul.f32 %v157, %v1805
    %v1810 = vmul.f32 %v158, %v1805
    %v1811 = vmul.f32 %v159, %v1805
    %v1818 = vrot.slane %v1806, 3
    %v1819 = vrot.slane %v1807, 3
    %v1820 = vsel %vm250, %v1818, %v1819
    %v1821 = vrot.slane %v1808, 3
    %v1822 = vsel %vm250, %v1819, %v1821
    %v1823 = vrot.slane %v1809, 3
    %v1824 = vrot.slane %v1810, 3
    %v1825 = vsel %vm250, %v1823, %v1824
    %v1826 = vrot.slane %v1811, 3
    %v1827 = vsel %vm250, %v1824, %v1826
    %1828 = vrot.lane.b32.xlu0 %v1820, 122
    %v1829 = vpop.permute.xlu0 %1828
    %1830 = vrot.lane.b32.xlu0 %v1822, 122
    %v1831 = vpop.permute.xlu0 %1830
    %1832 = vrot.lane.b32.xlu0 %v1825, 122
    %v1833 = vpop.permute.xlu0 %1832
    %1834 = vrot.lane.b32.xlu0 %v1827, 122
    %v1835 = vpop.permute.xlu0 %1834
    %v1840 = vadd.f32 %v1800, %v1829
    %v1841 = vadd.f32 %v1801, %v1831
    %v1842 = vadd.f32 %v1802, %v1833
    %v1843 = vadd.f32 %v1803, %v1835
    %s1844 = sld [smem:[#allocation4 + $0x22]]
    %v1845 = vstv %s1844
    %v1846 = vmul.f32 %v154, %v1845
    %v1847 = vmul.f32 %v155, %v1845
    %v1848 = vmul.f32 %v156, %v1845
    %v1849 = vmul.f32 %v157, %v1845
    %v1850 = vmul.f32 %v158, %v1845
    %v1851 = vmul.f32 %v159, %v1845
    %v1858 = vrot.slane %v1846, 4
    %v1859 = vrot.slane %v1847, 4
    %v1860 = vsel %vm283, %v1858, %v1859
    %v1861 = vrot.slane %v1848, 4
    %v1862 = vsel %vm283, %v1859, %v1861
    %v1863 = vrot.slane %v1849, 4
    %v1864 = vrot.slane %v1850, 4
    %v1865 = vsel %vm283, %v1863, %v1864
    %v1866 = vrot.slane %v1851, 4
    %v1867 = vsel %vm283, %v1864, %v1866
    %1868 = vrot.lane.b32.xlu0 %v1860, 122
    %v1869 = vpop.permute.xlu0 %1868
    %1870 = vrot.lane.b32.xlu0 %v1862, 122
    %v1871 = vpop.permute.xlu0 %1870
    %1872 = vrot.lane.b32.xlu0 %v1865, 122
    %v1873 = vpop.permute.xlu0 %1872
    %1874 = vrot.lane.b32.xlu0 %v1867, 122
    %v1875 = vpop.permute.xlu0 %1874
    %v1880 = vadd.f32 %v1840, %v1869
    %v1881 = vadd.f32 %v1841, %v1871
    %v1882 = vadd.f32 %v1842, %v1873
    %v1883 = vadd.f32 %v1843, %v1875
    %s1884 = sld [smem:[#allocation4 + $0x29]]
    %v1885 = vstv %s1884
    %v1886 = vmul.f32 %v154, %v1885
    %v1887 = vmul.f32 %v155, %v1885
    %v1888 = vmul.f32 %v156, %v1885
    %v1889 = vmul.f32 %v157, %v1885
    %v1890 = vmul.f32 %v158, %v1885
    %v1891 = vmul.f32 %v159, %v1885
    %v1898 = vrot.slane %v1886, 5
    %v1899 = vrot.slane %v1887, 5
    %v1900 = vsel %vm316, %v1898, %v1899
    %v1901 = vrot.slane %v1888, 5
    %v1902 = vsel %vm316, %v1899, %v1901
    %v1903 = vrot.slane %v1889, 5
    %v1904 = vrot.slane %v1890, 5
    %v1905 = vsel %vm316, %v1903, %v1904
    %v1906 = vrot.slane %v1891, 5
    %v1907 = vsel %vm316, %v1904, %v1906
    %1908 = vrot.lane.b32.xlu0 %v1900, 122
    %v1909 = vpop.permute.xlu0 %1908
    %1910 = vrot.lane.b32.xlu0 %v1902, 122
    %v1911 = vpop.permute.xlu0 %1910
    %1912 = vrot.lane.b32.xlu0 %v1905, 122
    %v1913 = vpop.permute.xlu0 %1912
    %1914 = vrot.lane.b32.xlu0 %v1907, 122
    %v1915 = vpop.permute.xlu0 %1914
    %v1920 = vadd.f32 %v1880, %v1909
    %v1921 = vadd.f32 %v1881, %v1911
    %v1922 = vadd.f32 %v1882, %v1913
    %v1923 = vadd.f32 %v1883, %v1915
    %s1924 = sld [smem:[#allocation4 + $0x30]]
    %v1925 = vstv %s1924
    %v1926 = vmul.f32 %v154, %v1925
    %v1927 = vmul.f32 %v155, %v1925
    %v1928 = vmul.f32 %v156, %v1925
    %v1929 = vmul.f32 %v157, %v1925
    %v1930 = vmul.f32 %v158, %v1925
    %v1931 = vmul.f32 %v159, %v1925
    %v1938 = vrot.slane %v1926, 6
    %v1939 = vrot.slane %v1927, 6
    %v1940 = vsel %vm349, %v1938, %v1939
    %v1941 = vrot.slane %v1928, 6
    %v1942 = vsel %vm349, %v1939, %v1941
    %v1943 = vrot.slane %v1929, 6
    %v1944 = vrot.slane %v1930, 6
    %v1945 = vsel %vm349, %v1943, %v1944
    %v1946 = vrot.slane %v1931, 6
    %v1947 = vsel %vm349, %v1944, %v1946
    %1948 = vrot.lane.b32.xlu0 %v1940, 122
    %v1949 = vpop.permute.xlu0 %1948
    %1950 = vrot.lane.b32.xlu0 %v1942, 122
    %v1951 = vpop.permute.xlu0 %1950
    %1952 = vrot.lane.b32.xlu0 %v1945, 122
    %v1953 = vpop.permute.xlu0 %1952
    %1954 = vrot.lane.b32.xlu0 %v1947, 122
    %v1955 = vpop.permute.xlu0 %1954
    %v1960 = vadd.f32 %v1920, %v1949
    %v1961 = vadd.f32 %v1921, %v1951
    %v1962 = vadd.f32 %v1922, %v1953
    %v1963 = vadd.f32 %v1923, %v1955
    %v1964 = vld [vmem:[%s147] sm:$0xff]
    %v1965 = vld [vmem:[%s147 + $0x8] sm:$0xff]
    %v1966 = vld [vmem:[%s147 + $0x10] sm:$0x3f]
    %v1967 = vld [vmem:[%s147 + $0x18] sm:$0xff]
    %v1968 = vld [vmem:[%s147 + $0x20] sm:$0xff]
    %v1969 = vld [vmem:[%s147 + $0x28] sm:$0x3f]
    %s1970 = sld [smem:[#allocation4 + $0x31]]
    %v1971 = vstv %s1970
    %v1972 = vmul.f32 %v1964, %v1971
    %v1973 = vmul.f32 %v1965, %v1971
    %v1974 = vmul.f32 %v1967, %v1971
    %v1975 = vmul.f32 %v1968, %v1971
    %v1976 = vadd.f32 %v1960, %v1972
    %v1977 = vadd.f32 %v1961, %v1973
    %v1978 = vadd.f32 %v1962, %v1974
    %v1979 = vadd.f32 %v1963, %v1975
    %s1980 = sld [smem:[#allocation4 + $0x38]]
    %v1981 = vstv %s1980
    %v1982 = vmul.f32 %v1964, %v1981
    %v1983 = vmul.f32 %v1965, %v1981
    %v1984 = vmul.f32 %v1966, %v1981
    %v1985 = vmul.f32 %v1967, %v1981
    %v1986 = vmul.f32 %v1968, %v1981
    %v1987 = vmul.f32 %v1969, %v1981
    %v1994 = vrot.slane %v1982, 1
    %v1995 = vrot.slane %v1983, 1
    %v1996 = vsel %vm184, %v1994, %v1995
    %v1997 = vrot.slane %v1984, 1
    %v1998 = vsel %vm184, %v1995, %v1997
    %v1999 = vrot.slane %v1985, 1
    %v2000 = vrot.slane %v1986, 1
    %v2001 = vsel %vm184, %v1999, %v2000
    %v2002 = vrot.slane %v1987, 1
    %v2003 = vsel %vm184, %v2000, %v2002
    %v2008 = vadd.f32 %v1976, %v1996
    %v2009 = vadd.f32 %v1977, %v1998
    %v2010 = vadd.f32 %v1978, %v2001
    %v2011 = vadd.f32 %v1979, %v2003
    %s2012 = sld [smem:[#allocation4 + $0x3f]]
    %v2013 = vstv %s2012
    %v2014 = vmul.f32 %v1964, %v2013
    %v2015 = vmul.f32 %v1965, %v2013
    %v2016 = vmul.f32 %v1966, %v2013
    %v2017 = vmul.f32 %v1967, %v2013
    %v2018 = vmul.f32 %v1968, %v2013
    %v2019 = vmul.f32 %v1969, %v2013
    %v2026 = vrot.slane %v2014, 2
    %v2027 = vrot.slane %v2015, 2
    %v2028 = vsel %vm217, %v2026, %v2027
    %v2029 = vrot.slane %v2016, 2
    %v2030 = vsel %vm217, %v2027, %v2029
    %v2031 = vrot.slane %v2017, 2
    %v2032 = vrot.slane %v2018, 2
    %v2033 = vsel %vm217, %v2031, %v2032
    %v2034 = vrot.slane %v2019, 2
    %v2035 = vsel %vm217, %v2032, %v2034
    %v2040 = vadd.f32 %v2008, %v2028
    %v2041 = vadd.f32 %v2009, %v2030
    %v2042 = vadd.f32 %v2010, %v2033
    %v2043 = vadd.f32 %v2011, %v2035
    %s2044 = sld [smem:[#allocation4 + $0x46]]
    %v2045 = vstv %s2044
    %v2046 = vmul.f32 %v1964, %v2045
    %v2047 = vmul.f32 %v1965, %v2045
    %v2048 = vmul.f32 %v1966, %v2045
    %v2049 = vmul.f32 %v1967, %v2045
    %v2050 = vmul.f32 %v1968, %v2045
    %v2051 = vmul.f32 %v1969, %v2045
    %v2058 = vrot.slane %v2046, 3
    %v2059 = vrot.slane %v2047, 3
    %v2060 = vsel %vm250, %v2058, %v2059
    %v2061 = vrot.slane %v2048, 3
    %v2062 = vsel %vm250, %v2059, %v2061
    %v2063 = vrot.slane %v2049, 3
    %v2064 = vrot.slane %v2050, 3
    %v2065 = vsel %vm250, %v2063, %v2064
    %v2066 = vrot.slane %v2051, 3
    %v2067 = vsel %vm250, %v2064, %v2066
    %v2072 = vadd.f32 %v2040, %v2060
    %v2073 = vadd.f32 %v2041, %v2062
    %v2074 = vadd.f32 %v2042, %v2065
    %v2075 = vadd.f32 %v2043, %v2067
    %s2076 = sld [smem:[#allocation4 + $0x4d]]
    %v2077 = vstv %s2076
    %v2078 = vmul.f32 %v1964, %v2077
    %v2079 = vmul.f32 %v1965, %v2077
    %v2080 = vmul.f32 %v1966, %v2077
    %v2081 = vmul.f32 %v1967, %v2077
    %v2082 = vmul.f32 %v1968, %v2077
    %v2083 = vmul.f32 %v1969, %v2077
    %v2090 = vrot.slane %v2078, 4
    %v2091 = vrot.slane %v2079, 4
    %v2092 = vsel %vm283, %v2090, %v2091
    %v2093 = vrot.slane %v2080, 4
    %v2094 = vsel %vm283, %v2091, %v2093
    %v2095 = vrot.slane %v2081, 4
    %v2096 = vrot.slane %v2082, 4
    %v2097 = vsel %vm283, %v2095, %v2096
    %v2098 = vrot.slane %v2083, 4
    %v2099 = vsel %vm283, %v2096, %v2098
    %v2104 = vadd.f32 %v2072, %v2092
    %v2105 = vadd.f32 %v2073, %v2094
    %v2106 = vadd.f32 %v2074, %v2097
    %v2107 = vadd.f32 %v2075, %v2099
    %s2108 = sld [smem:[#allocation4 + $0x54]]
    %v2109 = vstv %s2108
    %v2110 = vmul.f32 %v1964, %v2109
    %v2111 = vmul.f32 %v1965, %v2109
    %v2112 = vmul.f32 %v1966, %v2109
    %v2113 = vmul.f32 %v1967, %v2109
    %v2114 = vmul.f32 %v1968, %v2109
    %v2115 = vmul.f32 %v1969, %v2109
    %v2122 = vrot.slane %v2110, 5
    %v2123 = vrot.slane %v2111, 5
    %v2124 = vsel %vm316, %v2122, %v2123
    %v2125 = vrot.slane %v2112, 5
    %v2126 = vsel %vm316, %v2123, %v2125
    %v2127 = vrot.slane %v2113, 5
    %v2128 = vrot.slane %v2114, 5
    %v2129 = vsel %vm316, %v2127, %v2128
    %v2130 = vrot.slane %v2115, 5
    %v2131 = vsel %vm316, %v2128, %v2130
    %v2136 = vadd.f32 %v2104, %v2124
    %v2137 = vadd.f32 %v2105, %v2126
    %v2138 = vadd.f32 %v2106, %v2129
    %v2139 = vadd.f32 %v2107, %v2131
    %s2140 = sld [smem:[#allocation4 + $0x5b]]
    %v2141 = vstv %s2140
    %v2142 = vmul.f32 %v1964, %v2141
    %v2143 = vmul.f32 %v1965, %v2141
    %v2144 = vmul.f32 %v1966, %v2141
    %v2145 = vmul.f32 %v1967, %v2141
    %v2146 = vmul.f32 %v1968, %v2141
    %v2147 = vmul.f32 %v1969, %v2141
    %v2154 = vrot.slane %v2142, 6
    %v2155 = vrot.slane %v2143, 6
    %v2156 = vsel %vm349, %v2154, %v2155
    %v2157 = vrot.slane %v2144, 6
    %v2158 = vsel %vm349, %v2155, %v2157
    %v2159 = vrot.slane %v2145, 6
    %v2160 = vrot.slane %v2146, 6
    %v2161 = vsel %vm349, %v2159, %v2160
    %v2162 = vrot.slane %v2147, 6
    %v2163 = vsel %vm349, %v2160, %v2162
    %v2168 = vadd.f32 %v2136, %v2156
    %v2169 = vadd.f32 %v2137, %v2158
    %v2170 = vadd.f32 %v2138, %v2161
    %v2171 = vadd.f32 %v2139, %v2163
    %s2172 = sld [smem:[#allocation4 + $0x32]]
    %v2173 = vstv %s2172
    %v2174 = vmul.f32 %v1964, %v2173
    %v2175 = vmul.f32 %v1965, %v2173
    %v2176 = vmul.f32 %v1967, %v2173
    %v2177 = vmul.f32 %v1968, %v2173
    %2182 = vrot.lane.b32.xlu0 %v2174, 127
    %v2183 = vpop.permute.xlu0 %2182
    %2184 = vrot.lane.b32.xlu0 %v2175, 127
    %v2185 = vpop.permute.xlu0 %2184
    %2186 = vrot.lane.b32.xlu0 %v2176, 127
    %v2187 = vpop.permute.xlu0 %2186
    %2188 = vrot.lane.b32.xlu0 %v2177, 127
    %v2189 = vpop.permute.xlu0 %2188
    %v2194 = vadd.f32 %v2168, %v2183
    %v2195 = vadd.f32 %v2169, %v2185
    %v2196 = vadd.f32 %v2170, %v2187
    %v2197 = vadd.f32 %v2171, %v2189
    %s2198 = sld [smem:[#allocation4 + $0x39]]
    %v2199 = vstv %s2198
    %v2200 = vmul.f32 %v1964, %v2199
    %v2201 = vmul.f32 %v1965, %v2199
    %v2202 = vmul.f32 %v1966, %v2199
    %v2203 = vmul.f32 %v1967, %v2199
    %v2204 = vmul.f32 %v1968, %v2199
    %v2205 = vmul.f32 %v1969, %v2199
    %v2212 = vrot.slane %v2200, 1
    %v2213 = vrot.slane %v2201, 1
    %v2214 = vsel %vm184, %v2212, %v2213
    %v2215 = vrot.slane %v2202, 1
    %v2216 = vsel %vm184, %v2213, %v2215
    %v2217 = vrot.slane %v2203, 1
    %v2218 = vrot.slane %v2204, 1
    %v2219 = vsel %vm184, %v2217, %v2218
    %v2220 = vrot.slane %v2205, 1
    %v2221 = vsel %vm184, %v2218, %v2220
    %2222 = vrot.lane.b32.xlu0 %v2214, 127
    %v2223 = vpop.permute.xlu0 %2222
    %2224 = vrot.lane.b32.xlu0 %v2216, 127
    %v2225 = vpop.permute.xlu0 %2224
    %2226 = vrot.lane.b32.xlu0 %v2219, 127
    %v2227 = vpop.permute.xlu0 %2226
    %2228 = vrot.lane.b32.xlu0 %v2221, 127
    %v2229 = vpop.permute.xlu0 %2228
    %v2234 = vadd.f32 %v2194, %v2223
    %v2235 = vadd.f32 %v2195, %v2225
    %v2236 = vadd.f32 %v2196, %v2227
    %v2237 = vadd.f32 %v2197, %v2229
    %s2238 = sld [smem:[#allocation4 + $0x40]]
    %v2239 = vstv %s2238
    %v2240 = vmul.f32 %v1964, %v2239
    %v2241 = vmul.f32 %v1965, %v2239
    %v2242 = vmul.f32 %v1966, %v2239
    %v2243 = vmul.f32 %v1967, %v2239
    %v2244 = vmul.f32 %v1968, %v2239
    %v2245 = vmul.f32 %v1969, %v2239
    %v2252 = vrot.slane %v2240, 2
    %v2253 = vrot.slane %v2241, 2
    %v2254 = vsel %vm217, %v2252, %v2253
    %v2255 = vrot.slane %v2242, 2
    %v2256 = vsel %vm217, %v2253, %v2255
    %v2257 = vrot.slane %v2243, 2
    %v2258 = vrot.slane %v2244, 2
    %v2259 = vsel %vm217, %v2257, %v2258
    %v2260 = vrot.slane %v2245, 2
    %v2261 = vsel %vm217, %v2258, %v2260
    %2262 = vrot.lane.b32.xlu0 %v2254, 127
    %v2263 = vpop.permute.xlu0 %2262
    %2264 = vrot.lane.b32.xlu0 %v2256, 127
    %v2265 = vpop.permute.xlu0 %2264
    %2266 = vrot.lane.b32.xlu0 %v2259, 127
    %v2267 = vpop.permute.xlu0 %2266
    %2268 = vrot.lane.b32.xlu0 %v2261, 127
    %v2269 = vpop.permute.xlu0 %2268
    %v2274 = vadd.f32 %v2234, %v2263
    %v2275 = vadd.f32 %v2235, %v2265
    %v2276 = vadd.f32 %v2236, %v2267
    %v2277 = vadd.f32 %v2237, %v2269
    %s2278 = sld [smem:[#allocation4 + $0x47]]
    %v2279 = vstv %s2278
    %v2280 = vmul.f32 %v1964, %v2279
    %v2281 = vmul.f32 %v1965, %v2279
    %v2282 = vmul.f32 %v1966, %v2279
    %v2283 = vmul.f32 %v1967, %v2279
    %v2284 = vmul.f32 %v1968, %v2279
    %v2285 = vmul.f32 %v1969, %v2279
    %v2292 = vrot.slane %v2280, 3
    %v2293 = vrot.slane %v2281, 3
    %v2294 = vsel %vm250, %v2292, %v2293
    %v2295 = vrot.slane %v2282, 3
    %v2296 = vsel %vm250, %v2293, %v2295
    %v2297 = vrot.slane %v2283, 3
    %v2298 = vrot.slane %v2284, 3
    %v2299 = vsel %vm250, %v2297, %v2298
    %v2300 = vrot.slane %v2285, 3
    %v2301 = vsel %vm250, %v2298, %v2300
    %2302 = vrot.lane.b32.xlu0 %v2294, 127
    %v2303 = vpop.permute.xlu0 %2302
    %2304 = vrot.lane.b32.xlu0 %v2296, 127
    %v2305 = vpop.permute.xlu0 %2304
    %2306 = vrot.lane.b32.xlu0 %v2299, 127
    %v2307 = vpop.permute.xlu0 %2306
    %2308 = vrot.lane.b32.xlu0 %v2301, 127
    %v2309 = vpop.permute.xlu0 %2308
    %v2314 = vadd.f32 %v2274, %v2303
    %v2315 = vadd.f32 %v2275, %v2305
    %v2316 = vadd.f32 %v2276, %v2307
    %v2317 = vadd.f32 %v2277, %v2309
    %s2318 = sld [smem:[#allocation4 + $0x4e]]
    %v2319 = vstv %s2318
    %v2320 = vmul.f32 %v1964, %v2319
    %v2321 = vmul.f32 %v1965, %v2319
    %v2322 = vmul.f32 %v1966, %v2319
    %v2323 = vmul.f32 %v1967, %v2319
    %v2324 = vmul.f32 %v1968, %v2319
    %v2325 = vmul.f32 %v1969, %v2319
    %v2332 = vrot.slane %v2320, 4
    %v2333 = vrot.slane %v2321, 4
    %v2334 = vsel %vm283, %v2332, %v2333
    %v2335 = vrot.slane %v2322, 4
    %v2336 = vsel %vm283, %v2333, %v2335
    %v2337 = vrot.slane %v2323, 4
    %v2338 = vrot.slane %v2324, 4
    %v2339 = vsel %vm283, %v2337, %v2338
    %v2340 = vrot.slane %v2325, 4
    %v2341 = vsel %vm283, %v2338, %v2340
    %2342 = vrot.lane.b32.xlu0 %v2334, 127
    %v2343 = vpop.permute.xlu0 %2342
    %2344 = vrot.lane.b32.xlu0 %v2336, 127
    %v2345 = vpop.permute.xlu0 %2344
    %2346 = vrot.lane.b32.xlu0 %v2339, 127
    %v2347 = vpop.permute.xlu0 %2346
    %2348 = vrot.lane.b32.xlu0 %v2341, 127
    %v2349 = vpop.permute.xlu0 %2348
    %v2354 = vadd.f32 %v2314, %v2343
    %v2355 = vadd.f32 %v2315, %v2345
    %v2356 = vadd.f32 %v2316, %v2347
    %v2357 = vadd.f32 %v2317, %v2349
    %s2358 = sld [smem:[#allocation4 + $0x55]]
    %v2359 = vstv %s2358
    %v2360 = vmul.f32 %v1964, %v2359
    %v2361 = vmul.f32 %v1965, %v2359
    %v2362 = vmul.f32 %v1966, %v2359
    %v2363 = vmul.f32 %v1967, %v2359
    %v2364 = vmul.f32 %v1968, %v2359
    %v2365 = vmul.f32 %v1969, %v2359
    %v2372 = vrot.slane %v2360, 5
    %v2373 = vrot.slane %v2361, 5
    %v2374 = vsel %vm316, %v2372, %v2373
    %v2375 = vrot.slane %v2362, 5
    %v2376 = vsel %vm316, %v2373, %v2375
    %v2377 = vrot.slane %v2363, 5
    %v2378 = vrot.slane %v2364, 5
    %v2379 = vsel %vm316, %v2377, %v2378
    %v2380 = vrot.slane %v2365, 5
    %v2381 = vsel %vm316, %v2378, %v2380
    %2382 = vrot.lane.b32.xlu0 %v2374, 127
    %v2383 = vpop.permute.xlu0 %2382
    %2384 = vrot.lane.b32.xlu0 %v2376, 127
    %v2385 = vpop.permute.xlu0 %2384
    %2386 = vrot.lane.b32.xlu0 %v2379, 127
    %v2387 = vpop.permute.xlu0 %2386
    %2388 = vrot.lane.b32.xlu0 %v2381, 127
    %v2389 = vpop.permute.xlu0 %2388
    %v2394 = vadd.f32 %v2354, %v2383
    %v2395 = vadd.f32 %v2355, %v2385
    %v2396 = vadd.f32 %v2356, %v2387
    %v2397 = vadd.f32 %v2357, %v2389
    %s2398 = sld [smem:[#allocation4 + $0x5c]]
    %v2399 = vstv %s2398
    %v2400 = vmul.f32 %v1964, %v2399
    %v2401 = vmul.f32 %v1965, %v2399
    %v2402 = vmul.f32 %v1966, %v2399
    %v2403 = vmul.f32 %v1967, %v2399
    %v2404 = vmul.f32 %v1968, %v2399
    %v2405 = vmul.f32 %v1969, %v2399
    %v2412 = vrot.slane %v2400, 6
    %v2413 = vrot.slane %v2401, 6
    %v2414 = vsel %vm349, %v2412, %v2413
    %v2415 = vrot.slane %v2402, 6
    %v2416 = vsel %vm349, %v2413, %v2415
    %v2417 = vrot.slane %v2403, 6
    %v2418 = vrot.slane %v2404, 6
    %v2419 = vsel %vm349, %v2417, %v2418
    %v2420 = vrot.slane %v2405, 6
    %v2421 = vsel %vm349, %v2418, %v2420
    %2422 = vrot.lane.b32.xlu0 %v2414, 127
    %v2423 = vpop.permute.xlu0 %2422
    %2424 = vrot.lane.b32.xlu0 %v2416, 127
    %v2425 = vpop.permute.xlu0 %2424
    %2426 = vrot.lane.b32.xlu0 %v2419, 127
    %v2427 = vpop.permute.xlu0 %2426
    %2428 = vrot.lane.b32.xlu0 %v2421, 127
    %v2429 = vpop.permute.xlu0 %2428
    %v2434 = vadd.f32 %v2394, %v2423
    %v2435 = vadd.f32 %v2395, %v2425
    %v2436 = vadd.f32 %v2396, %v2427
    %v2437 = vadd.f32 %v2397, %v2429
    %s2438 = sld [smem:[#allocation4 + $0x33]]
    %v2439 = vstv %s2438
    %v2440 = vmul.f32 %v1964, %v2439
    %v2441 = vmul.f32 %v1965, %v2439
    %v2442 = vmul.f32 %v1967, %v2439
    %v2443 = vmul.f32 %v1968, %v2439
    %2448 = vrot.lane.b32.xlu0 %v2440, 126
    %v2449 = vpop.permute.xlu0 %2448
    %2450 = vrot.lane.b32.xlu0 %v2441, 126
    %v2451 = vpop.permute.xlu0 %2450
    %2452 = vrot.lane.b32.xlu0 %v2442, 126
    %v2453 = vpop.permute.xlu0 %2452
    %2454 = vrot.lane.b32.xlu0 %v2443, 126
    %v2455 = vpop.permute.xlu0 %2454
    %v2460 = vadd.f32 %v2434, %v2449
    %v2461 = vadd.f32 %v2435, %v2451
    %v2462 = vadd.f32 %v2436, %v2453
    %v2463 = vadd.f32 %v2437, %v2455
    %s2464 = sld [smem:[#allocation4 + $0x3a]]
    %v2465 = vstv %s2464
    %v2466 = vmul.f32 %v1964, %v2465
    %v2467 = vmul.f32 %v1965, %v2465
    %v2468 = vmul.f32 %v1966, %v2465
    %v2469 = vmul.f32 %v1967, %v2465
    %v2470 = vmul.f32 %v1968, %v2465
    %v2471 = vmul.f32 %v1969, %v2465
    %v2478 = vrot.slane %v2466, 1
    %v2479 = vrot.slane %v2467, 1
    %v2480 = vsel %vm184, %v2478, %v2479
    %v2481 = vrot.slane %v2468, 1
    %v2482 = vsel %vm184, %v2479, %v2481
    %v2483 = vrot.slane %v2469, 1
    %v2484 = vrot.slane %v2470, 1
    %v2485 = vsel %vm184, %v2483, %v2484
    %v2486 = vrot.slane %v2471, 1
    %v2487 = vsel %vm184, %v2484, %v2486
    %2488 = vrot.lane.b32.xlu0 %v2480, 126
    %v2489 = vpop.permute.xlu0 %2488
    %2490 = vrot.lane.b32.xlu0 %v2482, 126
    %v2491 = vpop.permute.xlu0 %2490
    %2492 = vrot.lane.b32.xlu0 %v2485, 126
    %v2493 = vpop.permute.xlu0 %2492
    %2494 = vrot.lane.b32.xlu0 %v2487, 126
    %v2495 = vpop.permute.xlu0 %2494
    %v2500 = vadd.f32 %v2460, %v2489
    %v2501 = vadd.f32 %v2461, %v2491
    %v2502 = vadd.f32 %v2462, %v2493
    %v2503 = vadd.f32 %v2463, %v2495
    %s2504 = sld [smem:[#allocation4 + $0x41]]
    %v2505 = vstv %s2504
    %v2506 = vmul.f32 %v1964, %v2505
    %v2507 = vmul.f32 %v1965, %v2505
    %v2508 = vmul.f32 %v1966, %v2505
    %v2509 = vmul.f32 %v1967, %v2505
    %v2510 = vmul.f32 %v1968, %v2505
    %v2511 = vmul.f32 %v1969, %v2505
    %v2518 = vrot.slane %v2506, 2
    %v2519 = vrot.slane %v2507, 2
    %v2520 = vsel %vm217, %v2518, %v2519
    %v2521 = vrot.slane %v2508, 2
    %v2522 = vsel %vm217, %v2519, %v2521
    %v2523 = vrot.slane %v2509, 2
    %v2524 = vrot.slane %v2510, 2
    %v2525 = vsel %vm217, %v2523, %v2524
    %v2526 = vrot.slane %v2511, 2
    %v2527 = vsel %vm217, %v2524, %v2526
    %2528 = vrot.lane.b32.xlu0 %v2520, 126
    %v2529 = vpop.permute.xlu0 %2528
    %2530 = vrot.lane.b32.xlu0 %v2522, 126
    %v2531 = vpop.permute.xlu0 %2530
    %2532 = vrot.lane.b32.xlu0 %v2525, 126
    %v2533 = vpop.permute.xlu0 %2532
    %2534 = vrot.lane.b32.xlu0 %v2527, 126
    %v2535 = vpop.permute.xlu0 %2534
    %v2540 = vadd.f32 %v2500, %v2529
    %v2541 = vadd.f32 %v2501, %v2531
    %v2542 = vadd.f32 %v2502, %v2533
    %v2543 = vadd.f32 %v2503, %v2535
    %s2544 = sld [smem:[#allocation4 + $0x48]]
    %v2545 = vstv %s2544
    %v2546 = vmul.f32 %v1964, %v2545
    %v2547 = vmul.f32 %v1965, %v2545
    %v2548 = vmul.f32 %v1966, %v2545
    %v2549 = vmul.f32 %v1967, %v2545
    %v2550 = vmul.f32 %v1968, %v2545
    %v2551 = vmul.f32 %v1969, %v2545
    %v2558 = vrot.slane %v2546, 3
    %v2559 = vrot.slane %v2547, 3
    %v2560 = vsel %vm250, %v2558, %v2559
    %v2561 = vrot.slane %v2548, 3
    %v2562 = vsel %vm250, %v2559, %v2561
    %v2563 = vrot.slane %v2549, 3
    %v2564 = vrot.slane %v2550, 3
    %v2565 = vsel %vm250, %v2563, %v2564
    %v2566 = vrot.slane %v2551, 3
    %v2567 = vsel %vm250, %v2564, %v2566
    %2568 = vrot.lane.b32.xlu0 %v2560, 126
    %v2569 = vpop.permute.xlu0 %2568
    %2570 = vrot.lane.b32.xlu0 %v2562, 126
    %v2571 = vpop.permute.xlu0 %2570
    %2572 = vrot.lane.b32.xlu0 %v2565, 126
    %v2573 = vpop.permute.xlu0 %2572
    %2574 = vrot.lane.b32.xlu0 %v2567, 126
    %v2575 = vpop.permute.xlu0 %2574
    %v2580 = vadd.f32 %v2540, %v2569
    %v2581 = vadd.f32 %v2541, %v2571
    %v2582 = vadd.f32 %v2542, %v2573
    %v2583 = vadd.f32 %v2543, %v2575
    %s2584 = sld [smem:[#allocation4 + $0x4f]]
    %v2585 = vstv %s2584
    %v2586 = vmul.f32 %v1964, %v2585
    %v2587 = vmul.f32 %v1965, %v2585
    %v2588 = vmul.f32 %v1966, %v2585
    %v2589 = vmul.f32 %v1967, %v2585
    %v2590 = vmul.f32 %v1968, %v2585
    %v2591 = vmul.f32 %v1969, %v2585
    %v2598 = vrot.slane %v2586, 4
    %v2599 = vrot.slane %v2587, 4
    %v2600 = vsel %vm283, %v2598, %v2599
    %v2601 = vrot.slane %v2588, 4
    %v2602 = vsel %vm283, %v2599, %v2601
    %v2603 = vrot.slane %v2589, 4
    %v2604 = vrot.slane %v2590, 4
    %v2605 = vsel %vm283, %v2603, %v2604
    %v2606 = vrot.slane %v2591, 4
    %v2607 = vsel %vm283, %v2604, %v2606
    %2608 = vrot.lane.b32.xlu0 %v2600, 126
    %v2609 = vpop.permute.xlu0 %2608
    %2610 = vrot.lane.b32.xlu0 %v2602, 126
    %v2611 = vpop.permute.xlu0 %2610
    %2612 = vrot.lane.b32.xlu0 %v2605, 126
    %v2613 = vpop.permute.xlu0 %2612
    %2614 = vrot.lane.b32.xlu0 %v2607, 126
    %v2615 = vpop.permute.xlu0 %2614
    %v2620 = vadd.f32 %v2580, %v2609
    %v2621 = vadd.f32 %v2581, %v2611
    %v2622 = vadd.f32 %v2582, %v2613
    %v2623 = vadd.f32 %v2583, %v2615
    %s2624 = sld [smem:[#allocation4 + $0x56]]
    %v2625 = vstv %s2624
    %v2626 = vmul.f32 %v1964, %v2625
    %v2627 = vmul.f32 %v1965, %v2625
    %v2628 = vmul.f32 %v1966, %v2625
    %v2629 = vmul.f32 %v1967, %v2625
    %v2630 = vmul.f32 %v1968, %v2625
    %v2631 = vmul.f32 %v1969, %v2625
    %v2638 = vrot.slane %v2626, 5
    %v2639 = vrot.slane %v2627, 5
    %v2640 = vsel %vm316, %v2638, %v2639
    %v2641 = vrot.slane %v2628, 5
    %v2642 = vsel %vm316, %v2639, %v2641
    %v2643 = vrot.slane %v2629, 5
    %v2644 = vrot.slane %v2630, 5
    %v2645 = vsel %vm316, %v2643, %v2644
    %v2646 = vrot.slane %v2631, 5
    %v2647 = vsel %vm316, %v2644, %v2646
    %2648 = vrot.lane.b32.xlu0 %v2640, 126
    %v2649 = vpop.permute.xlu0 %2648
    %2650 = vrot.lane.b32.xlu0 %v2642, 126
    %v2651 = vpop.permute.xlu0 %2650
    %2652 = vrot.lane.b32.xlu0 %v2645, 126
    %v2653 = vpop.permute.xlu0 %2652
    %2654 = vrot.lane.b32.xlu0 %v2647, 126
    %v2655 = vpop.permute.xlu0 %2654
    %v2660 = vadd.f32 %v2620, %v2649
    %v2661 = vadd.f32 %v2621, %v2651
    %v2662 = vadd.f32 %v2622, %v2653
    %v2663 = vadd.f32 %v2623, %v2655
    %s2664 = sld [smem:[#allocation4 + $0x5d]]
    %v2665 = vstv %s2664
    %v2666 = vmul.f32 %v1964, %v2665
    %v2667 = vmul.f32 %v1965, %v2665
    %v2668 = vmul.f32 %v1966, %v2665
    %v2669 = vmul.f32 %v1967, %v2665
    %v2670 = vmul.f32 %v1968, %v2665
    %v2671 = vmul.f32 %v1969, %v2665
    %v2678 = vrot.slane %v2666, 6
    %v2679 = vrot.slane %v2667, 6
    %v2680 = vsel %vm349, %v2678, %v2679
    %v2681 = vrot.slane %v2668, 6
    %v2682 = vsel %vm349, %v2679, %v2681
    %v2683 = vrot.slane %v2669, 6
    %v2684 = vrot.slane %v2670, 6
    %v2685 = vsel %vm349, %v2683, %v2684
    %v2686 = vrot.slane %v2671, 6
    %v2687 = vsel %vm349, %v2684, %v2686
    %2688 = vrot.lane.b32.xlu0 %v2680, 126
    %v2689 = vpop.permute.xlu0 %2688
    %2690 = vrot.lane.b32.xlu0 %v2682, 126
    %v2691 = vpop.permute.xlu0 %2690
    %2692 = vrot.lane.b32.xlu0 %v2685, 126
    %v2693 = vpop.permute.xlu0 %2692
    %2694 = vrot.lane.b32.xlu0 %v2687, 126
    %v2695 = vpop.permute.xlu0 %2694
    %v2700 = vadd.f32 %v2660, %v2689
    %v2701 = vadd.f32 %v2661, %v2691
    %v2702 = vadd.f32 %v2662, %v2693
    %v2703 = vadd.f32 %v2663, %v2695
    %s2704 = sld [smem:[#allocation4 + $0x34]]
    %v2705 = vstv %s2704
    %v2706 = vmul.f32 %v1964, %v2705
    %v2707 = vmul.f32 %v1965, %v2705
    %v2708 = vmul.f32 %v1967, %v2705
    %v2709 = vmul.f32 %v1968, %v2705
    %2714 = vrot.lane.b32.xlu0 %v2706, 125
    %v2715 = vpop.permute.xlu0 %2714
    %2716 = vrot.lane.b32.xlu0 %v2707, 125
    %v2717 = vpop.permute.xlu0 %2716
    %2718 = vrot.lane.b32.xlu0 %v2708, 125
    %v2719 = vpop.permute.xlu0 %2718
    %2720 = vrot.lane.b32.xlu0 %v2709, 125
    %v2721 = vpop.permute.xlu0 %2720
    %v2726 = vadd.f32 %v2700, %v2715
    %v2727 = vadd.f32 %v2701, %v2717
    %v2728 = vadd.f32 %v2702, %v2719
    %v2729 = vadd.f32 %v2703, %v2721
    %s2730 = sld [smem:[#allocation4 + $0x3b]]
    %v2731 = vstv %s2730
    %v2732 = vmul.f32 %v1964, %v2731
    %v2733 = vmul.f32 %v1965, %v2731
    %v2734 = vmul.f32 %v1966, %v2731
    %v2735 = vmul.f32 %v1967, %v2731
    %v2736 = vmul.f32 %v1968, %v2731
    %v2737 = vmul.f32 %v1969, %v2731
    %v2744 = vrot.slane %v2732, 1
    %v2745 = vrot.slane %v2733, 1
    %v2746 = vsel %vm184, %v2744, %v2745
    %v2747 = vrot.slane %v2734, 1
    %v2748 = vsel %vm184, %v2745, %v2747
    %v2749 = vrot.slane %v2735, 1
    %v2750 = vrot.slane %v2736, 1
    %v2751 = vsel %vm184, %v2749, %v2750
    %v2752 = vrot.slane %v2737, 1
    %v2753 = vsel %vm184, %v2750, %v2752
    %2754 = vrot.lane.b32.xlu0 %v2746, 125
    %v2755 = vpop.permute.xlu0 %2754
    %2756 = vrot.lane.b32.xlu0 %v2748, 125
    %v2757 = vpop.permute.xlu0 %2756
    %2758 = vrot.lane.b32.xlu0 %v2751, 125
    %v2759 = vpop.permute.xlu0 %2758
    %2760 = vrot.lane.b32.xlu0 %v2753, 125
    %v2761 = vpop.permute.xlu0 %2760
    %v2766 = vadd.f32 %v2726, %v2755
    %v2767 = vadd.f32 %v2727, %v2757
    %v2768 = vadd.f32 %v2728, %v2759
    %v2769 = vadd.f32 %v2729, %v2761
    %s2770 = sld [smem:[#allocation4 + $0x42]]
    %v2771 = vstv %s2770
    %v2772 = vmul.f32 %v1964, %v2771
    %v2773 = vmul.f32 %v1965, %v2771
    %v2774 = vmul.f32 %v1966, %v2771
    %v2775 = vmul.f32 %v1967, %v2771
    %v2776 = vmul.f32 %v1968, %v2771
    %v2777 = vmul.f32 %v1969, %v2771
    %v2784 = vrot.slane %v2772, 2
    %v2785 = vrot.slane %v2773, 2
    %v2786 = vsel %vm217, %v2784, %v2785
    %v2787 = vrot.slane %v2774, 2
    %v2788 = vsel %vm217, %v2785, %v2787
    %v2789 = vrot.slane %v2775, 2
    %v2790 = vrot.slane %v2776, 2
    %v2791 = vsel %vm217, %v2789, %v2790
    %v2792 = vrot.slane %v2777, 2
    %v2793 = vsel %vm217, %v2790, %v2792
    %2794 = vrot.lane.b32.xlu0 %v2786, 125
    %v2795 = vpop.permute.xlu0 %2794
    %2796 = vrot.lane.b32.xlu0 %v2788, 125
    %v2797 = vpop.permute.xlu0 %2796
    %2798 = vrot.lane.b32.xlu0 %v2791, 125
    %v2799 = vpop.permute.xlu0 %2798
    %2800 = vrot.lane.b32.xlu0 %v2793, 125
    %v2801 = vpop.permute.xlu0 %2800
    %v2806 = vadd.f32 %v2766, %v2795
    %v2807 = vadd.f32 %v2767, %v2797
    %v2808 = vadd.f32 %v2768, %v2799
    %v2809 = vadd.f32 %v2769, %v2801
    %s2810 = sld [smem:[#allocation4 + $0x49]]
    %v2811 = vstv %s2810
    %v2812 = vmul.f32 %v1964, %v2811
    %v2813 = vmul.f32 %v1965, %v2811
    %v2814 = vmul.f32 %v1966, %v2811
    %v2815 = vmul.f32 %v1967, %v2811
    %v2816 = vmul.f32 %v1968, %v2811
    %v2817 = vmul.f32 %v1969, %v2811
    %v2824 = vrot.slane %v2812, 3
    %v2825 = vrot.slane %v2813, 3
    %v2826 = vsel %vm250, %v2824, %v2825
    %v2827 = vrot.slane %v2814, 3
    %v2828 = vsel %vm250, %v2825, %v2827
    %v2829 = vrot.slane %v2815, 3
    %v2830 = vrot.slane %v2816, 3
    %v2831 = vsel %vm250, %v2829, %v2830
    %v2832 = vrot.slane %v2817, 3
    %v2833 = vsel %vm250, %v2830, %v2832
    %2834 = vrot.lane.b32.xlu0 %v2826, 125
    %v2835 = vpop.permute.xlu0 %2834
    %2836 = vrot.lane.b32.xlu0 %v2828, 125
    %v2837 = vpop.permute.xlu0 %2836
    %2838 = vrot.lane.b32.xlu0 %v2831, 125
    %v2839 = vpop.permute.xlu0 %2838
    %2840 = vrot.lane.b32.xlu0 %v2833, 125
    %v2841 = vpop.permute.xlu0 %2840
    %v2846 = vadd.f32 %v2806, %v2835
    %v2847 = vadd.f32 %v2807, %v2837
    %v2848 = vadd.f32 %v2808, %v2839
    %v2849 = vadd.f32 %v2809, %v2841
    %s2850 = sld [smem:[#allocation4 + $0x50]]
    %v2851 = vstv %s2850
    %v2852 = vmul.f32 %v1964, %v2851
    %v2853 = vmul.f32 %v1965, %v2851
    %v2854 = vmul.f32 %v1966, %v2851
    %v2855 = vmul.f32 %v1967, %v2851
    %v2856 = vmul.f32 %v1968, %v2851
    %v2857 = vmul.f32 %v1969, %v2851
    %v2864 = vrot.slane %v2852, 4
    %v2865 = vrot.slane %v2853, 4
    %v2866 = vsel %vm283, %v2864, %v2865
    %v2867 = vrot.slane %v2854, 4
    %v2868 = vsel %vm283, %v2865, %v2867
    %v2869 = vrot.slane %v2855, 4
    %v2870 = vrot.slane %v2856, 4
    %v2871 = vsel %vm283, %v2869, %v2870
    %v2872 = vrot.slane %v2857, 4
    %v2873 = vsel %vm283, %v2870, %v2872
    %2874 = vrot.lane.b32.xlu0 %v2866, 125
    %v2875 = vpop.permute.xlu0 %2874
    %2876 = vrot.lane.b32.xlu0 %v2868, 125
    %v2877 = vpop.permute.xlu0 %2876
    %2878 = vrot.lane.b32.xlu0 %v2871, 125
    %v2879 = vpop.permute.xlu0 %2878
    %2880 = vrot.lane.b32.xlu0 %v2873, 125
    %v2881 = vpop.permute.xlu0 %2880
    %v2886 = vadd.f32 %v2846, %v2875
    %v2887 = vadd.f32 %v2847, %v2877
    %v2888 = vadd.f32 %v2848, %v2879
    %v2889 = vadd.f32 %v2849, %v2881
    %s2890 = sld [smem:[#allocation4 + $0x57]]
    %v2891 = vstv %s2890
    %v2892 = vmul.f32 %v1964, %v2891
    %v2893 = vmul.f32 %v1965, %v2891
    %v2894 = vmul.f32 %v1966, %v2891
    %v2895 = vmul.f32 %v1967, %v2891
    %v2896 = vmul.f32 %v1968, %v2891
    %v2897 = vmul.f32 %v1969, %v2891
    %v2904 = vrot.slane %v2892, 5
    %v2905 = vrot.slane %v2893, 5
    %v2906 = vsel %vm316, %v2904, %v2905
    %v2907 = vrot.slane %v2894, 5
    %v2908 = vsel %vm316, %v2905, %v2907
    %v2909 = vrot.slane %v2895, 5
    %v2910 = vrot.slane %v2896, 5
    %v2911 = vsel %vm316, %v2909, %v2910
    %v2912 = vrot.slane %v2897, 5
    %v2913 = vsel %vm316, %v2910, %v2912
    %2914 = vrot.lane.b32.xlu0 %v2906, 125
    %v2915 = vpop.permute.xlu0 %2914
    %2916 = vrot.lane.b32.xlu0 %v2908, 125
    %v2917 = vpop.permute.xlu0 %2916
    %2918 = vrot.lane.b32.xlu0 %v2911, 125
    %v2919 = vpop.permute.xlu0 %2918
    %2920 = vrot.lane.b32.xlu0 %v2913, 125
    %v2921 = vpop.permute.xlu0 %2920
    %v2926 = vadd.f32 %v2886, %v2915
    %v2927 = vadd.f32 %v2887, %v2917
    %v2928 = vadd.f32 %v2888, %v2919
    %v2929 = vadd.f32 %v2889, %v2921
    %s2930 = sld [smem:[#allocation4 + $0x5e]]
    %v2931 = vstv %s2930
    %v2932 = vmul.f32 %v1964, %v2931
    %v2933 = vmul.f32 %v1965, %v2931
    %v2934 = vmul.f32 %v1966, %v2931
    %v2935 = vmul.f32 %v1967, %v2931
    %v2936 = vmul.f32 %v1968, %v2931
    %v2937 = vmul.f32 %v1969, %v2931
    %v2944 = vrot.slane %v2932, 6
    %v2945 = vrot.slane %v2933, 6
    %v2946 = vsel %vm349, %v2944, %v2945
    %v2947 = vrot.slane %v2934, 6
    %v2948 = vsel %vm349, %v2945, %v2947
    %v2949 = vrot.slane %v2935, 6
    %v2950 = vrot.slane %v2936, 6
    %v2951 = vsel %vm349, %v2949, %v2950
    %v2952 = vrot.slane %v2937, 6
    %v2953 = vsel %vm349, %v2950, %v2952
    %2954 = vrot.lane.b32.xlu0 %v2946, 125
    %v2955 = vpop.permute.xlu0 %2954
    %2956 = vrot.lane.b32.xlu0 %v2948, 125
    %v2957 = vpop.permute.xlu0 %2956
    %2958 = vrot.lane.b32.xlu0 %v2951, 125
    %v2959 = vpop.permute.xlu0 %2958
    %2960 = vrot.lane.b32.xlu0 %v2953, 125
    %v2961 = vpop.permute.xlu0 %2960
    %v2966 = vadd.f32 %v2926, %v2955
    %v2967 = vadd.f32 %v2927, %v2957
    %v2968 = vadd.f32 %v2928, %v2959
    %v2969 = vadd.f32 %v2929, %v2961
    %s2970 = sld [smem:[#allocation4 + $0x35]]
    %v2971 = vstv %s2970
    %v2972 = vmul.f32 %v1964, %v2971
    %v2973 = vmul.f32 %v1965, %v2971
    %v2974 = vmul.f32 %v1967, %v2971
    %v2975 = vmul.f32 %v1968, %v2971
    %2980 = vrot.lane.b32.xlu0 %v2972, 124
    %v2981 = vpop.permute.xlu0 %2980
    %2982 = vrot.lane.b32.xlu0 %v2973, 124
    %v2983 = vpop.permute.xlu0 %2982
    %2984 = vrot.lane.b32.xlu0 %v2974, 124
    %v2985 = vpop.permute.xlu0 %2984
    %2986 = vrot.lane.b32.xlu0 %v2975, 124
    %v2987 = vpop.permute.xlu0 %2986
    %v2992 = vadd.f32 %v2966, %v2981
    %v2993 = vadd.f32 %v2967, %v2983
    %v2994 = vadd.f32 %v2968, %v2985
    %v2995 = vadd.f32 %v2969, %v2987
    %s2996 = sld [smem:[#allocation4 + $0x3c]]
    %v2997 = vstv %s2996
    %v2998 = vmul.f32 %v1964, %v2997
    %v2999 = vmul.f32 %v1965, %v2997
    %v3000 = vmul.f32 %v1966, %v2997
    %v3001 = vmul.f32 %v1967, %v2997
    %v3002 = vmul.f32 %v1968, %v2997
    %v3003 = vmul.f32 %v1969, %v2997
    %v3010 = vrot.slane %v2998, 1
    %v3011 = vrot.slane %v2999, 1
    %v3012 = vsel %vm184, %v3010, %v3011
    %v3013 = vrot.slane %v3000, 1
    %v3014 = vsel %vm184, %v3011, %v3013
    %v3015 = vrot.slane %v3001, 1
    %v3016 = vrot.slane %v3002, 1
    %v3017 = vsel %vm184, %v3015, %v3016
    %v3018 = vrot.slane %v3003, 1
    %v3019 = vsel %vm184, %v3016, %v3018
    %3020 = vrot.lane.b32.xlu0 %v3012, 124
    %v3021 = vpop.permute.xlu0 %3020
    %3022 = vrot.lane.b32.xlu0 %v3014, 124
    %v3023 = vpop.permute.xlu0 %3022
    %3024 = vrot.lane.b32.xlu0 %v3017, 124
    %v3025 = vpop.permute.xlu0 %3024
    %3026 = vrot.lane.b32.xlu0 %v3019, 124
    %v3027 = vpop.permute.xlu0 %3026
    %v3032 = vadd.f32 %v2992, %v3021
    %v3033 = vadd.f32 %v2993, %v3023
    %v3034 = vadd.f32 %v2994, %v3025
    %v3035 = vadd.f32 %v2995, %v3027
    %s3036 = sld [smem:[#allocation4 + $0x43]]
    %v3037 = vstv %s3036
    %v3038 = vmul.f32 %v1964, %v3037
    %v3039 = vmul.f32 %v1965, %v3037
    %v3040 = vmul.f32 %v1966, %v3037
    %v3041 = vmul.f32 %v1967, %v3037
    %v3042 = vmul.f32 %v1968, %v3037
    %v3043 = vmul.f32 %v1969, %v3037
    %v3050 = vrot.slane %v3038, 2
    %v3051 = vrot.slane %v3039, 2
    %v3052 = vsel %vm217, %v3050, %v3051
    %v3053 = vrot.slane %v3040, 2
    %v3054 = vsel %vm217, %v3051, %v3053
    %v3055 = vrot.slane %v3041, 2
    %v3056 = vrot.slane %v3042, 2
    %v3057 = vsel %vm217, %v3055, %v3056
    %v3058 = vrot.slane %v3043, 2
    %v3059 = vsel %vm217, %v3056, %v3058
    %3060 = vrot.lane.b32.xlu0 %v3052, 124
    %v3061 = vpop.permute.xlu0 %3060
    %3062 = vrot.lane.b32.xlu0 %v3054, 124
    %v3063 = vpop.permute.xlu0 %3062
    %3064 = vrot.lane.b32.xlu0 %v3057, 124
    %v3065 = vpop.permute.xlu0 %3064
    %3066 = vrot.lane.b32.xlu0 %v3059, 124
    %v3067 = vpop.permute.xlu0 %3066
    %v3072 = vadd.f32 %v3032, %v3061
    %v3073 = vadd.f32 %v3033, %v3063
    %v3074 = vadd.f32 %v3034, %v3065
    %v3075 = vadd.f32 %v3035, %v3067
    %s3076 = sld [smem:[#allocation4 + $0x4a]]
    %v3077 = vstv %s3076
    %v3078 = vmul.f32 %v1964, %v3077
    %v3079 = vmul.f32 %v1965, %v3077
    %v3080 = vmul.f32 %v1966, %v3077
    %v3081 = vmul.f32 %v1967, %v3077
    %v3082 = vmul.f32 %v1968, %v3077
    %v3083 = vmul.f32 %v1969, %v3077
    %v3090 = vrot.slane %v3078, 3
    %v3091 = vrot.slane %v3079, 3
    %v3092 = vsel %vm250, %v3090, %v3091
    %v3093 = vrot.slane %v3080, 3
    %v3094 = vsel %vm250, %v3091, %v3093
    %v3095 = vrot.slane %v3081, 3
    %v3096 = vrot.slane %v3082, 3
    %v3097 = vsel %vm250, %v3095, %v3096
    %v3098 = vrot.slane %v3083, 3
    %v3099 = vsel %vm250, %v3096, %v3098
    %3100 = vrot.lane.b32.xlu0 %v3092, 124
    %v3101 = vpop.permute.xlu0 %3100
    %3102 = vrot.lane.b32.xlu0 %v3094, 124
    %v3103 = vpop.permute.xlu0 %3102
    %3104 = vrot.lane.b32.xlu0 %v3097, 124
    %v3105 = vpop.permute.xlu0 %3104
    %3106 = vrot.lane.b32.xlu0 %v3099, 124
    %v3107 = vpop.permute.xlu0 %3106
    %v3112 = vadd.f32 %v3072, %v3101
    %v3113 = vadd.f32 %v3073, %v3103
    %v3114 = vadd.f32 %v3074, %v3105
    %v3115 = vadd.f32 %v3075, %v3107
    %s3116 = sld [smem:[#allocation4 + $0x51]]
    %v3117 = vstv %s3116
    %v3118 = vmul.f32 %v1964, %v3117
    %v3119 = vmul.f32 %v1965, %v3117
    %v3120 = vmul.f32 %v1966, %v3117
    %v3121 = vmul.f32 %v1967, %v3117
    %v3122 = vmul.f32 %v1968, %v3117
    %v3123 = vmul.f32 %v1969, %v3117
    %v3130 = vrot.slane %v3118, 4
    %v3131 = vrot.slane %v3119, 4
    %v3132 = vsel %vm283, %v3130, %v3131
    %v3133 = vrot.slane %v3120, 4
    %v3134 = vsel %vm283, %v3131, %v3133
    %v3135 = vrot.slane %v3121, 4
    %v3136 = vrot.slane %v3122, 4
    %v3137 = vsel %vm283, %v3135, %v3136
    %v3138 = vrot.slane %v3123, 4
    %v3139 = vsel %vm283, %v3136, %v3138
    %3140 = vrot.lane.b32.xlu0 %v3132, 124
    %v3141 = vpop.permute.xlu0 %3140
    %3142 = vrot.lane.b32.xlu0 %v3134, 124
    %v3143 = vpop.permute.xlu0 %3142
    %3144 = vrot.lane.b32.xlu0 %v3137, 124
    %v3145 = vpop.permute.xlu0 %3144
    %3146 = vrot.lane.b32.xlu0 %v3139, 124
    %v3147 = vpop.permute.xlu0 %3146
    %v3152 = vadd.f32 %v3112, %v3141
    %v3153 = vadd.f32 %v3113, %v3143
    %v3154 = vadd.f32 %v3114, %v3145
    %v3155 = vadd.f32 %v3115, %v3147
    %s3156 = sld [smem:[#allocation4 + $0x58]]
    %v3157 = vstv %s3156
    %v3158 = vmul.f32 %v1964, %v3157
    %v3159 = vmul.f32 %v1965, %v3157
    %v3160 = vmul.f32 %v1966, %v3157
    %v3161 = vmul.f32 %v1967, %v3157
    %v3162 = vmul.f32 %v1968, %v3157
    %v3163 = vmul.f32 %v1969, %v3157
    %v3170 = vrot.slane %v3158, 5
    %v3171 = vrot.slane %v3159, 5
    %v3172 = vsel %vm316, %v3170, %v3171
    %v3173 = vrot.slane %v3160, 5
    %v3174 = vsel %vm316, %v3171, %v3173
    %v3175 = vrot.slane %v3161, 5
    %v3176 = vrot.slane %v3162, 5
    %v3177 = vsel %vm316, %v3175, %v3176
    %v3178 = vrot.slane %v3163, 5
    %v3179 = vsel %vm316, %v3176, %v3178
    %3180 = vrot.lane.b32.xlu0 %v3172, 124
    %v3181 = vpop.permute.xlu0 %3180
    %3182 = vrot.lane.b32.xlu0 %v3174, 124
    %v3183 = vpop.permute.xlu0 %3182
    %3184 = vrot.lane.b32.xlu0 %v3177, 124
    %v3185 = vpop.permute.xlu0 %3184
    %3186 = vrot.lane.b32.xlu0 %v3179, 124
    %v3187 = vpop.permute.xlu0 %3186
    %v3192 = vadd.f32 %v3152, %v3181
    %v3193 = vadd.f32 %v3153, %v3183
    %v3194 = vadd.f32 %v3154, %v3185
    %v3195 = vadd.f32 %v3155, %v3187
    %s3196 = sld [smem:[#allocation4 + $0x5f]]
    %v3197 = vstv %s3196
    %v3198 = vmul.f32 %v1964, %v3197
    %v3199 = vmul.f32 %v1965, %v3197
    %v3200 = vmul.f32 %v1966, %v3197
    %v3201 = vmul.f32 %v1967, %v3197
    %v3202 = vmul.f32 %v1968, %v3197
    %v3203 = vmul.f32 %v1969, %v3197
    %v3210 = vrot.slane %v3198, 6
    %v3211 = vrot.slane %v3199, 6
    %v3212 = vsel %vm349, %v3210, %v3211
    %v3213 = vrot.slane %v3200, 6
    %v3214 = vsel %vm349, %v3211, %v3213
    %v3215 = vrot.slane %v3201, 6
    %v3216 = vrot.slane %v3202, 6
    %v3217 = vsel %vm349, %v3215, %v3216
    %v3218 = vrot.slane %v3203, 6
    %v3219 = vsel %vm349, %v3216, %v3218
    %3220 = vrot.lane.b32.xlu0 %v3212, 124
    %v3221 = vpop.permute.xlu0 %3220
    %3222 = vrot.lane.b32.xlu0 %v3214, 124
    %v3223 = vpop.permute.xlu0 %3222
    %3224 = vrot.lane.b32.xlu0 %v3217, 124
    %v3225 = vpop.permute.xlu0 %3224
    %3226 = vrot.lane.b32.xlu0 %v3219, 124
    %v3227 = vpop.permute.xlu0 %3226
    %v3232 = vadd.f32 %v3192, %v3221
    %v3233 = vadd.f32 %v3193, %v3223
    %v3234 = vadd.f32 %v3194, %v3225
    %v3235 = vadd.f32 %v3195, %v3227
    %s3236 = sld [smem:[#allocation4 + $0x36]]
    %v3237 = vstv %s3236
    %v3238 = vmul.f32 %v1964, %v3237
    %v3239 = vmul.f32 %v1965, %v3237
    %v3240 = vmul.f32 %v1967, %v3237
    %v3241 = vmul.f32 %v1968, %v3237
    %3246 = vrot.lane.b32.xlu0 %v3238, 123
    %v3247 = vpop.permute.xlu0 %3246
    %3248 = vrot.lane.b32.xlu0 %v3239, 123
    %v3249 = vpop.permute.xlu0 %3248
    %3250 = vrot.lane.b32.xlu0 %v3240, 123
    %v3251 = vpop.permute.xlu0 %3250
    %3252 = vrot.lane.b32.xlu0 %v3241, 123
    %v3253 = vpop.permute.xlu0 %3252
    %v3258 = vadd.f32 %v3232, %v3247
    %v3259 = vadd.f32 %v3233, %v3249
    %v3260 = vadd.f32 %v3234, %v3251
    %v3261 = vadd.f32 %v3235, %v3253
    %s3262 = sld [smem:[#allocation4 + $0x3d]]
    %v3263 = vstv %s3262
    %v3264 = vmul.f32 %v1964, %v3263
    %v3265 = vmul.f32 %v1965, %v3263
    %v3266 = vmul.f32 %v1966, %v3263
    %v3267 = vmul.f32 %v1967, %v3263
    %v3268 = vmul.f32 %v1968, %v3263
    %v3269 = vmul.f32 %v1969, %v3263
    %v3276 = vrot.slane %v3264, 1
    %v3277 = vrot.slane %v3265, 1
    %v3278 = vsel %vm184, %v3276, %v3277
    %v3279 = vrot.slane %v3266, 1
    %v3280 = vsel %vm184, %v3277, %v3279
    %v3281 = vrot.slane %v3267, 1
    %v3282 = vrot.slane %v3268, 1
    %v3283 = vsel %vm184, %v3281, %v3282
    %v3284 = vrot.slane %v3269, 1
    %v3285 = vsel %vm184, %v3282, %v3284
    %3286 = vrot.lane.b32.xlu0 %v3278, 123
    %v3287 = vpop.permute.xlu0 %3286
    %3288 = vrot.lane.b32.xlu0 %v3280, 123
    %v3289 = vpop.permute.xlu0 %3288
    %3290 = vrot.lane.b32.xlu0 %v3283, 123
    %v3291 = vpop.permute.xlu0 %3290
    %3292 = vrot.lane.b32.xlu0 %v3285, 123
    %v3293 = vpop.permute.xlu0 %3292
    %v3298 = vadd.f32 %v3258, %v3287
    %v3299 = vadd.f32 %v3259, %v3289
    %v3300 = vadd.f32 %v3260, %v3291
    %v3301 = vadd.f32 %v3261, %v3293
    %s3302 = sld [smem:[#allocation4 + $0x44]]
    %v3303 = vstv %s3302
    %v3304 = vmul.f32 %v1964, %v3303
    %v3305 = vmul.f32 %v1965, %v3303
    %v3306 = vmul.f32 %v1966, %v3303
    %v3307 = vmul.f32 %v1967, %v3303
    %v3308 = vmul.f32 %v1968, %v3303
    %v3309 = vmul.f32 %v1969, %v3303
    %v3316 = vrot.slane %v3304, 2
    %v3317 = vrot.slane %v3305, 2
    %v3318 = vsel %vm217, %v3316, %v3317
    %v3319 = vrot.slane %v3306, 2
    %v3320 = vsel %vm217, %v3317, %v3319
    %v3321 = vrot.slane %v3307, 2
    %v3322 = vrot.slane %v3308, 2
    %v3323 = vsel %vm217, %v3321, %v3322
    %v3324 = vrot.slane %v3309, 2
    %v3325 = vsel %vm217, %v3322, %v3324
    %3326 = vrot.lane.b32.xlu0 %v3318, 123
    %v3327 = vpop.permute.xlu0 %3326
    %3328 = vrot.lane.b32.xlu0 %v3320, 123
    %v3329 = vpop.permute.xlu0 %3328
    %3330 = vrot.lane.b32.xlu0 %v3323, 123
    %v3331 = vpop.permute.xlu0 %3330
    %3332 = vrot.lane.b32.xlu0 %v3325, 123
    %v3333 = vpop.permute.xlu0 %3332
    %v3338 = vadd.f32 %v3298, %v3327
    %v3339 = vadd.f32 %v3299, %v3329
    %v3340 = vadd.f32 %v3300, %v3331
    %v3341 = vadd.f32 %v3301, %v3333
    %s3342 = sld [smem:[#allocation4 + $0x4b]]
    %v3343 = vstv %s3342
    %v3344 = vmul.f32 %v1964, %v3343
    %v3345 = vmul.f32 %v1965, %v3343
    %v3346 = vmul.f32 %v1966, %v3343
    %v3347 = vmul.f32 %v1967, %v3343
    %v3348 = vmul.f32 %v1968, %v3343
    %v3349 = vmul.f32 %v1969, %v3343
    %v3356 = vrot.slane %v3344, 3
    %v3357 = vrot.slane %v3345, 3
    %v3358 = vsel %vm250, %v3356, %v3357
    %v3359 = vrot.slane %v3346, 3
    %v3360 = vsel %vm250, %v3357, %v3359
    %v3361 = vrot.slane %v3347, 3
    %v3362 = vrot.slane %v3348, 3
    %v3363 = vsel %vm250, %v3361, %v3362
    %v3364 = vrot.slane %v3349, 3
    %v3365 = vsel %vm250, %v3362, %v3364
    %3366 = vrot.lane.b32.xlu0 %v3358, 123
    %v3367 = vpop.permute.xlu0 %3366
    %3368 = vrot.lane.b32.xlu0 %v3360, 123
    %v3369 = vpop.permute.xlu0 %3368
    %3370 = vrot.lane.b32.xlu0 %v3363, 123
    %v3371 = vpop.permute.xlu0 %3370
    %3372 = vrot.lane.b32.xlu0 %v3365, 123
    %v3373 = vpop.permute.xlu0 %3372
    %v3378 = vadd.f32 %v3338, %v3367
    %v3379 = vadd.f32 %v3339, %v3369
    %v3380 = vadd.f32 %v3340, %v3371
    %v3381 = vadd.f32 %v3341, %v3373
    %s3382 = sld [smem:[#allocation4 + $0x52]]
    %v3383 = vstv %s3382
    %v3384 = vmul.f32 %v1964, %v3383
    %v3385 = vmul.f32 %v1965, %v3383
    %v3386 = vmul.f32 %v1966, %v3383
    %v3387 = vmul.f32 %v1967, %v3383
    %v3388 = vmul.f32 %v1968, %v3383
    %v3389 = vmul.f32 %v1969, %v3383
    %v3396 = vrot.slane %v3384, 4
    %v3397 = vrot.slane %v3385, 4
    %v3398 = vsel %vm283, %v3396, %v3397
    %v3399 = vrot.slane %v3386, 4
    %v3400 = vsel %vm283, %v3397, %v3399
    %v3401 = vrot.slane %v3387, 4
    %v3402 = vrot.slane %v3388, 4
    %v3403 = vsel %vm283, %v3401, %v3402
    %v3404 = vrot.slane %v3389, 4
    %v3405 = vsel %vm283, %v3402, %v3404
    %3406 = vrot.lane.b32.xlu0 %v3398, 123
    %v3407 = vpop.permute.xlu0 %3406
    %3408 = vrot.lane.b32.xlu0 %v3400, 123
    %v3409 = vpop.permute.xlu0 %3408
    %3410 = vrot.lane.b32.xlu0 %v3403, 123
    %v3411 = vpop.permute.xlu0 %3410
    %3412 = vrot.lane.b32.xlu0 %v3405, 123
    %v3413 = vpop.permute.xlu0 %3412
    %v3418 = vadd.f32 %v3378, %v3407
    %v3419 = vadd.f32 %v3379, %v3409
    %v3420 = vadd.f32 %v3380, %v3411
    %v3421 = vadd.f32 %v3381, %v3413
    %s3422 = sld [smem:[#allocation4 + $0x59]]
    %v3423 = vstv %s3422
    %v3424 = vmul.f32 %v1964, %v3423
    %v3425 = vmul.f32 %v1965, %v3423
    %v3426 = vmul.f32 %v1966, %v3423
    %v3427 = vmul.f32 %v1967, %v3423
    %v3428 = vmul.f32 %v1968, %v3423
    %v3429 = vmul.f32 %v1969, %v3423
    %v3436 = vrot.slane %v3424, 5
    %v3437 = vrot.slane %v3425, 5
    %v3438 = vsel %vm316, %v3436, %v3437
    %v3439 = vrot.slane %v3426, 5
    %v3440 = vsel %vm316, %v3437, %v3439
    %v3441 = vrot.slane %v3427, 5
    %v3442 = vrot.slane %v3428, 5
    %v3443 = vsel %vm316, %v3441, %v3442
    %v3444 = vrot.slane %v3429, 5
    %v3445 = vsel %vm316, %v3442, %v3444
    %3446 = vrot.lane.b32.xlu0 %v3438, 123
    %v3447 = vpop.permute.xlu0 %3446
    %3448 = vrot.lane.b32.xlu0 %v3440, 123
    %v3449 = vpop.permute.xlu0 %3448
    %3450 = vrot.lane.b32.xlu0 %v3443, 123
    %v3451 = vpop.permute.xlu0 %3450
    %3452 = vrot.lane.b32.xlu0 %v3445, 123
    %v3453 = vpop.permute.xlu0 %3452
    %v3458 = vadd.f32 %v3418, %v3447
    %v3459 = vadd.f32 %v3419, %v3449
    %v3460 = vadd.f32 %v3420, %v3451
    %v3461 = vadd.f32 %v3421, %v3453
    %s3462 = sld [smem:[#allocation4 + $0x60]]
    %v3463 = vstv %s3462
    %v3464 = vmul.f32 %v1964, %v3463
    %v3465 = vmul.f32 %v1965, %v3463
    %v3466 = vmul.f32 %v1966, %v3463
    %v3467 = vmul.f32 %v1967, %v3463
    %v3468 = vmul.f32 %v1968, %v3463
    %v3469 = vmul.f32 %v1969, %v3463
    %v3476 = vrot.slane %v3464, 6
    %v3477 = vrot.slane %v3465, 6
    %v3478 = vsel %vm349, %v3476, %v3477
    %v3479 = vrot.slane %v3466, 6
    %v3480 = vsel %vm349, %v3477, %v3479
    %v3481 = vrot.slane %v3467, 6
    %v3482 = vrot.slane %v3468, 6
    %v3483 = vsel %vm349, %v3481, %v3482
    %v3484 = vrot.slane %v3469, 6
    %v3485 = vsel %vm349, %v3482, %v3484
    %3486 = vrot.lane.b32.xlu0 %v3478, 123
    %v3487 = vpop.permute.xlu0 %3486
    %3488 = vrot.lane.b32.xlu0 %v3480, 123
    %v3489 = vpop.permute.xlu0 %3488
    %3490 = vrot.lane.b32.xlu0 %v3483, 123
    %v3491 = vpop.permute.xlu0 %3490
    %3492 = vrot.lane.b32.xlu0 %v3485, 123
    %v3493 = vpop.permute.xlu0 %3492
    %v3498 = vadd.f32 %v3458, %v3487
    %v3499 = vadd.f32 %v3459, %v3489
    %v3500 = vadd.f32 %v3460, %v3491
    %v3501 = vadd.f32 %v3461, %v3493
    %s3502 = sld [smem:[#allocation4 + $0x37]]
    %v3503 = vstv %s3502
    %v3504 = vmul.f32 %v1964, %v3503
    %v3505 = vmul.f32 %v1965, %v3503
    %v3506 = vmul.f32 %v1967, %v3503
    %v3507 = vmul.f32 %v1968, %v3503
    %3512 = vrot.lane.b32.xlu0 %v3504, 122
    %v3513 = vpop.permute.xlu0 %3512
    %3514 = vrot.lane.b32.xlu0 %v3505, 122
    %v3515 = vpop.permute.xlu0 %3514
    %3516 = vrot.lane.b32.xlu0 %v3506, 122
    %v3517 = vpop.permute.xlu0 %3516
    %3518 = vrot.lane.b32.xlu0 %v3507, 122
    %v3519 = vpop.permute.xlu0 %3518
    %v3524 = vadd.f32 %v3498, %v3513
    %v3525 = vadd.f32 %v3499, %v3515
    %v3526 = vadd.f32 %v3500, %v3517
    %v3527 = vadd.f32 %v3501, %v3519
    %s3528 = sld [smem:[#allocation4 + $0x3e]]
    %v3529 = vstv %s3528
    %v3530 = vmul.f32 %v1964, %v3529
    %v3531 = vmul.f32 %v1965, %v3529
    %v3532 = vmul.f32 %v1966, %v3529
    %v3533 = vmul.f32 %v1967, %v3529
    %v3534 = vmul.f32 %v1968, %v3529
    %v3535 = vmul.f32 %v1969, %v3529
    %v3542 = vrot.slane %v3530, 1
    %v3543 = vrot.slane %v3531, 1
    %v3544 = vsel %vm184, %v3542, %v3543
    %v3545 = vrot.slane %v3532, 1
    %v3546 = vsel %vm184, %v3543, %v3545
    %v3547 = vrot.slane %v3533, 1
    %v3548 = vrot.slane %v3534, 1
    %v3549 = vsel %vm184, %v3547, %v3548
    %v3550 = vrot.slane %v3535, 1
    %v3551 = vsel %vm184, %v3548, %v3550
    %3552 = vrot.lane.b32.xlu0 %v3544, 122
    %v3553 = vpop.permute.xlu0 %3552
    %3554 = vrot.lane.b32.xlu0 %v3546, 122
    %v3555 = vpop.permute.xlu0 %3554
    %3556 = vrot.lane.b32.xlu0 %v3549, 122
    %v3557 = vpop.permute.xlu0 %3556
    %3558 = vrot.lane.b32.xlu0 %v3551, 122
    %v3559 = vpop.permute.xlu0 %3558
    %v3564 = vadd.f32 %v3524, %v3553
    %v3565 = vadd.f32 %v3525, %v3555
    %v3566 = vadd.f32 %v3526, %v3557
    %v3567 = vadd.f32 %v3527, %v3559
    %s3568 = sld [smem:[#allocation4 + $0x45]]
    %v3569 = vstv %s3568
    %v3570 = vmul.f32 %v1964, %v3569
    %v3571 = vmul.f32 %v1965, %v3569
    %v3572 = vmul.f32 %v1966, %v3569
    %v3573 = vmul.f32 %v1967, %v3569
    %v3574 = vmul.f32 %v1968, %v3569
    %v3575 = vmul.f32 %v1969, %v3569
    %v3582 = vrot.slane %v3570, 2
    %v3583 = vrot.slane %v3571, 2
    %v3584 = vsel %vm217, %v3582, %v3583
    %v3585 = vrot.slane %v3572, 2
    %v3586 = vsel %vm217, %v3583, %v3585
    %v3587 = vrot.slane %v3573, 2
    %v3588 = vrot.slane %v3574, 2
    %v3589 = vsel %vm217, %v3587, %v3588
    %v3590 = vrot.slane %v3575, 2
    %v3591 = vsel %vm217, %v3588, %v3590
    %3592 = vrot.lane.b32.xlu0 %v3584, 122
    %v3593 = vpop.permute.xlu0 %3592
    %3594 = vrot.lane.b32.xlu0 %v3586, 122
    %v3595 = vpop.permute.xlu0 %3594
    %3596 = vrot.lane.b32.xlu0 %v3589, 122
    %v3597 = vpop.permute.xlu0 %3596
    %3598 = vrot.lane.b32.xlu0 %v3591, 122
    %v3599 = vpop.permute.xlu0 %3598
    %v3604 = vadd.f32 %v3564, %v3593
    %v3605 = vadd.f32 %v3565, %v3595
    %v3606 = vadd.f32 %v3566, %v3597
    %v3607 = vadd.f32 %v3567, %v3599
    %s3608 = sld [smem:[#allocation4 + $0x4c]]
    %v3609 = vstv %s3608
    %v3610 = vmul.f32 %v1964, %v3609
    %v3611 = vmul.f32 %v1965, %v3609
    %v3612 = vmul.f32 %v1966, %v3609
    %v3613 = vmul.f32 %v1967, %v3609
    %v3614 = vmul.f32 %v1968, %v3609
    %v3615 = vmul.f32 %v1969, %v3609
    %v3622 = vrot.slane %v3610, 3
    %v3623 = vrot.slane %v3611, 3
    %v3624 = vsel %vm250, %v3622, %v3623
    %v3625 = vrot.slane %v3612, 3
    %v3626 = vsel %vm250, %v3623, %v3625
    %v3627 = vrot.slane %v3613, 3
    %v3628 = vrot.slane %v3614, 3
    %v3629 = vsel %vm250, %v3627, %v3628
    %v3630 = vrot.slane %v3615, 3
    %v3631 = vsel %vm250, %v3628, %v3630
    %3632 = vrot.lane.b32.xlu0 %v3624, 122
    %v3633 = vpop.permute.xlu0 %3632
    %3634 = vrot.lane.b32.xlu0 %v3626, 122
    %v3635 = vpop.permute.xlu0 %3634
    %3636 = vrot.lane.b32.xlu0 %v3629, 122
    %v3637 = vpop.permute.xlu0 %3636
    %3638 = vrot.lane.b32.xlu0 %v3631, 122
    %v3639 = vpop.permute.xlu0 %3638
    %v3644 = vadd.f32 %v3604, %v3633
    %v3645 = vadd.f32 %v3605, %v3635
    %v3646 = vadd.f32 %v3606, %v3637
    %v3647 = vadd.f32 %v3607, %v3639
    %s3648 = sld [smem:[#allocation4 + $0x53]]
    %v3649 = vstv %s3648
    %v3650 = vmul.f32 %v1964, %v3649
    %v3651 = vmul.f32 %v1965, %v3649
    %v3652 = vmul.f32 %v1966, %v3649
    %v3653 = vmul.f32 %v1967, %v3649
    %v3654 = vmul.f32 %v1968, %v3649
    %v3655 = vmul.f32 %v1969, %v3649
    %v3662 = vrot.slane %v3650, 4
    %v3663 = vrot.slane %v3651, 4
    %v3664 = vsel %vm283, %v3662, %v3663
    %v3665 = vrot.slane %v3652, 4
    %v3666 = vsel %vm283, %v3663, %v3665
    %v3667 = vrot.slane %v3653, 4
    %v3668 = vrot.slane %v3654, 4
    %v3669 = vsel %vm283, %v3667, %v3668
    %v3670 = vrot.slane %v3655, 4
    %v3671 = vsel %vm283, %v3668, %v3670
    %3672 = vrot.lane.b32.xlu0 %v3664, 122
    %v3673 = vpop.permute.xlu0 %3672
    %3674 = vrot.lane.b32.xlu0 %v3666, 122
    %v3675 = vpop.permute.xlu0 %3674
    %3676 = vrot.lane.b32.xlu0 %v3669, 122
    %v3677 = vpop.permute.xlu0 %3676
    %3678 = vrot.lane.b32.xlu0 %v3671, 122
    %v3679 = vpop.permute.xlu0 %3678
    %v3684 = vadd.f32 %v3644, %v3673
    %v3685 = vadd.f32 %v3645, %v3675
    %v3686 = vadd.f32 %v3646, %v3677
    %v3687 = vadd.f32 %v3647, %v3679
    %s3688 = sld [smem:[#allocation4 + $0x5a]]
    %v3689 = vstv %s3688
    %v3690 = vmul.f32 %v1964, %v3689
    %v3691 = vmul.f32 %v1965, %v3689
    %v3692 = vmul.f32 %v1966, %v3689
    %v3693 = vmul.f32 %v1967, %v3689
    %v3694 = vmul.f32 %v1968, %v3689
    %v3695 = vmul.f32 %v1969, %v3689
    %v3702 = vrot.slane %v3690, 5
    %v3703 = vrot.slane %v3691, 5
    %v3704 = vsel %vm316, %v3702, %v3703
    %v3705 = vrot.slane %v3692, 5
    %v3706 = vsel %vm316, %v3703, %v3705
    %v3707 = vrot.slane %v3693, 5
    %v3708 = vrot.slane %v3694, 5
    %v3709 = vsel %vm316, %v3707, %v3708
    %v3710 = vrot.slane %v3695, 5
    %v3711 = vsel %vm316, %v3708, %v3710
    %3712 = vrot.lane.b32.xlu0 %v3704, 122
    %v3713 = vpop.permute.xlu0 %3712
    %3714 = vrot.lane.b32.xlu0 %v3706, 122
    %v3715 = vpop.permute.xlu0 %3714
    %3716 = vrot.lane.b32.xlu0 %v3709, 122
    %v3717 = vpop.permute.xlu0 %3716
    %3718 = vrot.lane.b32.xlu0 %v3711, 122
    %v3719 = vpop.permute.xlu0 %3718
    %v3724 = vadd.f32 %v3684, %v3713
    %v3725 = vadd.f32 %v3685, %v3715
    %v3726 = vadd.f32 %v3686, %v3717
    %v3727 = vadd.f32 %v3687, %v3719
    %s3728 = sld [smem:[#allocation4 + $0x61]]
    %v3729 = vstv %s3728
    %v3730 = vmul.f32 %v1964, %v3729
    %v3731 = vmul.f32 %v1965, %v3729
    %v3732 = vmul.f32 %v1966, %v3729
    %v3733 = vmul.f32 %v1967, %v3729
    %v3734 = vmul.f32 %v1968, %v3729
    %v3735 = vmul.f32 %v1969, %v3729
    %v3742 = vrot.slane %v3730, 6
    %v3743 = vrot.slane %v3731, 6
    %v3744 = vsel %vm349, %v3742, %v3743
    %v3745 = vrot.slane %v3732, 6
    %v3746 = vsel %vm349, %v3743, %v3745
    %v3747 = vrot.slane %v3733, 6
    %v3748 = vrot.slane %v3734, 6
    %v3749 = vsel %vm349, %v3747, %v3748
    %v3750 = vrot.slane %v3735, 6
    %v3751 = vsel %vm349, %v3748, %v3750
    %3752 = vrot.lane.b32.xlu0 %v3744, 122
    %v3753 = vpop.permute.xlu0 %3752
    %3754 = vrot.lane.b32.xlu0 %v3746, 122
    %v3755 = vpop.permute.xlu0 %3754
    %3756 = vrot.lane.b32.xlu0 %v3749, 122
    %v3757 = vpop.permute.xlu0 %3756
    %3758 = vrot.lane.b32.xlu0 %v3751, 122
    %v3759 = vpop.permute.xlu0 %3758
    %v3764 = vadd.f32 %v3724, %v3753
    %v3765 = vadd.f32 %v3725, %v3755
    %v3766 = vadd.f32 %v3726, %v3757
    %v3767 = vadd.f32 %v3727, %v3759
    %vm3768 = vcmask 130048
    %3769 = vst.msk [vmem:[#allocation9] sm:$0xff] %vm3768, %v3764
    %3770 = vst.msk [vmem:[#allocation9 + $0x8] sm:$0xff] %vm3768, %v3765
    %3771 = vst.msk [vmem:[#allocation9 + $0x10] sm:$0xff] %vm3768, %v3766
    %3772 = vst.msk [vmem:[#allocation9 + $0x18] sm:$0xff] %vm3768, %v3767
    // Predicated region
    $region22: #{tpu_custom_call.1} parent=1 // pred_check
      _
    $region23: #{tpu_custom_call.1} parent=1 // pred_check_branch
      %3774 = sbr.rel (0) target = $region25
    $region24: #{tpu_custom_call.1} parent=1 // pred_region
      %s3776 = ssub.s32 512, 512
      %3777 = vsyncadd [#allocation6], %s3776
      %s3778 = sshll.u32 [#allocation9], 4
      %s3779 = int_to_ptr.vmem [resolvable:$true] %s3778
      %3784 = dma.vmem_to_hbm [thread:$0]  %s3779, 512, %s3, [#allocation6], 128, 128, 8
    $region25: #{tpu_custom_call.1} parent=1 // pred_fallthru
      _
    // Predicated region
    $region26: #{tpu_custom_call.1} parent=1 // pred_check
      _
    $region27: #{tpu_custom_call.1} parent=1 // pred_check_branch
      %3786 = sbr.rel (0) target = $region29
    $region28: #{tpu_custom_call.1} parent=1 // pred_region
      %3787 = dma.done [#allocation6], 512
    $region29: #{tpu_custom_call.1} parent=1 // pred_fallthru
      _
    %3788 = vsyncpa [#allocation5], 1
    %3789 = vsyncpa [#allocation6], 1
    %3790 = vsyncpa [#allocation7], 1

</llo_original>
